<compile_context>
chip_gen: v7x
topology: tpu7x:2x2x1
jax: 0.10.0
libtpu: 0.0.40
codegen_flags: <defaults>
</compile_context>

<pallas_src>
import jax
import jax.numpy as jnp
from jax.experimental import pallas as pl
from jax.experimental.pallas import tpu as pltpu

EPS = 1e-5


def _make_kernel(N, CPAD, D, H, W, K):
    S = D * H * W          # flattened spatial size per sample
    L = N * S              # lane extent of every activation slab
    inv_cnt = 1.0 / float(L)
    half = K // 2

    def kernel(w1m_ref, p1_ref, w2c_ref, mask_ref, g1_ref, be1_ref,
               g2_ref, be2_ref, pool_ref, out_ref):
        # ---------- conv1: one MXU matmul over the im2col patch matrix (bias dropped) --
        a1 = jnp.dot(w1m_ref[...], p1_ref[...],
                     preferred_element_type=jnp.float32)            # (CPAD, L)

        # ---------- BN1 (train-mode batch stats, single fused pass) + ReLU -------------
        m1 = jnp.sum(a1, axis=1, keepdims=True) * inv_cnt           # (CPAD, 1) mean
        q1 = jnp.sum(a1 * a1, axis=1, keepdims=True) * inv_cnt      # (CPAD, 1) E[x^2]
        scale1 = g1_ref[...] * jax.lax.rsqrt(q1 - m1 * m1 + EPS)    # EUP rsqrt
        shift1 = be1_ref[...] - m1 * scale1
        h1 = jnp.maximum(a1 * scale1 + shift1, 0.0)                 # (CPAD, L)

        # ---------- conv2: 27 taps = lane roll (XLU) * in-kernel masked weight (VPU) ---
        acc = None
        t = 0
        for dd in range(-half, half + 1):
            for dh in range(-half, half + 1):
                for dw in range(-half, half + 1):
                    off = (dd * H + dh) * W + dw
                    rolled = h1 if off == 0 else pltpu.roll(h1, shift=(-off) % L, axis=1)
                    masked = rolled * mask_ref[pl.ds(t, 1), :]       # (CPAD,L)*(1,L)
                    term = masked * w2c_ref[:, t:t + 1]              # *(CPAD,1) lane-bcast
                    acc = term if acc is None else acc + term
                    t += 1
        a2 = jnp.sum(acc, axis=0, keepdims=True)                     # (1, L): contract ci

        # ---------- BN2 + ReLU ----------------------------------------------------------
        m2 = jnp.sum(a2, axis=1, keepdims=True) * inv_cnt
        q2 = jnp.sum(a2 * a2, axis=1, keepdims=True) * inv_cnt
        scale2 = g2_ref[...] * jax.lax.rsqrt(q2 - m2 * m2 + EPS)
        shift2 = be2_ref[...] - m2 * scale2
        y2 = jnp.maximum(a2 * scale2 + shift2, 0.0)                  # (1, L)

        # ---------- AdaptiveAvgPool3d(1): per-sample mean via (N,L) mask + lane reduce --
        out_ref[...] = jnp.sum(y2 * pool_ref[...], axis=1, keepdims=True)  # (N, 1)

    return kernel


def conv_classifier_forward(x, params):
    """x: (N, Cin, D, H, W) float32 (PyTorch NCDHW). Returns (N, 1, 1, 1, 1)."""
    w1, _b1, g1, be1, w2, _b2, g2, be2 = params   # conv biases cancel in train-mode BN
    N, CIN, D, H, W = x.shape
    CMID = w1.shape[0]
    K = w1.shape[2]
    T = K * K * K
    S = D * H * W
    L = N * S
    CPAD = max(8, -(-CMID // 8) * 8)      # pad channel rows to a full sublane tile
    KPAD = -(-(CIN * T) // 64) * 64       # pad the conv1 contraction dim

    f32 = jnp.float32
    x = x.astype(f32)

    # ---- wrapper-side layout plumbing: im2col patches and tap validity masks ----------
    xp = jnp.pad(x, ((0, 0), (0, 0), (1, 1), (1, 1), (1, 1)))
    ones_p = jnp.pad(jnp.ones((D, H, W), f32), ((1, 1), (1, 1), (1, 1)))
    patches, masks = [], []
    for kd in range(K):
        for kh in range(K):
            for kw in range(K):
                patches.append(xp[:, :, kd:kd + D, kh:kh + H, kw:kw + W])
                masks.append(ones_p[kd:kd + D, kh:kh + H, kw:kw + W].reshape(S))
    # (T, N, CIN, D, H, W) -> (CIN, T, N, S) -> (CIN*T, L): rows = ci*T + t, cols = n*S + p
    p1 = jnp.transpose(jnp.stack(patches, 0), (2, 0, 1, 3, 4, 5)).reshape(CIN * T, L)
    p1 = jnp.pad(p1, ((0, KPAD - CIN * T), (0, 0)))

    # conv1 weight slab (CPAD, KPAD): rows = co, cols = ci*T + t (zero-padded)
    w1m = jnp.pad(w1.reshape(CMID, CIN * T).astype(f32),
                  ((0, CPAD - CMID), (0, KPAD - CIN * T)))

    # conv2: tiny weight tile (CPAD, T) + output-side tap validity mask (T, L)
    mask_l = jnp.tile(jnp.stack(masks, 0), (1, N))                              # (T, L)
    w2c = jnp.pad(w2.reshape(CMID, T).astype(f32), ((0, CPAD - CMID), (0, 0)))  # (CPAD, T)

    # BN affine params; padded channel rows use gamma=0/beta=0 so they stay exactly zero
    g1p = jnp.pad(g1.astype(f32).reshape(CMID, 1), ((0, CPAD - CMID), (0, 0)))
    be1p = jnp.pad(be1.astype(f32).reshape(CMID, 1), ((0, CPAD - CMID), (0, 0)))
    g2p = g2.astype(f32).reshape(1, 1)
    be2p = be2.astype(f32).reshape(1, 1)

    # per-sample averaging mask for AdaptiveAvgPool3d(1): pool[n, n*S+p] = 1/S
    pool_nl = jnp.repeat(jnp.eye(N, dtype=f32), S, axis=1) / float(S)           # (N, L)

    kernel = _make_kernel(N, CPAD, D, H, W, K)
    vmem = pl.BlockSpec(memory_space=pltpu.MemorySpace.VMEM)

    out2d = pl.pallas_call(
        kernel,
        out_shape=jax.ShapeDtypeStruct((N, 1), jnp.float32),
        in_specs=[vmem] * 9,
        out_specs=vmem,
    )(w1m, p1, w2c, mask_l, g1p, be1p, g2p, be2p, pool_nl)

    return out2d.reshape(N, 1, 1, 1, 1)


def reference_forward(x, params):
    """Pure-JAX reference of the PyTorch forward (train-mode BN, fresh module)."""
    w1, b1, g1, be1, w2, b2, g2, be2 = params

    def conv(y, w, b):
        out = jax.lax.conv_general_dilated(
            y, w, window_strides=(1, 1, 1), padding=[(1, 1)] * 3,
            dimension_numbers=('NCDHW', 'OIDHW', 'NCDHW'),
            precision=jax.lax.Precision.HIGHEST)
        return out + b.reshape(1, -1, 1, 1, 1)

    def bn_relu(y, g, be):
        m = jnp.mean(y, axis=(0, 2, 3, 4), keepdims=True)
        v = jnp.mean((y - m) ** 2, axis=(0, 2, 3, 4), keepdims=True)
        yn = (y - m) * jax.lax.rsqrt(v + EPS)
        return jnp.maximum(yn * g.reshape(1, -1, 1, 1, 1) + be.reshape(1, -1, 1, 1, 1), 0.0)

    y = bn_relu(conv(x, w1, b1), g1, be1)
    y = bn_relu(conv(y, w2, b2), g2, be2)
    return jnp.mean(y, axis=(2, 3, 4), keepdims=True)


if __name__ == "__main__":
    N, CIN, CMID, COUT, D, H, W, K = 2, 2, 4, 1, 8, 8, 8, 3

    key = jax.random.PRNGKey(0)
    ks = jax.random.split(key, 9)

    def bf16_exact(a):
        # Round the MXU operands to bf16-representable f32 so the conv1 matmul is exact
        # regardless of the MXU's f32 pass mode; the reference sees the same values.
        return a.astype(jnp.bfloat16).astype(jnp.float32)

    x = bf16_exact(jax.random.normal(ks[0], (N, CIN, D, H, W), jnp.float32))

    # deterministic synthetic parameters (shapes follow the PyTorch module __init__)
    w1 = bf16_exact(0.1 * jax.random.normal(ks[1], (CMID, CIN, K, K, K), jnp.float32))
    b1 = 0.1 * jax.random.normal(ks[2], (CMID,), jnp.float32)
    g1 = 1.0 + 0.1 * jax.random.normal(ks[3], (CMID,), jnp.float32)
    be1 = 0.1 * jax.random.normal(ks[4], (CMID,), jnp.float32)
    w2 = 0.1 * jax.random.normal(ks[5], (COUT, CMID, K, K, K), jnp.float32)
    b2 = 0.1 * jax.random.normal(ks[6], (COUT,), jnp.float32)
    g2 = 1.0 + 0.1 * jax.random.normal(ks[7], (COUT,), jnp.float32)
    be2 = 0.1 * jax.random.normal(ks[8], (COUT,), jnp.float32)
    params = (w1, b1, g1, be1, w2, b2, g2, be2)

    out = conv_classifier_forward(x, params)
    out = jax.block_until_ready(out)
    assert out.shape == (N, 1, 1, 1, 1), out.shape

    ref = reference_forward(x, params)
    if not bool(jnp.allclose(out, ref, atol=1e-3, rtol=1e-3)):
        raise AssertionError(f"mismatch: kernel={out.ravel()} ref={ref.ravel()}")

    print("KERNEL_OK")
</pallas_src>

<mosaic_0001>
module attributes {stable_mosaic.version = 11 : i64} {
  func.func @kernel(%arg0: memref<8x64xf32, #tpu.memory_space<vmem>>, %arg1: memref<64x1024xf32, #tpu.memory_space<vmem>>, %arg2: memref<8x27xf32, #tpu.memory_space<vmem>>, %arg3: memref<27x1024xf32, #tpu.memory_space<vmem>>, %arg4: memref<8x1xf32, #tpu.memory_space<vmem>>, %arg5: memref<8x1xf32, #tpu.memory_space<vmem>>, %arg6: memref<1x1xf32, #tpu.memory_space<vmem>>, %arg7: memref<1x1xf32, #tpu.memory_space<vmem>>, %arg8: memref<2x1024xf32, #tpu.memory_space<vmem>>, %arg9: memref<2x1xf32, #tpu.memory_space<vmem>>) attributes {dimension_semantics = [], scalar_prefetch = 0 : i64, scratch_operands = 0 : i64, tpu.core_type = #tpu.core_type<tc>} {
    %c0 = arith.constant 0 : index
    %c0_0 = arith.constant 0 : index
    %0 = vector.load %arg0[%c0, %c0_0] : memref<8x64xf32, #tpu.memory_space<vmem>>, vector<8x64xf32>
    %c0_1 = arith.constant 0 : index
    %c0_2 = arith.constant 0 : index
    %1 = vector.load %arg1[%c0_1, %c0_2] : memref<64x1024xf32, #tpu.memory_space<vmem>>, vector<64x1024xf32>
    %cst = arith.constant dense<0.000000e+00> : vector<8x1024xf32>
    %2 = tpu.matmul %0, %1, %cst {dimension_numbers = #tpu.dot_dimension_numbers<[1], [0], [0], [1], [0, 0, 1, 1], [], []>} : vector<8x64xf32>, vector<64x1024xf32>, vector<8x1024xf32> -> vector<8x1024xf32>
    %cst_3 = arith.constant dense<0.000000e+00> : vector<8xf32>
    %3 = vector.multi_reduction <add>, %2, %cst_3 [1] : vector<8x1024xf32> to vector<8xf32>
    %4 = vector.shape_cast %3 : vector<8xf32> to vector<8x1xf32>
    %cst_4 = arith.constant 9.765625E-4 : f32
    %5 = vector.broadcast %cst_4 : f32 to vector<8x1xf32>
    %6 = arith.mulf %4, %5 : vector<8x1xf32>
    %7 = arith.mulf %2, %2 : vector<8x1024xf32>
    %cst_5 = arith.constant dense<0.000000e+00> : vector<8xf32>
    %8 = vector.multi_reduction <add>, %7, %cst_5 [1] : vector<8x1024xf32> to vector<8xf32>
    %9 = vector.shape_cast %8 : vector<8xf32> to vector<8x1xf32>
    %cst_6 = arith.constant 9.765625E-4 : f32
    %10 = vector.broadcast %cst_6 : f32 to vector<8x1xf32>
    %11 = arith.mulf %9, %10 : vector<8x1xf32>
    %c0_7 = arith.constant 0 : index
    %c0_8 = arith.constant 0 : index
    %12 = vector.load %arg4[%c0_7, %c0_8] : memref<8x1xf32, #tpu.memory_space<vmem>>, vector<8x1xf32>
    %13 = arith.mulf %6, %6 : vector<8x1xf32>
    %14 = arith.subf %11, %13 : vector<8x1xf32>
    %cst_9 = arith.constant 9.99999974E-6 : f32
    %15 = vector.broadcast %cst_9 : f32 to vector<8x1xf32>
    %16 = arith.addf %14, %15 : vector<8x1xf32>
    %17 = math.rsqrt %16 : vector<8x1xf32>
    %18 = arith.mulf %12, %17 : vector<8x1xf32>
    %c0_10 = arith.constant 0 : index
    %c0_11 = arith.constant 0 : index
    %19 = vector.load %arg5[%c0_10, %c0_11] : memref<8x1xf32, #tpu.memory_space<vmem>>, vector<8x1xf32>
    %20 = arith.mulf %6, %18 : vector<8x1xf32>
    %21 = arith.subf %19, %20 : vector<8x1xf32>
    %22 = vector.broadcast %18 : vector<8x1xf32> to vector<8x1024xf32>
    %23 = arith.mulf %2, %22 : vector<8x1024xf32>
    %24 = vector.broadcast %21 : vector<8x1xf32> to vector<8x1024xf32>
    %25 = arith.addf %23, %24 : vector<8x1024xf32>
    %cst_12 = arith.constant 0.000000e+00 : f32
    %26 = vector.broadcast %cst_12 : f32 to vector<8x1024xf32>
    %27 = arith.maximumf %25, %26 : vector<8x1024xf32>
    %c73_i32 = arith.constant 73 : i32
    %28 = tpu.dynamic_rotate %27 by %c73_i32 dim 1 : vector<8x1024xf32>, i32 -> vector<8x1024xf32>
    %c0_13 = arith.constant 0 : index
    %c0_14 = arith.constant 0 : index
    %29 = vector.load %arg3[%c0_13, %c0_14] : memref<27x1024xf32, #tpu.memory_space<vmem>>, vector<1x1024xf32>
    %30 = vector.broadcast %29 : vector<1x1024xf32> to vector<8x1024xf32>
    %31 = arith.mulf %28, %30 : vector<8x1024xf32>
    %c0_15 = arith.constant 0 : index
    %c0_16 = arith.constant 0 : index
    %32 = vector.load %arg2[%c0_15, %c0_16] : memref<8x27xf32, #tpu.memory_space<vmem>>, vector<8x1xf32>
    %33 = vector.broadcast %32 : vector<8x1xf32> to vector<8x1024xf32>
    %34 = arith.mulf %31, %33 : vector<8x1024xf32>
    %c72_i32 = arith.constant 72 : i32
    %35 = tpu.dynamic_rotate %27 by %c72_i32 dim 1 : vector<8x1024xf32>, i32 -> vector<8x1024xf32>
    %c1 = arith.constant 1 : index
    %c0_17 = arith.constant 0 : index
    %36 = vector.load %arg3[%c1, %c0_17] : memref<27x1024xf32, #tpu.memory_space<vmem>>, vector<1x1024xf32>
    %37 = vector.broadcast %36 : vector<1x1024xf32> to vector<8x1024xf32>
    %38 = arith.mulf %35, %37 : vector<8x1024xf32>
    %c0_18 = arith.constant 0 : index
    %c1_19 = arith.constant 1 : index
    %39 = vector.load %arg2[%c0_18, %c1_19] : memref<8x27xf32, #tpu.memory_space<vmem>>, vector<8x1xf32>
    %40 = vector.broadcast %39 : vector<8x1xf32> to vector<8x1024xf32>
    %41 = arith.mulf %38, %40 : vector<8x1024xf32>
    %42 = arith.addf %34, %41 : vector<8x1024xf32>
    %c71_i32 = arith.constant 71 : i32
    %43 = tpu.dynamic_rotate %27 by %c71_i32 dim 1 : vector<8x1024xf32>, i32 -> vector<8x1024xf32>
    %c2 = arith.constant 2 : index
    %c0_20 = arith.constant 0 : index
    %44 = vector.load %arg3[%c2, %c0_20] : memref<27x1024xf32, #tpu.memory_space<vmem>>, vector<1x1024xf32>
    %45 = vector.broadcast %44 : vector<1x1024xf32> to vector<8x1024xf32>
    %46 = arith.mulf %43, %45 : vector<8x1024xf32>
    %c0_21 = arith.constant 0 : index
    %c2_22 = arith.constant 2 : index
    %47 = vector.load %arg2[%c0_21, %c2_22] : memref<8x27xf32, #tpu.memory_space<vmem>>, vector<8x1xf32>
    %48 = vector.broadcast %47 : vector<8x1xf32> to vector<8x1024xf32>
    %49 = arith.mulf %46, %48 : vector<8x1024xf32>
    %50 = arith.addf %42, %49 : vector<8x1024xf32>
    %c65_i32 = arith.constant 65 : i32
    %51 = tpu.dynamic_rotate %27 by %c65_i32 dim 1 : vector<8x1024xf32>, i32 -> vector<8x1024xf32>
    %c3 = arith.constant 3 : index
    %c0_23 = arith.constant 0 : index
    %52 = vector.load %arg3[%c3, %c0_23] : memref<27x1024xf32, #tpu.memory_space<vmem>>, vector<1x1024xf32>
    %53 = vector.broadcast %52 : vector<1x1024xf32> to vector<8x1024xf32>
    %54 = arith.mulf %51, %53 : vector<8x1024xf32>
    %c0_24 = arith.constant 0 : index
    %c3_25 = arith.constant 3 : index
    %55 = vector.load %arg2[%c0_24, %c3_25] : memref<8x27xf32, #tpu.memory_space<vmem>>, vector<8x1xf32>
    %56 = vector.broadcast %55 : vector<8x1xf32> to vector<8x1024xf32>
    %57 = arith.mulf %54, %56 : vector<8x1024xf32>
    %58 = arith.addf %50, %57 : vector<8x1024xf32>
    %c64_i32 = arith.constant 64 : i32
    %59 = tpu.dynamic_rotate %27 by %c64_i32 dim 1 : vector<8x1024xf32>, i32 -> vector<8x1024xf32>
    %c4 = arith.constant 4 : index
    %c0_26 = arith.constant 0 : index
    %60 = vector.load %arg3[%c4, %c0_26] : memref<27x1024xf32, #tpu.memory_space<vmem>>, vector<1x1024xf32>
    %61 = vector.broadcast %60 : vector<1x1024xf32> to vector<8x1024xf32>
    %62 = arith.mulf %59, %61 : vector<8x1024xf32>
    %c0_27 = arith.constant 0 : index
    %c4_28 = arith.constant 4 : index
    %63 = vector.load %arg2[%c0_27, %c4_28] : memref<8x27xf32, #tpu.memory_space<vmem>>, vector<8x1xf32>
    %64 = vector.broadcast %63 : vector<8x1xf32> to vector<8x1024xf32>
    %65 = arith.mulf %62, %64 : vector<8x1024xf32>
    %66 = arith.addf %58, %65 : vector<8x1024xf32>
    %c63_i32 = arith.constant 63 : i32
    %67 = tpu.dynamic_rotate %27 by %c63_i32 dim 1 : vector<8x1024xf32>, i32 -> vector<8x1024xf32>
    %c5 = arith.constant 5 : index
    %c0_29 = arith.constant 0 : index
    %68 = vector.load %arg3[%c5, %c0_29] : memref<27x1024xf32, #tpu.memory_space<vmem>>, vector<1x1024xf32>
    %69 = vector.broadcast %68 : vector<1x1024xf32> to vector<8x1024xf32>
    %70 = arith.mulf %67, %69 : vector<8x1024xf32>
    %c0_30 = arith.constant 0 : index
    %c5_31 = arith.constant 5 : index
    %71 = vector.load %arg2[%c0_30, %c5_31] : memref<8x27xf32, #tpu.memory_space<vmem>>, vector<8x1xf32>
    %72 = vector.broadcast %71 : vector<8x1xf32> to vector<8x1024xf32>
    %73 = arith.mulf %70, %72 : vector<8x1024xf32>
    %74 = arith.addf %66, %73 : vector<8x1024xf32>
    %c57_i32 = arith.constant 57 : i32
    %75 = tpu.dynamic_rotate %27 by %c57_i32 dim 1 : vector<8x1024xf32>, i32 -> vector<8x1024xf32>
    %c6 = arith.constant 6 : index
    %c0_32 = arith.constant 0 : index
    %76 = vector.load %arg3[%c6, %c0_32] : memref<27x1024xf32, #tpu.memory_space<vmem>>, vector<1x1024xf32>
    %77 = vector.broadcast %76 : vector<1x1024xf32> to vector<8x1024xf32>
    %78 = arith.mulf %75, %77 : vector<8x1024xf32>
    %c0_33 = arith.constant 0 : index
    %c6_34 = arith.constant 6 : index
    %79 = vector.load %arg2[%c0_33, %c6_34] : memref<8x27xf32, #tpu.memory_space<vmem>>, vector<8x1xf32>
    %80 = vector.broadcast %79 : vector<8x1xf32> to vector<8x1024xf32>
    %81 = arith.mulf %78, %80 : vector<8x1024xf32>
    %82 = arith.addf %74, %81 : vector<8x1024xf32>
    %c56_i32 = arith.constant 56 : i32
    %83 = tpu.dynamic_rotate %27 by %c56_i32 dim 1 : vector<8x1024xf32>, i32 -> vector<8x1024xf32>
    %c7 = arith.constant 7 : index
    %c0_35 = arith.constant 0 : index
    %84 = vector.load %arg3[%c7, %c0_35] : memref<27x1024xf32, #tpu.memory_space<vmem>>, vector<1x1024xf32>
    %85 = vector.broadcast %84 : vector<1x1024xf32> to vector<8x1024xf32>
    %86 = arith.mulf %83, %85 : vector<8x1024xf32>
    %c0_36 = arith.constant 0 : index
    %c7_37 = arith.constant 7 : index
    %87 = vector.load %arg2[%c0_36, %c7_37] : memref<8x27xf32, #tpu.memory_space<vmem>>, vector<8x1xf32>
    %88 = vector.broadcast %87 : vector<8x1xf32> to vector<8x1024xf32>
    %89 = arith.mulf %86, %88 : vector<8x1024xf32>
    %90 = arith.addf %82, %89 : vector<8x1024xf32>
    %c55_i32 = arith.constant 55 : i32
    %91 = tpu.dynamic_rotate %27 by %c55_i32 dim 1 : vector<8x1024xf32>, i32 -> vector<8x1024xf32>
    %c8 = arith.constant 8 : index
    %c0_38 = arith.constant 0 : index
    %92 = vector.load %arg3[%c8, %c0_38] : memref<27x1024xf32, #tpu.memory_space<vmem>>, vector<1x1024xf32>
    %93 = vector.broadcast %92 : vector<1x1024xf32> to vector<8x1024xf32>
    %94 = arith.mulf %91, %93 : vector<8x1024xf32>
    %c0_39 = arith.constant 0 : index
    %c8_40 = arith.constant 8 : index
    %95 = vector.load %arg2[%c0_39, %c8_40] : memref<8x27xf32, #tpu.memory_space<vmem>>, vector<8x1xf32>
    %96 = vector.broadcast %95 : vector<8x1xf32> to vector<8x1024xf32>
    %97 = arith.mulf %94, %96 : vector<8x1024xf32>
    %98 = arith.addf %90, %97 : vector<8x1024xf32>
    %c9_i32 = arith.constant 9 : i32
    %99 = tpu.dynamic_rotate %27 by %c9_i32 dim 1 : vector<8x1024xf32>, i32 -> vector<8x1024xf32>
    %c9 = arith.constant 9 : index
    %c0_41 = arith.constant 0 : index
    %100 = vector.load %arg3[%c9, %c0_41] : memref<27x1024xf32, #tpu.memory_space<vmem>>, vector<1x1024xf32>
    %101 = vector.broadcast %100 : vector<1x1024xf32> to vector<8x1024xf32>
    %102 = arith.mulf %99, %101 : vector<8x1024xf32>
    %c0_42 = arith.constant 0 : index
    %c9_43 = arith.constant 9 : index
    %103 = vector.load %arg2[%c0_42, %c9_43] : memref<8x27xf32, #tpu.memory_space<vmem>>, vector<8x1xf32>
    %104 = vector.broadcast %103 : vector<8x1xf32> to vector<8x1024xf32>
    %105 = arith.mulf %102, %104 : vector<8x1024xf32>
    %106 = arith.addf %98, %105 : vector<8x1024xf32>
    %c8_i32 = arith.constant 8 : i32
    %107 = tpu.dynamic_rotate %27 by %c8_i32 dim 1 : vector<8x1024xf32>, i32 -> vector<8x1024xf32>
    %c10 = arith.constant 10 : index
    %c0_44 = arith.constant 0 : index
    %108 = vector.load %arg3[%c10, %c0_44] : memref<27x1024xf32, #tpu.memory_space<vmem>>, vector<1x1024xf32>
    %109 = vector.broadcast %108 : vector<1x1024xf32> to vector<8x1024xf32>
    %110 = arith.mulf %107, %109 : vector<8x1024xf32>
    %c0_45 = arith.constant 0 : index
    %c10_46 = arith.constant 10 : index
    %111 = vector.load %arg2[%c0_45, %c10_46] : memref<8x27xf32, #tpu.memory_space<vmem>>, vector<8x1xf32>
    %112 = vector.broadcast %111 : vector<8x1xf32> to vector<8x1024xf32>
    %113 = arith.mulf %110, %112 : vector<8x1024xf32>
    %114 = arith.addf %106, %113 : vector<8x1024xf32>
    %c7_i32 = arith.constant 7 : i32
    %115 = tpu.dynamic_rotate %27 by %c7_i32 dim 1 : vector<8x1024xf32>, i32 -> vector<8x1024xf32>
    %c11 = arith.constant 11 : index
    %c0_47 = arith.constant 0 : index
    %116 = vector.load %arg3[%c11, %c0_47] : memref<27x1024xf32, #tpu.memory_space<vmem>>, vector<1x1024xf32>
    %117 = vector.broadcast %116 : vector<1x1024xf32> to vector<8x1024xf32>
    %118 = arith.mulf %115, %117 : vector<8x1024xf32>
    %c0_48 = arith.constant 0 : index
    %c11_49 = arith.constant 11 : index
    %119 = vector.load %arg2[%c0_48, %c11_49] : memref<8x27xf32, #tpu.memory_space<vmem>>, vector<8x1xf32>
    %120 = vector.broadcast %119 : vector<8x1xf32> to vector<8x1024xf32>
    %121 = arith.mulf %118, %120 : vector<8x1024xf32>
    %122 = arith.addf %114, %121 : vector<8x1024xf32>
    %c1_i32 = arith.constant 1 : i32
    %123 = tpu.dynamic_rotate %27 by %c1_i32 dim 1 : vector<8x1024xf32>, i32 -> vector<8x1024xf32>
    %c12 = arith.constant 12 : index
    %c0_50 = arith.constant 0 : index
    %124 = vector.load %arg3[%c12, %c0_50] : memref<27x1024xf32, #tpu.memory_space<vmem>>, vector<1x1024xf32>
    %125 = vector.broadcast %124 : vector<1x1024xf32> to vector<8x1024xf32>
    %126 = arith.mulf %123, %125 : vector<8x1024xf32>
    %c0_51 = arith.constant 0 : index
    %c12_52 = arith.constant 12 : index
    %127 = vector.load %arg2[%c0_51, %c12_52] : memref<8x27xf32, #tpu.memory_space<vmem>>, vector<8x1xf32>
    %128 = vector.broadcast %127 : vector<8x1xf32> to vector<8x1024xf32>
    %129 = arith.mulf %126, %128 : vector<8x1024xf32>
    %130 = arith.addf %122, %129 : vector<8x1024xf32>
    %c13 = arith.constant 13 : index
    %c0_53 = arith.constant 0 : index
    %131 = vector.load %arg3[%c13, %c0_53] : memref<27x1024xf32, #tpu.memory_space<vmem>>, vector<1x1024xf32>
    %132 = vector.broadcast %131 : vector<1x1024xf32> to vector<8x1024xf32>
    %133 = arith.mulf %27, %132 : vector<8x1024xf32>
    %c0_54 = arith.constant 0 : index
    %c13_55 = arith.constant 13 : index
    %134 = vector.load %arg2[%c0_54, %c13_55] : memref<8x27xf32, #tpu.memory_space<vmem>>, vector<8x1xf32>
    %135 = vector.broadcast %134 : vector<8x1xf32> to vector<8x1024xf32>
    %136 = arith.mulf %133, %135 : vector<8x1024xf32>
    %137 = arith.addf %130, %136 : vector<8x1024xf32>
    %c1023_i32 = arith.constant 1023 : i32
    %138 = tpu.dynamic_rotate %27 by %c1023_i32 dim 1 : vector<8x1024xf32>, i32 -> vector<8x1024xf32>
    %c14 = arith.constant 14 : index
    %c0_56 = arith.constant 0 : index
    %139 = vector.load %arg3[%c14, %c0_56] : memref<27x1024xf32, #tpu.memory_space<vmem>>, vector<1x1024xf32>
    %140 = vector.broadcast %139 : vector<1x1024xf32> to vector<8x1024xf32>
    %141 = arith.mulf %138, %140 : vector<8x1024xf32>
    %c0_57 = arith.constant 0 : index
    %c14_58 = arith.constant 14 : index
    %142 = vector.load %arg2[%c0_57, %c14_58] : memref<8x27xf32, #tpu.memory_space<vmem>>, vector<8x1xf32>
    %143 = vector.broadcast %142 : vector<8x1xf32> to vector<8x1024xf32>
    %144 = arith.mulf %141, %143 : vector<8x1024xf32>
    %145 = arith.addf %137, %144 : vector<8x1024xf32>
    %c1017_i32 = arith.constant 1017 : i32
    %146 = tpu.dynamic_rotate %27 by %c1017_i32 dim 1 : vector<8x1024xf32>, i32 -> vector<8x1024xf32>
    %c15 = arith.constant 15 : index
    %c0_59 = arith.constant 0 : index
    %147 = vector.load %arg3[%c15, %c0_59] : memref<27x1024xf32, #tpu.memory_space<vmem>>, vector<1x1024xf32>
    %148 = vector.broadcast %147 : vector<1x1024xf32> to vector<8x1024xf32>
    %149 = arith.mulf %146, %148 : vector<8x1024xf32>
    %c0_60 = arith.constant 0 : index
    %c15_61 = arith.constant 15 : index
    %150 = vector.load %arg2[%c0_60, %c15_61] : memref<8x27xf32, #tpu.memory_space<vmem>>, vector<8x1xf32>
    %151 = vector.broadcast %150 : vector<8x1xf32> to vector<8x1024xf32>
    %152 = arith.mulf %149, %151 : vector<8x1024xf32>
    %153 = arith.addf %145, %152 : vector<8x1024xf32>
    %c1016_i32 = arith.constant 1016 : i32
    %154 = tpu.dynamic_rotate %27 by %c1016_i32 dim 1 : vector<8x1024xf32>, i32 -> vector<8x1024xf32>
    %c16 = arith.constant 16 : index
    %c0_62 = arith.constant 0 : index
    %155 = vector.load %arg3[%c16, %c0_62] : memref<27x1024xf32, #tpu.memory_space<vmem>>, vector<1x1024xf32>
    %156 = vector.broadcast %155 : vector<1x1024xf32> to vector<8x1024xf32>
    %157 = arith.mulf %154, %156 : vector<8x1024xf32>
    %c0_63 = arith.constant 0 : index
    %c16_64 = arith.constant 16 : index
    %158 = vector.load %arg2[%c0_63, %c16_64] : memref<8x27xf32, #tpu.memory_space<vmem>>, vector<8x1xf32>
    %159 = vector.broadcast %158 : vector<8x1xf32> to vector<8x1024xf32>
    %160 = arith.mulf %157, %159 : vector<8x1024xf32>
    %161 = arith.addf %153, %160 : vector<8x1024xf32>
    %c1015_i32 = arith.constant 1015 : i32
    %162 = tpu.dynamic_rotate %27 by %c1015_i32 dim 1 : vector<8x1024xf32>, i32 -> vector<8x1024xf32>
    %c17 = arith.constant 17 : index
    %c0_65 = arith.constant 0 : index
    %163 = vector.load %arg3[%c17, %c0_65] : memref<27x1024xf32, #tpu.memory_space<vmem>>, vector<1x1024xf32>
    %164 = vector.broadcast %163 : vector<1x1024xf32> to vector<8x1024xf32>
    %165 = arith.mulf %162, %164 : vector<8x1024xf32>
    %c0_66 = arith.constant 0 : index
    %c17_67 = arith.constant 17 : index
    %166 = vector.load %arg2[%c0_66, %c17_67] : memref<8x27xf32, #tpu.memory_space<vmem>>, vector<8x1xf32>
    %167 = vector.broadcast %166 : vector<8x1xf32> to vector<8x1024xf32>
    %168 = arith.mulf %165, %167 : vector<8x1024xf32>
    %169 = arith.addf %161, %168 : vector<8x1024xf32>
    %c969_i32 = arith.constant 969 : i32
    %170 = tpu.dynamic_rotate %27 by %c969_i32 dim 1 : vector<8x1024xf32>, i32 -> vector<8x1024xf32>
    %c18 = arith.constant 18 : index
    %c0_68 = arith.constant 0 : index
    %171 = vector.load %arg3[%c18, %c0_68] : memref<27x1024xf32, #tpu.memory_space<vmem>>, vector<1x1024xf32>
    %172 = vector.broadcast %171 : vector<1x1024xf32> to vector<8x1024xf32>
    %173 = arith.mulf %170, %172 : vector<8x1024xf32>
    %c0_69 = arith.constant 0 : index
    %c18_70 = arith.constant 18 : index
    %174 = vector.load %arg2[%c0_69, %c18_70] : memref<8x27xf32, #tpu.memory_space<vmem>>, vector<8x1xf32>
    %175 = vector.broadcast %174 : vector<8x1xf32> to vector<8x1024xf32>
    %176 = arith.mulf %173, %175 : vector<8x1024xf32>
    %177 = arith.addf %169, %176 : vector<8x1024xf32>
    %c968_i32 = arith.constant 968 : i32
    %178 = tpu.dynamic_rotate %27 by %c968_i32 dim 1 : vector<8x1024xf32>, i32 -> vector<8x1024xf32>
    %c19 = arith.constant 19 : index
    %c0_71 = arith.constant 0 : index
    %179 = vector.load %arg3[%c19, %c0_71] : memref<27x1024xf32, #tpu.memory_space<vmem>>, vector<1x1024xf32>
    %180 = vector.broadcast %179 : vector<1x1024xf32> to vector<8x1024xf32>
    %181 = arith.mulf %178, %180 : vector<8x1024xf32>
    %c0_72 = arith.constant 0 : index
    %c19_73 = arith.constant 19 : index
    %182 = vector.load %arg2[%c0_72, %c19_73] : memref<8x27xf32, #tpu.memory_space<vmem>>, vector<8x1xf32>
    %183 = vector.broadcast %182 : vector<8x1xf32> to vector<8x1024xf32>
    %184 = arith.mulf %181, %183 : vector<8x1024xf32>
    %185 = arith.addf %177, %184 : vector<8x1024xf32>
    %c967_i32 = arith.constant 967 : i32
    %186 = tpu.dynamic_rotate %27 by %c967_i32 dim 1 : vector<8x1024xf32>, i32 -> vector<8x1024xf32>
    %c20 = arith.constant 20 : index
    %c0_74 = arith.constant 0 : index
    %187 = vector.load %arg3[%c20, %c0_74] : memref<27x1024xf32, #tpu.memory_space<vmem>>, vector<1x1024xf32>
    %188 = vector.broadcast %187 : vector<1x1024xf32> to vector<8x1024xf32>
    %189 = arith.mulf %186, %188 : vector<8x1024xf32>
    %c0_75 = arith.constant 0 : index
    %c20_76 = arith.constant 20 : index
    %190 = vector.load %arg2[%c0_75, %c20_76] : memref<8x27xf32, #tpu.memory_space<vmem>>, vector<8x1xf32>
    %191 = vector.broadcast %190 : vector<8x1xf32> to vector<8x1024xf32>
    %192 = arith.mulf %189, %191 : vector<8x1024xf32>
    %193 = arith.addf %185, %192 : vector<8x1024xf32>
    %c961_i32 = arith.constant 961 : i32
    %194 = tpu.dynamic_rotate %27 by %c961_i32 dim 1 : vector<8x1024xf32>, i32 -> vector<8x1024xf32>
    %c21 = arith.constant 21 : index
    %c0_77 = arith.constant 0 : index
    %195 = vector.load %arg3[%c21, %c0_77] : memref<27x1024xf32, #tpu.memory_space<vmem>>, vector<1x1024xf32>
    %196 = vector.broadcast %195 : vector<1x1024xf32> to vector<8x1024xf32>
    %197 = arith.mulf %194, %196 : vector<8x1024xf32>
    %c0_78 = arith.constant 0 : index
    %c21_79 = arith.constant 21 : index
    %198 = vector.load %arg2[%c0_78, %c21_79] : memref<8x27xf32, #tpu.memory_space<vmem>>, vector<8x1xf32>
    %199 = vector.broadcast %198 : vector<8x1xf32> to vector<8x1024xf32>
    %200 = arith.mulf %197, %199 : vector<8x1024xf32>
    %201 = arith.addf %193, %200 : vector<8x1024xf32>
    %c960_i32 = arith.constant 960 : i32
    %202 = tpu.dynamic_rotate %27 by %c960_i32 dim 1 : vector<8x1024xf32>, i32 -> vector<8x1024xf32>
    %c22 = arith.constant 22 : index
    %c0_80 = arith.constant 0 : index
    %203 = vector.load %arg3[%c22, %c0_80] : memref<27x1024xf32, #tpu.memory_space<vmem>>, vector<1x1024xf32>
    %204 = vector.broadcast %203 : vector<1x1024xf32> to vector<8x1024xf32>
    %205 = arith.mulf %202, %204 : vector<8x1024xf32>
    %c0_81 = arith.constant 0 : index
    %c22_82 = arith.constant 22 : index
    %206 = vector.load %arg2[%c0_81, %c22_82] : memref<8x27xf32, #tpu.memory_space<vmem>>, vector<8x1xf32>
    %207 = vector.broadcast %206 : vector<8x1xf32> to vector<8x1024xf32>
    %208 = arith.mulf %205, %207 : vector<8x1024xf32>
    %209 = arith.addf %201, %208 : vector<8x1024xf32>
    %c959_i32 = arith.constant 959 : i32
    %210 = tpu.dynamic_rotate %27 by %c959_i32 dim 1 : vector<8x1024xf32>, i32 -> vector<8x1024xf32>
    %c23 = arith.constant 23 : index
    %c0_83 = arith.constant 0 : index
    %211 = vector.load %arg3[%c23, %c0_83] : memref<27x1024xf32, #tpu.memory_space<vmem>>, vector<1x1024xf32>
    %212 = vector.broadcast %211 : vector<1x1024xf32> to vector<8x1024xf32>
    %213 = arith.mulf %210, %212 : vector<8x1024xf32>
    %c0_84 = arith.constant 0 : index
    %c23_85 = arith.constant 23 : index
    %214 = vector.load %arg2[%c0_84, %c23_85] : memref<8x27xf32, #tpu.memory_space<vmem>>, vector<8x1xf32>
    %215 = vector.broadcast %214 : vector<8x1xf32> to vector<8x1024xf32>
    %216 = arith.mulf %213, %215 : vector<8x1024xf32>
    %217 = arith.addf %209, %216 : vector<8x1024xf32>
    %c953_i32 = arith.constant 953 : i32
    %218 = tpu.dynamic_rotate %27 by %c953_i32 dim 1 : vector<8x1024xf32>, i32 -> vector<8x1024xf32>
    %c24 = arith.constant 24 : index
    %c0_86 = arith.constant 0 : index
    %219 = vector.load %arg3[%c24, %c0_86] : memref<27x1024xf32, #tpu.memory_space<vmem>>, vector<1x1024xf32>
    %220 = vector.broadcast %219 : vector<1x1024xf32> to vector<8x1024xf32>
    %221 = arith.mulf %218, %220 : vector<8x1024xf32>
    %c0_87 = arith.constant 0 : index
    %c24_88 = arith.constant 24 : index
    %222 = vector.load %arg2[%c0_87, %c24_88] : memref<8x27xf32, #tpu.memory_space<vmem>>, vector<8x1xf32>
    %223 = vector.broadcast %222 : vector<8x1xf32> to vector<8x1024xf32>
    %224 = arith.mulf %221, %223 : vector<8x1024xf32>
    %225 = arith.addf %217, %224 : vector<8x1024xf32>
    %c952_i32 = arith.constant 952 : i32
    %226 = tpu.dynamic_rotate %27 by %c952_i32 dim 1 : vector<8x1024xf32>, i32 -> vector<8x1024xf32>
    %c25 = arith.constant 25 : index
    %c0_89 = arith.constant 0 : index
    %227 = vector.load %arg3[%c25, %c0_89] : memref<27x1024xf32, #tpu.memory_space<vmem>>, vector<1x1024xf32>
    %228 = vector.broadcast %227 : vector<1x1024xf32> to vector<8x1024xf32>
    %229 = arith.mulf %226, %228 : vector<8x1024xf32>
    %c0_90 = arith.constant 0 : index
    %c25_91 = arith.constant 25 : index
    %230 = vector.load %arg2[%c0_90, %c25_91] : memref<8x27xf32, #tpu.memory_space<vmem>>, vector<8x1xf32>
    %231 = vector.broadcast %230 : vector<8x1xf32> to vector<8x1024xf32>
    %232 = arith.mulf %229, %231 : vector<8x1024xf32>
    %233 = arith.addf %225, %232 : vector<8x1024xf32>
    %c951_i32 = arith.constant 951 : i32
    %234 = tpu.dynamic_rotate %27 by %c951_i32 dim 1 : vector<8x1024xf32>, i32 -> vector<8x1024xf32>
    %c26 = arith.constant 26 : index
    %c0_92 = arith.constant 0 : index
    %235 = vector.load %arg3[%c26, %c0_92] : memref<27x1024xf32, #tpu.memory_space<vmem>>, vector<1x1024xf32>
    %236 = vector.broadcast %235 : vector<1x1024xf32> to vector<8x1024xf32>
    %237 = arith.mulf %234, %236 : vector<8x1024xf32>
    %c0_93 = arith.constant 0 : index
    %c26_94 = arith.constant 26 : index
    %238 = vector.load %arg2[%c0_93, %c26_94] : memref<8x27xf32, #tpu.memory_space<vmem>>, vector<8x1xf32>
    %239 = vector.broadcast %238 : vector<8x1xf32> to vector<8x1024xf32>
    %240 = arith.mulf %237, %239 : vector<8x1024xf32>
    %241 = arith.addf %233, %240 : vector<8x1024xf32>
    %cst_95 = arith.constant dense<0.000000e+00> : vector<1024xf32>
    %242 = vector.multi_reduction <add>, %241, %cst_95 [0] : vector<8x1024xf32> to vector<1024xf32>
    %243 = vector.shape_cast %242 : vector<1024xf32> to vector<1x1024xf32>
    %cst_96 = arith.constant dense<0.000000e+00> : vector<1xf32>
    %244 = vector.multi_reduction <add>, %243, %cst_96 [1] : vector<1x1024xf32> to vector<1xf32>
    %245 = vector.shape_cast %244 : vector<1xf32> to vector<1x1xf32>
    %cst_97 = arith.constant 9.765625E-4 : f32
    %246 = vector.broadcast %cst_97 : f32 to vector<1x1xf32>
    %247 = arith.mulf %245, %246 : vector<1x1xf32>
    %248 = arith.mulf %243, %243 : vector<1x1024xf32>
    %cst_98 = arith.constant dense<0.000000e+00> : vector<1xf32>
    %249 = vector.multi_reduction <add>, %248, %cst_98 [1] : vector<1x1024xf32> to vector<1xf32>
    %250 = vector.shape_cast %249 : vector<1xf32> to vector<1x1xf32>
    %cst_99 = arith.constant 9.765625E-4 : f32
    %251 = vector.broadcast %cst_99 : f32 to vector<1x1xf32>
    %252 = arith.mulf %250, %251 : vector<1x1xf32>
    %c0_100 = arith.constant 0 : index
    %c0_101 = arith.constant 0 : index
    %253 = vector.load %arg6[%c0_100, %c0_101] : memref<1x1xf32, #tpu.memory_space<vmem>>, vector<1x1xf32>
    %254 = arith.mulf %247, %247 : vector<1x1xf32>
    %255 = arith.subf %252, %254 : vector<1x1xf32>
    %cst_102 = arith.constant 9.99999974E-6 : f32
    %256 = vector.broadcast %cst_102 : f32 to vector<1x1xf32>
    %257 = arith.addf %255, %256 : vector<1x1xf32>
    %258 = math.rsqrt %257 : vector<1x1xf32>
    %259 = arith.mulf %253, %258 : vector<1x1xf32>
    %c0_103 = arith.constant 0 : index
    %c0_104 = arith.constant 0 : index
    %260 = vector.load %arg7[%c0_103, %c0_104] : memref<1x1xf32, #tpu.memory_space<vmem>>, vector<1x1xf32>
    %261 = arith.mulf %247, %259 : vector<1x1xf32>
    %262 = arith.subf %260, %261 : vector<1x1xf32>
    %263 = vector.broadcast %259 : vector<1x1xf32> to vector<1x1024xf32>
    %264 = arith.mulf %243, %263 : vector<1x1024xf32>
    %265 = vector.broadcast %262 : vector<1x1xf32> to vector<1x1024xf32>
    %266 = arith.addf %264, %265 : vector<1x1024xf32>
    %cst_105 = arith.constant 0.000000e+00 : f32
    %267 = vector.broadcast %cst_105 : f32 to vector<1x1024xf32>
    %268 = arith.maximumf %266, %267 : vector<1x1024xf32>
    %c0_106 = arith.constant 0 : index
    %c0_107 = arith.constant 0 : index
    %269 = vector.load %arg8[%c0_106, %c0_107] : memref<2x1024xf32, #tpu.memory_space<vmem>>, vector<2x1024xf32>
    %270 = vector.broadcast %268 : vector<1x1024xf32> to vector<2x1024xf32>
    %271 = arith.mulf %270, %269 : vector<2x1024xf32>
    %cst_108 = arith.constant dense<0.000000e+00> : vector<2xf32>
    %272 = vector.multi_reduction <add>, %271, %cst_108 [1] : vector<2x1024xf32> to vector<2xf32>
    %273 = vector.shape_cast %272 : vector<2xf32> to vector<2x1xf32>
    %c0_109 = arith.constant 0 : index
    %c0_110 = arith.constant 0 : index
    %274 = vector.load %arg9[%c0_109, %c0_110] : memref<2x1xf32, #tpu.memory_space<vmem>>, vector<2x1xf32>
    tpu.vector_store %arg9[%c0_109, %c0_110], %273 {strides = array<i32>} : memref<2x1xf32, #tpu.memory_space<vmem>>, vector<2x1xf32>,
    return
  }
}

</mosaic_0001>

<llo_original>
// kernel: tpu_custom_call.1
$region0: #{tpu_custom_call.1}
  #allocation0 [shape = 'u32[]', space=smem, size = 0x4, offset = 0x4, fixed_abs, tag = 'smem constant byte address 0x4 - core index']
  #allocation1 [shape = 'u32[144,128]{1,0:T(1,128)}', space=vmem, size = 0x12000, scoped, tag = 'internal scratch']
  #allocation2 [shape = 'f32[1,1]{1,0:T(1,128)S(1)}', space=vmem, size = 0x200, scoped, tag = 'scoped memory for tpu_custom_call.1']
  #allocation3 [shape = 'f32[1,1]{1,0:T(1,128)S(1)}', space=vmem, size = 0x200, scoped, tag = 'scoped memory for tpu_custom_call.1']
  %s0 = inlined_call_operand.vmem [shape: f32[8,64], index: 0, kind: input, shape index: {}]
  %s1 = inlined_call_operand.hbm [shape: f32[64,1024], index: 1, kind: input, shape index: {}]
  %s2 = inlined_call_operand.vmem [shape: f32[8,27], index: 2, kind: input, shape index: {}]
  %s3 = inlined_call_operand.hbm [shape: f32[27,1024], index: 3, kind: input, shape index: {}]
  %s4 = inlined_call_operand.vmem [shape: f32[8,1], index: 4, kind: input, shape index: {}]
  %s5 = inlined_call_operand.vmem [shape: f32[8,1], index: 5, kind: input, shape index: {}]
  %s6 = inlined_call_operand.<no memory space> [shape: f32[1,1], index: 6, kind: input, shape index: {}]
  %s7 = inlined_call_operand.<no memory space> [shape: f32[1,1], index: 7, kind: input, shape index: {}]
  %s8 = inlined_call_operand.vmem [shape: f32[2,1024], index: 8, kind: input, shape index: {}]
  %s9 = inlined_call_operand.vmem [shape: f32[2,1], index: 9, kind: output, shape index: {}]
  %s10 = sld [smem:[#allocation0]]
  $region54: #{tpu_custom_call.1} parent=0
    _
  %s12 = ssub.s32 1, %s10
  %s13 = scalar_select 0, %s12, %s10
  %v14 = vstv %s6
  %15 = vst [vmem:[#allocation2] sm:$0x1] %v14
  %v16 = vstv %s7
  %17 = vst [vmem:[#allocation3] sm:$0x1] %v16
  $region1: #{tpu_custom_call.1} parent=0
    #allocation4 [shape = 'u8[262144]{0}', space=vmem, size = 0x40000, scoped, tag = 'input window, operand 1, single buffered']
    #allocation5 [shape = 's32[1]{0}', space=sflag, size = 0x4, scoped, tag = 'scoped memory for tpu_custom_call.1']
    #allocation6 [shape = 'u8[131072]{0}', space=vmem, size = 0x20000, scoped, tag = 'input window, operand 3, single buffered']
    #allocation7 [shape = 's32[1]{0}', space=sflag, size = 0x4, scoped, tag = 'scoped memory for tpu_custom_call.1']
    %18 = vsyncpa [#allocation5], 0
    %19 = vsyncpa [#allocation7], 0
    // Predicated region
    $region2: #{tpu_custom_call.1} parent=1 // pred_check
      _
    $region3: #{tpu_custom_call.1} parent=1 // pred_check_branch
      %21 = sbr.rel (0) target = $region5
    $region4: #{tpu_custom_call.1} parent=1 // pred_region
      _
    $region5: #{tpu_custom_call.1} parent=1 // pred_fallthru
      _
    // Predicated region
    $region6: #{tpu_custom_call.1} parent=1 // pred_check
      _
    $region7: #{tpu_custom_call.1} parent=1 // pred_check_branch
      %23 = sbr.rel (0) target = $region9
    $region8: #{tpu_custom_call.1} parent=1 // pred_region
      %s25 = ssub.s32 8192, 8192
      %26 = vsyncadd [#allocation5], %s25
      %s27 = sshll.u32 [#allocation4], 4
      %s28 = int_to_ptr.vmem [resolvable:$true] %s27
      %33 = dma.hbm_to_vmem [thread:$0]  %s1, 8192, %s28, [#allocation5], 1024, 1024, 64
    $region9: #{tpu_custom_call.1} parent=1 // pred_fallthru
      _
    // Predicated region
    $region10: #{tpu_custom_call.1} parent=1 // pred_check
      _
    $region11: #{tpu_custom_call.1} parent=1 // pred_check_branch
      %35 = sbr.rel (0) target = $region13
    $region12: #{tpu_custom_call.1} parent=1 // pred_region
      _
    $region13: #{tpu_custom_call.1} parent=1 // pred_fallthru
      _
    // Predicated region
    $region14: #{tpu_custom_call.1} parent=1 // pred_check
      _
    $region15: #{tpu_custom_call.1} parent=1 // pred_check_branch
      %37 = sbr.rel (0) target = $region17
    $region16: #{tpu_custom_call.1} parent=1 // pred_region
      %s39 = ssub.s32 4096, 4096
      %40 = vsyncadd [#allocation7], %s39
      %s41 = sshll.u32 [#allocation6], 4
      %s42 = int_to_ptr.vmem [resolvable:$true] %s41
      %47 = dma.hbm_to_vmem [thread:$0]  %s3, 4096, %s42, [#allocation7], 1024, 1024, 64
    $region17: #{tpu_custom_call.1} parent=1 // pred_fallthru
      _
    // Predicated region
    $region18: #{tpu_custom_call.1} parent=1 // pred_check
      _
    $region19: #{tpu_custom_call.1} parent=1 // pred_check_branch
      %49 = sbr.rel (0) target = $region21
    $region20: #{tpu_custom_call.1} parent=1 // pred_region
      _
    $region21: #{tpu_custom_call.1} parent=1 // pred_fallthru
      _
    // Predicated region
    $region22: #{tpu_custom_call.1} parent=1 // pred_check
      _
    $region23: #{tpu_custom_call.1} parent=1 // pred_check_branch
      %51 = sbr.rel (0) target = $region25
    $region24: #{tpu_custom_call.1} parent=1 // pred_region
      _
    $region25: #{tpu_custom_call.1} parent=1 // pred_fallthru
      _
    // Predicated region
    $region26: #{tpu_custom_call.1} parent=1 // pred_check
      _
    $region27: #{tpu_custom_call.1} parent=1 // pred_check_branch
      %53 = sbr.rel (0) target = $region29
    $region28: #{tpu_custom_call.1} parent=1 // pred_region
      _
    $region29: #{tpu_custom_call.1} parent=1 // pred_fallthru
      _
    // Predicated region
    $region30: #{tpu_custom_call.1} parent=1 // pred_check
      _
    $region31: #{tpu_custom_call.1} parent=1 // pred_check_branch
      %55 = sbr.rel (0) target = $region33
    $region32: #{tpu_custom_call.1} parent=1 // pred_region
      _
    $region33: #{tpu_custom_call.1} parent=1 // pred_fallthru
      _
    // Predicated region
    $region34: #{tpu_custom_call.1} parent=1 // pred_check
      _
    $region35: #{tpu_custom_call.1} parent=1 // pred_check_branch
      %57 = sbr.rel (0) target = $region37
    $region36: #{tpu_custom_call.1} parent=1 // pred_region
      _
    $region37: #{tpu_custom_call.1} parent=1 // pred_fallthru
      _
    // Predicated region
    $region38: #{tpu_custom_call.1} parent=1 // pred_check
      _
    $region39: #{tpu_custom_call.1} parent=1 // pred_check_branch
      %59 = sbr.rel (0) target = $region41
    $region40: #{tpu_custom_call.1} parent=1 // pred_region
      %60 = dma.done [#allocation5], 8192
    $region41: #{tpu_custom_call.1} parent=1 // pred_fallthru
      _
    // Predicated region
    $region42: #{tpu_custom_call.1} parent=1 // pred_check
      _
    $region43: #{tpu_custom_call.1} parent=1 // pred_check_branch
      %62 = sbr.rel (0) target = $region45
    $region44: #{tpu_custom_call.1} parent=1 // pred_region
      %63 = dma.done [#allocation7], 4096
    $region45: #{tpu_custom_call.1} parent=1 // pred_fallthru
      _
    %v64 = vld [vmem:[%s0] sm:$0xff]
    %v65 = vld [vmem:[#allocation4] sm:$0xff]
    %v66 = vld [vmem:[#allocation4 + $0x8] sm:$0xff]
    %v67 = vld [vmem:[#allocation4 + $0x10] sm:$0xff]
    %v68 = vld [vmem:[#allocation4 + $0x18] sm:$0xff]
    %v69 = vld [vmem:[#allocation4 + $0x20] sm:$0xff]
    %v70 = vld [vmem:[#allocation4 + $0x28] sm:$0xff]
    %v71 = vld [vmem:[#allocation4 + $0x30] sm:$0xff]
    %v72 = vld [vmem:[#allocation4 + $0x38] sm:$0xff]
    %v73 = vld [vmem:[#allocation4 + $0x40] sm:$0xff]
    %v74 = vld [vmem:[#allocation4 + $0x48] sm:$0xff]
    %v75 = vld [vmem:[#allocation4 + $0x50] sm:$0xff]
    %v76 = vld [vmem:[#allocation4 + $0x58] sm:$0xff]
    %v77 = vld [vmem:[#allocation4 + $0x60] sm:$0xff]
    %v78 = vld [vmem:[#allocation4 + $0x68] sm:$0xff]
    %v79 = vld [vmem:[#allocation4 + $0x70] sm:$0xff]
    %v80 = vld [vmem:[#allocation4 + $0x78] sm:$0xff]
    %v81 = vld [vmem:[#allocation4 + $0x80] sm:$0xff]
    %v82 = vld [vmem:[#allocation4 + $0x88] sm:$0xff]
    %v83 = vld [vmem:[#allocation4 + $0x90] sm:$0xff]
    %v84 = vld [vmem:[#allocation4 + $0x98] sm:$0xff]
    %v85 = vld [vmem:[#allocation4 + $0xa0] sm:$0xff]
    %v86 = vld [vmem:[#allocation4 + $0xa8] sm:$0xff]
    %v87 = vld [vmem:[#allocation4 + $0xb0] sm:$0xff]
    %v88 = vld [vmem:[#allocation4 + $0xb8] sm:$0xff]
    %v89 = vld [vmem:[#allocation4 + $0xc0] sm:$0xff]
    %v90 = vld [vmem:[#allocation4 + $0xc8] sm:$0xff]
    %v91 = vld [vmem:[#allocation4 + $0xd0] sm:$0xff]
    %v92 = vld [vmem:[#allocation4 + $0xd8] sm:$0xff]
    %v93 = vld [vmem:[#allocation4 + $0xe0] sm:$0xff]
    %v94 = vld [vmem:[#allocation4 + $0xe8] sm:$0xff]
    %v95 = vld [vmem:[#allocation4 + $0xf0] sm:$0xff]
    %v96 = vld [vmem:[#allocation4 + $0xf8] sm:$0xff]
    %v97 = vld [vmem:[#allocation4 + $0x100] sm:$0xff]
    %v98 = vld [vmem:[#allocation4 + $0x108] sm:$0xff]
    %v99 = vld [vmem:[#allocation4 + $0x110] sm:$0xff]
    %v100 = vld [vmem:[#allocation4 + $0x118] sm:$0xff]
    %v101 = vld [vmem:[#allocation4 + $0x120] sm:$0xff]
    %v102 = vld [vmem:[#allocation4 + $0x128] sm:$0xff]
    %v103 = vld [vmem:[#allocation4 + $0x130] sm:$0xff]
    %v104 = vld [vmem:[#allocation4 + $0x138] sm:$0xff]
    %v105 = vld [vmem:[#allocation4 + $0x140] sm:$0xff]
    %v106 = vld [vmem:[#allocation4 + $0x148] sm:$0xff]
    %v107 = vld [vmem:[#allocation4 + $0x150] sm:$0xff]
    %v108 = vld [vmem:[#allocation4 + $0x158] sm:$0xff]
    %v109 = vld [vmem:[#allocation4 + $0x160] sm:$0xff]
    %v110 = vld [vmem:[#allocation4 + $0x168] sm:$0xff]
    %v111 = vld [vmem:[#allocation4 + $0x170] sm:$0xff]
    %v112 = vld [vmem:[#allocation4 + $0x178] sm:$0xff]
    %v113 = vld [vmem:[#allocation4 + $0x180] sm:$0xff]
    %v114 = vld [vmem:[#allocation4 + $0x188] sm:$0xff]
    %v115 = vld [vmem:[#allocation4 + $0x190] sm:$0xff]
    %v116 = vld [vmem:[#allocation4 + $0x198] sm:$0xff]
    %v117 = vld [vmem:[#allocation4 + $0x1a0] sm:$0xff]
    %v118 = vld [vmem:[#allocation4 + $0x1a8] sm:$0xff]
    %v119 = vld [vmem:[#allocation4 + $0x1b0] sm:$0xff]
    %v120 = vld [vmem:[#allocation4 + $0x1b8] sm:$0xff]
    %v121 = vld [vmem:[#allocation4 + $0x1c0] sm:$0xff]
    %v122 = vld [vmem:[#allocation4 + $0x1c8] sm:$0xff]
    %v123 = vld [vmem:[#allocation4 + $0x1d0] sm:$0xff]
    %v124 = vld [vmem:[#allocation4 + $0x1d8] sm:$0xff]
    %v125 = vld [vmem:[#allocation4 + $0x1e0] sm:$0xff]
    %v126 = vld [vmem:[#allocation4 + $0x1e8] sm:$0xff]
    %v127 = vld [vmem:[#allocation4 + $0x1f0] sm:$0xff]
    %v128 = vld [vmem:[#allocation4 + $0x1f8] sm:$0xff]
    %vm129 = vcmask 523264
    %v131 = vsel %vm129, %v64, 0
    %133 = vmatprep.subr.mxu0 %v66
    %134 = vmatpush1.msra.mxu0 %v65
    %135 = vmatprep.subr.mxu0 %v74
    %136 = vmatpush1.msra.mxu0 %v73
    %137 = vmatprep.subr.mxu0 %v82
    %138 = vmatpush1.msra.mxu0 %v81
    %139 = vmatprep.subr.mxu0 %v90
    %140 = vmatpush1.msra.mxu0 %v89
    %141 = vmatprep.subr.mxu0 %v98
    %142 = vmatpush1.msra.mxu0 %v97
    %143 = vmatprep.subr.mxu0 %v106
    %144 = vmatpush1.msra.mxu0 %v105
    %145 = vmatprep.subr.mxu0 %v114
    %146 = vmatpush1.msra.mxu0 %v113
    %147 = vmatprep.subr.mxu0 %v122
    %148 = vmatpush1.msra.mxu0 %v121
    %149 = vmatprep.subr.mxu0 0.0
    %150 = vmatpush1.msra.mxu0 0.0
    %151 = vmatprep.subr.mxu0 0.0
    %152 = vmatpush1.msra.mxu0 0.0
    %153 = vmatprep.subr.mxu0 0.0
    %154 = vmatpush1.msra.mxu0 0.0
    %155 = vmatprep.subr.mxu0 0.0
    %156 = vmatpush1.msra.mxu0 0.0
    %157 = vmatprep.subr.mxu0 0.0
    %158 = vmatpush1.msra.mxu0 0.0
    %159 = vmatprep.subr.mxu0 0.0
    %160 = vmatpush1.msra.mxu0 0.0
    %161 = vmatprep.subr.mxu0 0.0
    %162 = vmatpush1.msra.mxu0 0.0
    %163 = vmatprep.subr.mxu0 0.0
    %164 = vmatpush1.msra.mxu0 0.0
    %165 = vmatprep.subr.mxu0 0.0
    %166 = vmatpush1.msra.mxu0 0.0
    %167 = vmatprep.subr.mxu0 0.0
    %168 = vmatpush1.msra.mxu0 0.0
    %169 = vmatprep.subr.mxu0 0.0
    %170 = vmatpush1.msra.mxu0 0.0
    %171 = vmatprep.subr.mxu0 0.0
    %172 = vmatpush1.msra.mxu0 0.0
    %173 = vmatprep.subr.mxu0 0.0
    %174 = vmatpush1.msra.mxu0 0.0
    %175 = vmatprep.subr.mxu0 0.0
    %176 = vmatpush1.msra.mxu0 0.0
    %177 = vmatprep.subr.mxu0 0.0
    %178 = vmatpush1.msra.mxu0 0.0
    %179 = vmatprep.subr.mxu0 0.0
    %180 = vmatpush1.msra.mxu0 0.0
    %181 = vmatprep.subr.mxu0 0.0
    %182 = vmatpush1.msra.mxu0 0.0
    %183 = vmatprep.subr.mxu0 0.0
    %184 = vmatpush1.msra.mxu0 0.0
    %185 = vmatprep.subr.mxu0 0.0
    %186 = vmatpush1.msra.mxu0 0.0
    %187 = vmatprep.subr.mxu0 0.0
    %188 = vmatpush1.msra.mxu0 0.0
    %189 = vmatprep.subr.mxu0 0.0
    %190 = vmatpush1.msra.mxu0 0.0
    %191 = vmatprep.subr.mxu0 0.0
    %192 = vmatpush1.msra.mxu0 0.0
    %193 = vmatprep.subr.mxu0 0.0
    %194 = vmatpush1.msra.mxu0 0.0
    %195 = vmatprep.subr.mxu0 0.0
    %196 = vmatpush1.msra.mxu0 0.0
    %197 = vmatprep.mubr.f32.mxu0 0.0
    %198 = vmatmul.mubr.f32.gmra.mrb[0].mxu0 %v131
    %v199 = vpop.f32.mrb[0].mxu0
    %v200 = vadd.f32 0.0, %v199
    %v201 = vpop.f32.mrb[0].mxu0
    %v202 = vadd.f32 0.0, %v201
    %203 = vdwg.mxu0
    %204 = vmatprep.subr.mxu0 %v68
    %205 = vmatpush1.msra.mxu0 %v67
    %206 = vmatprep.subr.mxu0 %v76
    %207 = vmatpush1.msra.mxu0 %v75
    %208 = vmatprep.subr.mxu0 %v84
    %209 = vmatpush1.msra.mxu0 %v83
    %210 = vmatprep.subr.mxu0 %v92
    %211 = vmatpush1.msra.mxu0 %v91
    %212 = vmatprep.subr.mxu0 %v100
    %213 = vmatpush1.msra.mxu0 %v99
    %214 = vmatprep.subr.mxu0 %v108
    %215 = vmatpush1.msra.mxu0 %v107
    %216 = vmatprep.subr.mxu0 %v116
    %217 = vmatpush1.msra.mxu0 %v115
    %218 = vmatprep.subr.mxu0 %v124
    %219 = vmatpush1.msra.mxu0 %v123
    %220 = vmatprep.subr.mxu0 0.0
    %221 = vmatpush1.msra.mxu0 0.0
    %222 = vmatprep.subr.mxu0 0.0
    %223 = vmatpush1.msra.mxu0 0.0
    %224 = vmatprep.subr.mxu0 0.0
    %225 = vmatpush1.msra.mxu0 0.0
    %226 = vmatprep.subr.mxu0 0.0
    %227 = vmatpush1.msra.mxu0 0.0
    %228 = vmatprep.subr.mxu0 0.0
    %229 = vmatpush1.msra.mxu0 0.0
    %230 = vmatprep.subr.mxu0 0.0
    %231 = vmatpush1.msra.mxu0 0.0
    %232 = vmatprep.subr.mxu0 0.0
    %233 = vmatpush1.msra.mxu0 0.0
    %234 = vmatprep.subr.mxu0 0.0
    %235 = vmatpush1.msra.mxu0 0.0
    %236 = vmatprep.subr.mxu0 0.0
    %237 = vmatpush1.msra.mxu0 0.0
    %238 = vmatprep.subr.mxu0 0.0
    %239 = vmatpush1.msra.mxu0 0.0
    %240 = vmatprep.subr.mxu0 0.0
    %241 = vmatpush1.msra.mxu0 0.0
    %242 = vmatprep.subr.mxu0 0.0
    %243 = vmatpush1.msra.mxu0 0.0
    %244 = vmatprep.subr.mxu0 0.0
    %245 = vmatpush1.msra.mxu0 0.0
    %246 = vmatprep.subr.mxu0 0.0
    %247 = vmatpush1.msra.mxu0 0.0
    %248 = vmatprep.subr.mxu0 0.0
    %249 = vmatpush1.msra.mxu0 0.0
    %250 = vmatprep.subr.mxu0 0.0
    %251 = vmatpush1.msra.mxu0 0.0
    %252 = vmatprep.subr.mxu0 0.0
    %253 = vmatpush1.msra.mxu0 0.0
    %254 = vmatprep.subr.mxu0 0.0
    %255 = vmatpush1.msra.mxu0 0.0
    %256 = vmatprep.subr.mxu0 0.0
    %257 = vmatpush1.msra.mxu0 0.0
    %258 = vmatprep.subr.mxu0 0.0
    %259 = vmatpush1.msra.mxu0 0.0
    %260 = vmatprep.subr.mxu0 0.0
    %261 = vmatpush1.msra.mxu0 0.0
    %262 = vmatprep.subr.mxu0 0.0
    %263 = vmatpush1.msra.mxu0 0.0
    %264 = vmatprep.subr.mxu0 0.0
    %265 = vmatpush1.msra.mxu0 0.0
    %266 = vmatprep.subr.mxu0 0.0
    %267 = vmatpush1.msra.mxu0 0.0
    %268 = vmatprep.mubr.f32.mxu0 0.0
    %269 = vmatmul.mubr.f32.gmra.mrb[0].mxu0 %v131
    %v270 = vpop.f32.mrb[0].mxu0
    %v271 = vadd.f32 0.0, %v270
    %v272 = vpop.f32.mrb[0].mxu0
    %v273 = vadd.f32 0.0, %v272
    %274 = vdwg.mxu0
    %275 = vmatprep.subr.mxu0 %v70
    %276 = vmatpush1.msra.mxu0 %v69
    %277 = vmatprep.subr.mxu0 %v78
    %278 = vmatpush1.msra.mxu0 %v77
    %279 = vmatprep.subr.mxu0 %v86
    %280 = vmatpush1.msra.mxu0 %v85
    %281 = vmatprep.subr.mxu0 %v94
    %282 = vmatpush1.msra.mxu0 %v93
    %283 = vmatprep.subr.mxu0 %v102
    %284 = vmatpush1.msra.mxu0 %v101
    %285 = vmatprep.subr.mxu0 %v110
    %286 = vmatpush1.msra.mxu0 %v109
    %287 = vmatprep.subr.mxu0 %v118
    %288 = vmatpush1.msra.mxu0 %v117
    %289 = vmatprep.subr.mxu0 %v126
    %290 = vmatpush1.msra.mxu0 %v125
    %291 = vmatprep.subr.mxu0 0.0
    %292 = vmatpush1.msra.mxu0 0.0
    %293 = vmatprep.subr.mxu0 0.0
    %294 = vmatpush1.msra.mxu0 0.0
    %295 = vmatprep.subr.mxu0 0.0
    %296 = vmatpush1.msra.mxu0 0.0
    %297 = vmatprep.subr.mxu0 0.0
    %298 = vmatpush1.msra.mxu0 0.0
    %299 = vmatprep.subr.mxu0 0.0
    %300 = vmatpush1.msra.mxu0 0.0
    %301 = vmatprep.subr.mxu0 0.0
    %302 = vmatpush1.msra.mxu0 0.0
    %303 = vmatprep.subr.mxu0 0.0
    %304 = vmatpush1.msra.mxu0 0.0
    %305 = vmatprep.subr.mxu0 0.0
    %306 = vmatpush1.msra.mxu0 0.0
    %307 = vmatprep.subr.mxu0 0.0
    %308 = vmatpush1.msra.mxu0 0.0
    %309 = vmatprep.subr.mxu0 0.0
    %310 = vmatpush1.msra.mxu0 0.0
    %311 = vmatprep.subr.mxu0 0.0
    %312 = vmatpush1.msra.mxu0 0.0
    %313 = vmatprep.subr.mxu0 0.0
    %314 = vmatpush1.msra.mxu0 0.0
    %315 = vmatprep.subr.mxu0 0.0
    %316 = vmatpush1.msra.mxu0 0.0
    %317 = vmatprep.subr.mxu0 0.0
    %318 = vmatpush1.msra.mxu0 0.0
    %319 = vmatprep.subr.mxu0 0.0
    %320 = vmatpush1.msra.mxu0 0.0
    %321 = vmatprep.subr.mxu0 0.0
    %322 = vmatpush1.msra.mxu0 0.0
    %323 = vmatprep.subr.mxu0 0.0
    %324 = vmatpush1.msra.mxu0 0.0
    %325 = vmatprep.subr.mxu0 0.0
    %326 = vmatpush1.msra.mxu0 0.0
    %327 = vmatprep.subr.mxu0 0.0
    %328 = vmatpush1.msra.mxu0 0.0
    %329 = vmatprep.subr.mxu0 0.0
    %330 = vmatpush1.msra.mxu0 0.0
    %331 = vmatprep.subr.mxu0 0.0
    %332 = vmatpush1.msra.mxu0 0.0
    %333 = vmatprep.subr.mxu0 0.0
    %334 = vmatpush1.msra.mxu0 0.0
    %335 = vmatprep.subr.mxu0 0.0
    %336 = vmatpush1.msra.mxu0 0.0
    %337 = vmatprep.subr.mxu0 0.0
    %338 = vmatpush1.msra.mxu0 0.0
    %339 = vmatprep.mubr.f32.mxu0 0.0
    %340 = vmatmul.mubr.f32.gmra.mrb[0].mxu0 %v131
    %v341 = vpop.f32.mrb[0].mxu0
    %v342 = vadd.f32 0.0, %v341
    %v343 = vpop.f32.mrb[0].mxu0
    %v344 = vadd.f32 0.0, %v343
    %345 = vdwg.mxu0
    %346 = vmatprep.subr.mxu0 %v72
    %347 = vmatpush1.msra.mxu0 %v71
    %348 = vmatprep.subr.mxu0 %v80
    %349 = vmatpush1.msra.mxu0 %v79
    %350 = vmatprep.subr.mxu0 %v88
    %351 = vmatpush1.msra.mxu0 %v87
    %352 = vmatprep.subr.mxu0 %v96
    %353 = vmatpush1.msra.mxu0 %v95
    %354 = vmatprep.subr.mxu0 %v104
    %355 = vmatpush1.msra.mxu0 %v103
    %356 = vmatprep.subr.mxu0 %v112
    %357 = vmatpush1.msra.mxu0 %v111
    %358 = vmatprep.subr.mxu0 %v120
    %359 = vmatpush1.msra.mxu0 %v119
    %360 = vmatprep.subr.mxu0 %v128
    %361 = vmatpush1.msra.mxu0 %v127
    %362 = vmatprep.subr.mxu0 0.0
    %363 = vmatpush1.msra.mxu0 0.0
    %364 = vmatprep.subr.mxu0 0.0
    %365 = vmatpush1.msra.mxu0 0.0
    %366 = vmatprep.subr.mxu0 0.0
    %367 = vmatpush1.msra.mxu0 0.0
    %368 = vmatprep.subr.mxu0 0.0
    %369 = vmatpush1.msra.mxu0 0.0
    %370 = vmatprep.subr.mxu0 0.0
    %371 = vmatpush1.msra.mxu0 0.0
    %372 = vmatprep.subr.mxu0 0.0
    %373 = vmatpush1.msra.mxu0 0.0
    %374 = vmatprep.subr.mxu0 0.0
    %375 = vmatpush1.msra.mxu0 0.0
    %376 = vmatprep.subr.mxu0 0.0
    %377 = vmatpush1.msra.mxu0 0.0
    %378 = vmatprep.subr.mxu0 0.0
    %379 = vmatpush1.msra.mxu0 0.0
    %380 = vmatprep.subr.mxu0 0.0
    %381 = vmatpush1.msra.mxu0 0.0
    %382 = vmatprep.subr.mxu0 0.0
    %383 = vmatpush1.msra.mxu0 0.0
    %384 = vmatprep.subr.mxu0 0.0
    %385 = vmatpush1.msra.mxu0 0.0
    %386 = vmatprep.subr.mxu0 0.0
    %387 = vmatpush1.msra.mxu0 0.0
    %388 = vmatprep.subr.mxu0 0.0
    %389 = vmatpush1.msra.mxu0 0.0
    %390 = vmatprep.subr.mxu0 0.0
    %391 = vmatpush1.msra.mxu0 0.0
    %392 = vmatprep.subr.mxu0 0.0
    %393 = vmatpush1.msra.mxu0 0.0
    %394 = vmatprep.subr.mxu0 0.0
    %395 = vmatpush1.msra.mxu0 0.0
    %396 = vmatprep.subr.mxu0 0.0
    %397 = vmatpush1.msra.mxu0 0.0
    %398 = vmatprep.subr.mxu0 0.0
    %399 = vmatpush1.msra.mxu0 0.0
    %400 = vmatprep.subr.mxu0 0.0
    %401 = vmatpush1.msra.mxu0 0.0
    %402 = vmatprep.subr.mxu0 0.0
    %403 = vmatpush1.msra.mxu0 0.0
    %404 = vmatprep.subr.mxu0 0.0
    %405 = vmatpush1.msra.mxu0 0.0
    %406 = vmatprep.subr.mxu0 0.0
    %407 = vmatpush1.msra.mxu0 0.0
    %408 = vmatprep.subr.mxu0 0.0
    %409 = vmatpush1.msra.mxu0 0.0
    %410 = vmatprep.mubr.f32.mxu0 0.0
    %411 = vmatmul.mubr.f32.gmra.mrb[0].mxu0 %v131
    %v412 = vpop.f32.mrb[0].mxu0
    %v413 = vadd.f32 0.0, %v412
    %v414 = vpop.f32.mrb[0].mxu0
    %v415 = vadd.f32 0.0, %v414
    %416 = vdwg.mxu0
    %v417 = vadd.f32 %v200, %v202
    %v418 = vadd.f32 %v417, %v271
    %v419 = vadd.f32 %v418, %v273
    %v420 = vadd.f32 %v419, %v342
    %v421 = vadd.f32 %v420, %v344
    %v422 = vadd.f32 %v421, %v413
    %v423 = vadd.f32 %v422, %v415
    %424 = vadd.xlane.f32.xlu0 %v423
    %v425 = vpop.xlane.xlu0 %424
    %v426 = vmul.f32 %v425, 0.0009765625
    %v427 = vmul.f32 %v200, %v200
    %v428 = vmul.f32 %v202, %v202
    %v429 = vmul.f32 %v271, %v271
    %v430 = vmul.f32 %v273, %v273
    %v431 = vmul.f32 %v342, %v342
    %v432 = vmul.f32 %v344, %v344
    %v433 = vmul.f32 %v413, %v413
    %v434 = vmul.f32 %v415, %v415
    %v435 = vadd.f32 %v427, %v428
    %v436 = vadd.f32 %v435, %v429
    %v437 = vadd.f32 %v436, %v430
    %v438 = vadd.f32 %v437, %v431
    %v439 = vadd.f32 %v438, %v432
    %v440 = vadd.f32 %v439, %v433
    %v441 = vadd.f32 %v440, %v434
    %442 = vadd.xlane.f32.xlu0 %v441
    %v443 = vpop.xlane.xlu0 %442
    %v444 = vmul.f32 %v443, 0.0009765625
    %v445 = vld [vmem:[%s4] sm:$0xff]
    %v446 = vmul.f32 %v426, %v426
    %v447 = vsub.f32 %v444, %v446
    %v448 = vadd.f32 %v447, 1e-05
    %v449 = vrsqrt.pop %v448
    %v450 = vmul.f32 %v445, %v449
    %v451 = vld [vmem:[%s5] sm:$0xff]
    %v452 = vmul.f32 %v426, %v450
    %v453 = vsub.f32 %v451, %v452
    %455 = vset.pattern.permute.xlu0 0
    %456 = vperm.xlu0 %455, %v450
    %v457 = vpop.permute.xlu0 %456
    %v459 = vmul.f32 %v200, %v457
    %v460 = vmul.f32 %v202, %v457
    %v461 = vmul.f32 %v271, %v457
    %v462 = vmul.f32 %v273, %v457
    %v463 = vmul.f32 %v342, %v457
    %v464 = vmul.f32 %v344, %v457
    %v465 = vmul.f32 %v413, %v457
    %v466 = vmul.f32 %v415, %v457
    %468 = vset.pattern.permute.xlu0 0
    %469 = vperm.xlu0 %468, %v453
    %v470 = vpop.permute.xlu0 %469
    %v472 = vadd.f32 %v459, %v470
    %v473 = vadd.f32 %v460, %v470
    %v474 = vadd.f32 %v461, %v470
    %v475 = vadd.f32 %v462, %v470
    %v476 = vadd.f32 %v463, %v470
    %v477 = vadd.f32 %v464, %v470
    %v478 = vadd.f32 %v465, %v470
    %v479 = vadd.f32 %v466, %v470
    %v480 = vmax.f32 %v472, 0.0
    %v481 = vmax.f32 %v473, 0.0
    %v482 = vmax.f32 %v474, 0.0
    %v483 = vmax.f32 %v475, 0.0
    %v484 = vmax.f32 %v476, 0.0
    %v485 = vmax.f32 %v477, 0.0
    %v486 = vmax.f32 %v478, 0.0
    %v487 = vmax.f32 %v479, 0.0
    %488 = vrot.lane.b32.xlu0 %v480, 73
    %v489 = vpop.permute.xlu0 %488
    %490 = vrot.lane.b32.xlu0 %v481, 73
    %v491 = vpop.permute.xlu0 %490
    %492 = vrot.lane.b32.xlu0 %v482, 73
    %v493 = vpop.permute.xlu0 %492
    %494 = vrot.lane.b32.xlu0 %v483, 73
    %v495 = vpop.permute.xlu0 %494
    %496 = vrot.lane.b32.xlu0 %v484, 73
    %v497 = vpop.permute.xlu0 %496
    %498 = vrot.lane.b32.xlu0 %v485, 73
    %v499 = vpop.permute.xlu0 %498
    %500 = vrot.lane.b32.xlu0 %v486, 73
    %v501 = vpop.permute.xlu0 %500
    %502 = vrot.lane.b32.xlu0 %v487, 73
    %v503 = vpop.permute.xlu0 %502
    %v504 = vlaneseq
    %v505 = vand.u32 %v504, 127
    %vm506 = vcmp.lt.s32.totalorder %v505, 73
    %v507 = vsel %vm506, %v501, %v503
    %v508 = vsel %vm506, %v499, %v501
    %v509 = vsel %vm506, %v497, %v499
    %v510 = vsel %vm506, %v495, %v497
    %v511 = vsel %vm506, %v493, %v495
    %v512 = vsel %vm506, %v491, %v493
    %v513 = vsel %vm506, %v489, %v491
    %v514 = vsel %vm506, %v503, %v489
    %v515 = vld [vmem:[#allocation6] ss:$8 sm:$0xf]
    %v516 = vld [vmem:[#allocation6] ss:$8 sm:$0xf0]
    %v517 = vor.u32 %v515, %v516
    %v519 = vlaneseq
    %v520 = vshrl.u32 %v519, 7
    %v521 = vsub.s32 0, %v520
    %v522 = vrot.slane %v517, %v521
    %v523 = vlaneseq
    %v524 = vshrl.u32 %v523, 7
    %v525 = vsub.s32 1, %v524
    %v526 = vrot.slane %v517, %v525
    %v527 = vlaneseq
    %v528 = vshrl.u32 %v527, 7
    %v529 = vsub.s32 2, %v528
    %v530 = vrot.slane %v517, %v529
    %v531 = vlaneseq
    %v532 = vshrl.u32 %v531, 7
    %v533 = vsub.s32 3, %v532
    %v534 = vrot.slane %v517, %v533
    %v535 = vlaneseq
    %v536 = vshrl.u32 %v535, 7
    %v537 = vsub.s32 4, %v536
    %v538 = vrot.slane %v517, %v537
    %v539 = vlaneseq
    %v540 = vshrl.u32 %v539, 7
    %v541 = vsub.s32 5, %v540
    %v542 = vrot.slane %v517, %v541
    %v543 = vlaneseq
    %v544 = vshrl.u32 %v543, 7
    %v545 = vsub.s32 6, %v544
    %v546 = vrot.slane %v517, %v545
    %v547 = vlaneseq
    %v548 = vshrl.u32 %v547, 7
    %v549 = vsub.s32 7, %v548
    %v550 = vrot.slane %v517, %v549
    %v559 = vmul.f32 %v514, %v522
    %v560 = vmul.f32 %v513, %v526
    %v561 = vmul.f32 %v512, %v530
    %v562 = vmul.f32 %v511, %v534
    %v563 = vmul.f32 %v510, %v538
    %v564 = vmul.f32 %v509, %v542
    %v565 = vmul.f32 %v508, %v546
    %v566 = vmul.f32 %v507, %v550
    %v567 = vld [vmem:[%s2] sm:$0xff]
    %569 = vset.pattern.permute.xlu0 0
    %570 = vperm.xlu0 %569, %v567
    %v571 = vpop.permute.xlu0 %570
    %v573 = vmul.f32 %v559, %v571
    %v574 = vmul.f32 %v560, %v571
    %v575 = vmul.f32 %v561, %v571
    %v576 = vmul.f32 %v562, %v571
    %v577 = vmul.f32 %v563, %v571
    %v578 = vmul.f32 %v564, %v571
    %v579 = vmul.f32 %v565, %v571
    %v580 = vmul.f32 %v566, %v571
    %581 = vrot.lane.b32.xlu0 %v480, 72
    %v582 = vpop.permute.xlu0 %581
    %583 = vrot.lane.b32.xlu0 %v481, 72
    %v584 = vpop.permute.xlu0 %583
    %585 = vrot.lane.b32.xlu0 %v482, 72
    %v586 = vpop.permute.xlu0 %585
    %587 = vrot.lane.b32.xlu0 %v483, 72
    %v588 = vpop.permute.xlu0 %587
    %589 = vrot.lane.b32.xlu0 %v484, 72
    %v590 = vpop.permute.xlu0 %589
    %591 = vrot.lane.b32.xlu0 %v485, 72
    %v592 = vpop.permute.xlu0 %591
    %593 = vrot.lane.b32.xlu0 %v486, 72
    %v594 = vpop.permute.xlu0 %593
    %595 = vrot.lane.b32.xlu0 %v487, 72
    %v596 = vpop.permute.xlu0 %595
    %vm597 = vcmp.lt.s32.totalorder %v505, 72
    %v598 = vsel %vm597, %v594, %v596
    %v599 = vsel %vm597, %v592, %v594
    %v600 = vsel %vm597, %v590, %v592
    %v601 = vsel %vm597, %v588, %v590
    %v602 = vsel %vm597, %v586, %v588
    %v603 = vsel %vm597, %v584, %v586
    %v604 = vsel %vm597, %v582, %v584
    %v605 = vsel %vm597, %v596, %v582
    %s606 = scalar_lea.vmem [#allocation6], 1
    %v607 = vld [vmem:[%s606] ss:$8 sm:$0xf]
    %v608 = vld [vmem:[%s606] ss:$8 sm:$0xf0]
    %v609 = vor.u32 %v607, %v608
    %v611 = vlaneseq
    %v612 = vshrl.u32 %v611, 7
    %v613 = vsub.s32 0, %v612
    %v614 = vrot.slane %v609, %v613
    %v615 = vlaneseq
    %v616 = vshrl.u32 %v615, 7
    %v617 = vsub.s32 1, %v616
    %v618 = vrot.slane %v609, %v617
    %v619 = vlaneseq
    %v620 = vshrl.u32 %v619, 7
    %v621 = vsub.s32 2, %v620
    %v622 = vrot.slane %v609, %v621
    %v623 = vlaneseq
    %v624 = vshrl.u32 %v623, 7
    %v625 = vsub.s32 3, %v624
    %v626 = vrot.slane %v609, %v625
    %v627 = vlaneseq
    %v628 = vshrl.u32 %v627, 7
    %v629 = vsub.s32 4, %v628
    %v630 = vrot.slane %v609, %v629
    %v631 = vlaneseq
    %v632 = vshrl.u32 %v631, 7
    %v633 = vsub.s32 5, %v632
    %v634 = vrot.slane %v609, %v633
    %v635 = vlaneseq
    %v636 = vshrl.u32 %v635, 7
    %v637 = vsub.s32 6, %v636
    %v638 = vrot.slane %v609, %v637
    %v639 = vlaneseq
    %v640 = vshrl.u32 %v639, 7
    %v641 = vsub.s32 7, %v640
    %v642 = vrot.slane %v609, %v641
    %v651 = vmul.f32 %v605, %v614
    %v652 = vmul.f32 %v604, %v618
    %v653 = vmul.f32 %v603, %v622
    %v654 = vmul.f32 %v602, %v626
    %v655 = vmul.f32 %v601, %v630
    %v656 = vmul.f32 %v600, %v634
    %v657 = vmul.f32 %v599, %v638
    %v658 = vmul.f32 %v598, %v642
    %659 = vset.pattern.permute.xlu0 1
    %660 = vperm.xlu0 %659, %v567
    %v661 = vpop.permute.xlu0 %660
    %v663 = vmul.f32 %v651, %v661
    %v664 = vmul.f32 %v652, %v661
    %v665 = vmul.f32 %v653, %v661
    %v666 = vmul.f32 %v654, %v661
    %v667 = vmul.f32 %v655, %v661
    %v668 = vmul.f32 %v656, %v661
    %v669 = vmul.f32 %v657, %v661
    %v670 = vmul.f32 %v658, %v661
    %v671 = vadd.f32 %v573, %v663
    %v672 = vadd.f32 %v574, %v664
    %v673 = vadd.f32 %v575, %v665
    %v674 = vadd.f32 %v576, %v666
    %v675 = vadd.f32 %v577, %v667
    %v676 = vadd.f32 %v578, %v668
    %v677 = vadd.f32 %v579, %v669
    %v678 = vadd.f32 %v580, %v670
    %679 = vrot.lane.b32.xlu0 %v480, 71
    %v680 = vpop.permute.xlu0 %679
    %681 = vrot.lane.b32.xlu0 %v481, 71
    %v682 = vpop.permute.xlu0 %681
    %683 = vrot.lane.b32.xlu0 %v482, 71
    %v684 = vpop.permute.xlu0 %683
    %685 = vrot.lane.b32.xlu0 %v483, 71
    %v686 = vpop.permute.xlu0 %685
    %687 = vrot.lane.b32.xlu0 %v484, 71
    %v688 = vpop.permute.xlu0 %687
    %689 = vrot.lane.b32.xlu0 %v485, 71
    %v690 = vpop.permute.xlu0 %689
    %691 = vrot.lane.b32.xlu0 %v486, 71
    %v692 = vpop.permute.xlu0 %691
    %693 = vrot.lane.b32.xlu0 %v487, 71
    %v694 = vpop.permute.xlu0 %693
    %vm695 = vcmp.lt.s32.totalorder %v505, 71
    %v696 = vsel %vm695, %v692, %v694
    %v697 = vsel %vm695, %v690, %v692
    %v698 = vsel %vm695, %v688, %v690
    %v699 = vsel %vm695, %v686, %v688
    %v700 = vsel %vm695, %v684, %v686
    %v701 = vsel %vm695, %v682, %v684
    %v702 = vsel %vm695, %v680, %v682
    %v703 = vsel %vm695, %v694, %v680
    %s704 = scalar_lea.vmem [#allocation6], 2
    %v705 = vld [vmem:[%s704] ss:$8 sm:$0xf]
    %v706 = vld [vmem:[%s704] ss:$8 sm:$0xf0]
    %v707 = vor.u32 %v705, %v706
    %v709 = vlaneseq
    %v710 = vshrl.u32 %v709, 7
    %v711 = vsub.s32 0, %v710
    %v712 = vrot.slane %v707, %v711
    %v713 = vlaneseq
    %v714 = vshrl.u32 %v713, 7
    %v715 = vsub.s32 1, %v714
    %v716 = vrot.slane %v707, %v715
    %v717 = vlaneseq
    %v718 = vshrl.u32 %v717, 7
    %v719 = vsub.s32 2, %v718
    %v720 = vrot.slane %v707, %v719
    %v721 = vlaneseq
    %v722 = vshrl.u32 %v721, 7
    %v723 = vsub.s32 3, %v722
    %v724 = vrot.slane %v707, %v723
    %v725 = vlaneseq
    %v726 = vshrl.u32 %v725, 7
    %v727 = vsub.s32 4, %v726
    %v728 = vrot.slane %v707, %v727
    %v729 = vlaneseq
    %v730 = vshrl.u32 %v729, 7
    %v731 = vsub.s32 5, %v730
    %v732 = vrot.slane %v707, %v731
    %v733 = vlaneseq
    %v734 = vshrl.u32 %v733, 7
    %v735 = vsub.s32 6, %v734
    %v736 = vrot.slane %v707, %v735
    %v737 = vlaneseq
    %v738 = vshrl.u32 %v737, 7
    %v739 = vsub.s32 7, %v738
    %v740 = vrot.slane %v707, %v739
    %v749 = vmul.f32 %v703, %v712
    %v750 = vmul.f32 %v702, %v716
    %v751 = vmul.f32 %v701, %v720
    %v752 = vmul.f32 %v700, %v724
    %v753 = vmul.f32 %v699, %v728
    %v754 = vmul.f32 %v698, %v732
    %v755 = vmul.f32 %v697, %v736
    %v756 = vmul.f32 %v696, %v740
    %757 = vset.pattern.permute.xlu0 2
    %758 = vperm.xlu0 %757, %v567
    %v759 = vpop.permute.xlu0 %758
    %v761 = vmul.f32 %v749, %v759
    %v762 = vmul.f32 %v750, %v759
    %v763 = vmul.f32 %v751, %v759
    %v764 = vmul.f32 %v752, %v759
    %v765 = vmul.f32 %v753, %v759
    %v766 = vmul.f32 %v754, %v759
    %v767 = vmul.f32 %v755, %v759
    %v768 = vmul.f32 %v756, %v759
    %v769 = vadd.f32 %v671, %v761
    %v770 = vadd.f32 %v672, %v762
    %v771 = vadd.f32 %v673, %v763
    %v772 = vadd.f32 %v674, %v764
    %v773 = vadd.f32 %v675, %v765
    %v774 = vadd.f32 %v676, %v766
    %v775 = vadd.f32 %v677, %v767
    %v776 = vadd.f32 %v678, %v768
    %777 = vrot.lane.b32.xlu0 %v480, 65
    %v778 = vpop.permute.xlu0 %777
    %779 = vrot.lane.b32.xlu0 %v481, 65
    %v780 = vpop.permute.xlu0 %779
    %781 = vrot.lane.b32.xlu0 %v482, 65
    %v782 = vpop.permute.xlu0 %781
    %783 = vrot.lane.b32.xlu0 %v483, 65
    %v784 = vpop.permute.xlu0 %783
    %785 = vrot.lane.b32.xlu0 %v484, 65
    %v786 = vpop.permute.xlu0 %785
    %787 = vrot.lane.b32.xlu0 %v485, 65
    %v788 = vpop.permute.xlu0 %787
    %789 = vrot.lane.b32.xlu0 %v486, 65
    %v790 = vpop.permute.xlu0 %789
    %791 = vrot.lane.b32.xlu0 %v487, 65
    %v792 = vpop.permute.xlu0 %791
    %vm793 = vcmp.lt.s32.totalorder %v505, 65
    %v794 = vsel %vm793, %v790, %v792
    %v795 = vsel %vm793, %v788, %v790
    %v796 = vsel %vm793, %v786, %v788
    %v797 = vsel %vm793, %v784, %v786
    %v798 = vsel %vm793, %v782, %v784
    %v799 = vsel %vm793, %v780, %v782
    %v800 = vsel %vm793, %v778, %v780
    %v801 = vsel %vm793, %v792, %v778
    %s802 = scalar_lea.vmem [#allocation6], 3
    %v803 = vld [vmem:[%s802] ss:$8 sm:$0xf]
    %v804 = vld [vmem:[%s802] ss:$8 sm:$0xf0]
    %v805 = vor.u32 %v803, %v804
    %v807 = vlaneseq
    %v808 = vshrl.u32 %v807, 7
    %v809 = vsub.s32 0, %v808
    %v810 = vrot.slane %v805, %v809
    %v811 = vlaneseq
    %v812 = vshrl.u32 %v811, 7
    %v813 = vsub.s32 1, %v812
    %v814 = vrot.slane %v805, %v813
    %v815 = vlaneseq
    %v816 = vshrl.u32 %v815, 7
    %v817 = vsub.s32 2, %v816
    %v818 = vrot.slane %v805, %v817
    %v819 = vlaneseq
    %v820 = vshrl.u32 %v819, 7
    %v821 = vsub.s32 3, %v820
    %v822 = vrot.slane %v805, %v821
    %v823 = vlaneseq
    %v824 = vshrl.u32 %v823, 7
    %v825 = vsub.s32 4, %v824
    %v826 = vrot.slane %v805, %v825
    %v827 = vlaneseq
    %v828 = vshrl.u32 %v827, 7
    %v829 = vsub.s32 5, %v828
    %v830 = vrot.slane %v805, %v829
    %v831 = vlaneseq
    %v832 = vshrl.u32 %v831, 7
    %v833 = vsub.s32 6, %v832
    %v834 = vrot.slane %v805, %v833
    %v835 = vlaneseq
    %v836 = vshrl.u32 %v835, 7
    %v837 = vsub.s32 7, %v836
    %v838 = vrot.slane %v805, %v837
    %v847 = vmul.f32 %v801, %v810
    %v848 = vmul.f32 %v800, %v814
    %v849 = vmul.f32 %v799, %v818
    %v850 = vmul.f32 %v798, %v822
    %v851 = vmul.f32 %v797, %v826
    %v852 = vmul.f32 %v796, %v830
    %v853 = vmul.f32 %v795, %v834
    %v854 = vmul.f32 %v794, %v838
    %855 = vset.pattern.permute.xlu0 3
    %856 = vperm.xlu0 %855, %v567
    %v857 = vpop.permute.xlu0 %856
    %v859 = vmul.f32 %v847, %v857
    %v860 = vmul.f32 %v848, %v857
    %v861 = vmul.f32 %v849, %v857
    %v862 = vmul.f32 %v850, %v857
    %v863 = vmul.f32 %v851, %v857
    %v864 = vmul.f32 %v852, %v857
    %v865 = vmul.f32 %v853, %v857
    %v866 = vmul.f32 %v854, %v857
    %v867 = vadd.f32 %v769, %v859
    %v868 = vadd.f32 %v770, %v860
    %v869 = vadd.f32 %v771, %v861
    %v870 = vadd.f32 %v772, %v862
    %v871 = vadd.f32 %v773, %v863
    %v872 = vadd.f32 %v774, %v864
    %v873 = vadd.f32 %v775, %v865
    %v874 = vadd.f32 %v776, %v866
    %875 = vrot.lane.b32.xlu0 %v480, 64
    %v876 = vpop.permute.xlu0 %875
    %877 = vrot.lane.b32.xlu0 %v481, 64
    %v878 = vpop.permute.xlu0 %877
    %879 = vrot.lane.b32.xlu0 %v482, 64
    %v880 = vpop.permute.xlu0 %879
    %881 = vrot.lane.b32.xlu0 %v483, 64
    %v882 = vpop.permute.xlu0 %881
    %883 = vrot.lane.b32.xlu0 %v484, 64
    %v884 = vpop.permute.xlu0 %883
    %885 = vrot.lane.b32.xlu0 %v485, 64
    %v886 = vpop.permute.xlu0 %885
    %887 = vrot.lane.b32.xlu0 %v486, 64
    %v888 = vpop.permute.xlu0 %887
    %889 = vrot.lane.b32.xlu0 %v487, 64
    %v890 = vpop.permute.xlu0 %889
    %vm891 = vcmp.lt.s32.totalorder %v505, 64
    %v892 = vsel %vm891, %v888, %v890
    %v893 = vsel %vm891, %v886, %v888
    %v894 = vsel %vm891, %v884, %v886
    %v895 = vsel %vm891, %v882, %v884
    %v896 = vsel %vm891, %v880, %v882
    %v897 = vsel %vm891, %v878, %v880
    %v898 = vsel %vm891, %v876, %v878
    %v899 = vsel %vm891, %v890, %v876
    %s900 = scalar_lea.vmem [#allocation6], 4
    %v901 = vld [vmem:[%s900] ss:$8 sm:$0xf]
    %v902 = vld [vmem:[%s900] ss:$8 sm:$0xf0]
    %v903 = vor.u32 %v901, %v902
    %v905 = vlaneseq
    %v906 = vshrl.u32 %v905, 7
    %v907 = vsub.s32 0, %v906
    %v908 = vrot.slane %v903, %v907
    %v909 = vlaneseq
    %v910 = vshrl.u32 %v909, 7
    %v911 = vsub.s32 1, %v910
    %v912 = vrot.slane %v903, %v911
    %v913 = vlaneseq
    %v914 = vshrl.u32 %v913, 7
    %v915 = vsub.s32 2, %v914
    %v916 = vrot.slane %v903, %v915
    %v917 = vlaneseq
    %v918 = vshrl.u32 %v917, 7
    %v919 = vsub.s32 3, %v918
    %v920 = vrot.slane %v903, %v919
    %v921 = vlaneseq
    %v922 = vshrl.u32 %v921, 7
    %v923 = vsub.s32 4, %v922
    %v924 = vrot.slane %v903, %v923
    %v925 = vlaneseq
    %v926 = vshrl.u32 %v925, 7
    %v927 = vsub.s32 5, %v926
    %v928 = vrot.slane %v903, %v927
    %v929 = vlaneseq
    %v930 = vshrl.u32 %v929, 7
    %v931 = vsub.s32 6, %v930
    %v932 = vrot.slane %v903, %v931
    %v933 = vlaneseq
    %v934 = vshrl.u32 %v933, 7
    %v935 = vsub.s32 7, %v934
    %v936 = vrot.slane %v903, %v935
    %v945 = vmul.f32 %v899, %v908
    %v946 = vmul.f32 %v898, %v912
    %v947 = vmul.f32 %v897, %v916
    %v948 = vmul.f32 %v896, %v920
    %v949 = vmul.f32 %v895, %v924
    %v950 = vmul.f32 %v894, %v928
    %v951 = vmul.f32 %v893, %v932
    %v952 = vmul.f32 %v892, %v936
    %953 = vset.pattern.permute.xlu0 4
    %954 = vperm.xlu0 %953, %v567
    %v955 = vpop.permute.xlu0 %954
    %v957 = vmul.f32 %v945, %v955
    %v958 = vmul.f32 %v946, %v955
    %v959 = vmul.f32 %v947, %v955
    %v960 = vmul.f32 %v948, %v955
    %v961 = vmul.f32 %v949, %v955
    %v962 = vmul.f32 %v950, %v955
    %v963 = vmul.f32 %v951, %v955
    %v964 = vmul.f32 %v952, %v955
    %v965 = vadd.f32 %v867, %v957
    %v966 = vadd.f32 %v868, %v958
    %v967 = vadd.f32 %v869, %v959
    %v968 = vadd.f32 %v870, %v960
    %v969 = vadd.f32 %v871, %v961
    %v970 = vadd.f32 %v872, %v962
    %v971 = vadd.f32 %v873, %v963
    %v972 = vadd.f32 %v874, %v964
    %973 = vrot.lane.b32.xlu0 %v480, 63
    %v974 = vpop.permute.xlu0 %973
    %975 = vrot.lane.b32.xlu0 %v481, 63
    %v976 = vpop.permute.xlu0 %975
    %977 = vrot.lane.b32.xlu0 %v482, 63
    %v978 = vpop.permute.xlu0 %977
    %979 = vrot.lane.b32.xlu0 %v483, 63
    %v980 = vpop.permute.xlu0 %979
    %981 = vrot.lane.b32.xlu0 %v484, 63
    %v982 = vpop.permute.xlu0 %981
    %983 = vrot.lane.b32.xlu0 %v485, 63
    %v984 = vpop.permute.xlu0 %983
    %985 = vrot.lane.b32.xlu0 %v486, 63
    %v986 = vpop.permute.xlu0 %985
    %987 = vrot.lane.b32.xlu0 %v487, 63
    %v988 = vpop.permute.xlu0 %987
    %vm989 = vcmp.lt.s32.totalorder %v505, 63
    %v990 = vsel %vm989, %v986, %v988
    %v991 = vsel %vm989, %v984, %v986
    %v992 = vsel %vm989, %v982, %v984
    %v993 = vsel %vm989, %v980, %v982
    %v994 = vsel %vm989, %v978, %v980
    %v995 = vsel %vm989, %v976, %v978
    %v996 = vsel %vm989, %v974, %v976
    %v997 = vsel %vm989, %v988, %v974
    %s998 = scalar_lea.vmem [#allocation6], 5
    %v999 = vld [vmem:[%s998] ss:$8 sm:$0xf]
    %v1000 = vld [vmem:[%s998] ss:$8 sm:$0xf0]
    %v1001 = vor.u32 %v999, %v1000
    %v1003 = vlaneseq
    %v1004 = vshrl.u32 %v1003, 7
    %v1005 = vsub.s32 0, %v1004
    %v1006 = vrot.slane %v1001, %v1005
    %v1007 = vlaneseq
    %v1008 = vshrl.u32 %v1007, 7
    %v1009 = vsub.s32 1, %v1008
    %v1010 = vrot.slane %v1001, %v1009
    %v1011 = vlaneseq
    %v1012 = vshrl.u32 %v1011, 7
    %v1013 = vsub.s32 2, %v1012
    %v1014 = vrot.slane %v1001, %v1013
    %v1015 = vlaneseq
    %v1016 = vshrl.u32 %v1015, 7
    %v1017 = vsub.s32 3, %v1016
    %v1018 = vrot.slane %v1001, %v1017
    %v1019 = vlaneseq
    %v1020 = vshrl.u32 %v1019, 7
    %v1021 = vsub.s32 4, %v1020
    %v1022 = vrot.slane %v1001, %v1021
    %v1023 = vlaneseq
    %v1024 = vshrl.u32 %v1023, 7
    %v1025 = vsub.s32 5, %v1024
    %v1026 = vrot.slane %v1001, %v1025
    %v1027 = vlaneseq
    %v1028 = vshrl.u32 %v1027, 7
    %v1029 = vsub.s32 6, %v1028
    %v1030 = vrot.slane %v1001, %v1029
    %v1031 = vlaneseq
    %v1032 = vshrl.u32 %v1031, 7
    %v1033 = vsub.s32 7, %v1032
    %v1034 = vrot.slane %v1001, %v1033
    %v1043 = vmul.f32 %v997, %v1006
    %v1044 = vmul.f32 %v996, %v1010
    %v1045 = vmul.f32 %v995, %v1014
    %v1046 = vmul.f32 %v994, %v1018
    %v1047 = vmul.f32 %v993, %v1022
    %v1048 = vmul.f32 %v992, %v1026
    %v1049 = vmul.f32 %v991, %v1030
    %v1050 = vmul.f32 %v990, %v1034
    %1051 = vset.pattern.permute.xlu0 5
    %1052 = vperm.xlu0 %1051, %v567
    %v1053 = vpop.permute.xlu0 %1052
    %v1055 = vmul.f32 %v1043, %v1053
    %v1056 = vmul.f32 %v1044, %v1053
    %v1057 = vmul.f32 %v1045, %v1053
    %v1058 = vmul.f32 %v1046, %v1053
    %v1059 = vmul.f32 %v1047, %v1053
    %v1060 = vmul.f32 %v1048, %v1053
    %v1061 = vmul.f32 %v1049, %v1053
    %v1062 = vmul.f32 %v1050, %v1053
    %v1063 = vadd.f32 %v965, %v1055
    %v1064 = vadd.f32 %v966, %v1056
    %v1065 = vadd.f32 %v967, %v1057
    %v1066 = vadd.f32 %v968, %v1058
    %v1067 = vadd.f32 %v969, %v1059
    %v1068 = vadd.f32 %v970, %v1060
    %v1069 = vadd.f32 %v971, %v1061
    %v1070 = vadd.f32 %v972, %v1062
    %1071 = vrot.lane.b32.xlu0 %v480, 57
    %v1072 = vpop.permute.xlu0 %1071
    %1073 = vrot.lane.b32.xlu0 %v481, 57
    %v1074 = vpop.permute.xlu0 %1073
    %1075 = vrot.lane.b32.xlu0 %v482, 57
    %v1076 = vpop.permute.xlu0 %1075
    %1077 = vrot.lane.b32.xlu0 %v483, 57
    %v1078 = vpop.permute.xlu0 %1077
    %1079 = vrot.lane.b32.xlu0 %v484, 57
    %v1080 = vpop.permute.xlu0 %1079
    %1081 = vrot.lane.b32.xlu0 %v485, 57
    %v1082 = vpop.permute.xlu0 %1081
    %1083 = vrot.lane.b32.xlu0 %v486, 57
    %v1084 = vpop.permute.xlu0 %1083
    %1085 = vrot.lane.b32.xlu0 %v487, 57
    %v1086 = vpop.permute.xlu0 %1085
    %vm1087 = vcmp.lt.s32.totalorder %v505, 57
    %v1088 = vsel %vm1087, %v1084, %v1086
    %v1089 = vsel %vm1087, %v1082, %v1084
    %v1090 = vsel %vm1087, %v1080, %v1082
    %v1091 = vsel %vm1087, %v1078, %v1080
    %v1092 = vsel %vm1087, %v1076, %v1078
    %v1093 = vsel %vm1087, %v1074, %v1076
    %v1094 = vsel %vm1087, %v1072, %v1074
    %v1095 = vsel %vm1087, %v1086, %v1072
    %s1096 = scalar_lea.vmem [#allocation6], 6
    %v1097 = vld [vmem:[%s1096] ss:$8 sm:$0xf]
    %v1098 = vld [vmem:[%s1096] ss:$8 sm:$0xf0]
    %v1099 = vor.u32 %v1097, %v1098
    %v1101 = vlaneseq
    %v1102 = vshrl.u32 %v1101, 7
    %v1103 = vsub.s32 0, %v1102
    %v1104 = vrot.slane %v1099, %v1103
    %v1105 = vlaneseq
    %v1106 = vshrl.u32 %v1105, 7
    %v1107 = vsub.s32 1, %v1106
    %v1108 = vrot.slane %v1099, %v1107
    %v1109 = vlaneseq
    %v1110 = vshrl.u32 %v1109, 7
    %v1111 = vsub.s32 2, %v1110
    %v1112 = vrot.slane %v1099, %v1111
    %v1113 = vlaneseq
    %v1114 = vshrl.u32 %v1113, 7
    %v1115 = vsub.s32 3, %v1114
    %v1116 = vrot.slane %v1099, %v1115
    %v1117 = vlaneseq
    %v1118 = vshrl.u32 %v1117, 7
    %v1119 = vsub.s32 4, %v1118
    %v1120 = vrot.slane %v1099, %v1119
    %v1121 = vlaneseq
    %v1122 = vshrl.u32 %v1121, 7
    %v1123 = vsub.s32 5, %v1122
    %v1124 = vrot.slane %v1099, %v1123
    %v1125 = vlaneseq
    %v1126 = vshrl.u32 %v1125, 7
    %v1127 = vsub.s32 6, %v1126
    %v1128 = vrot.slane %v1099, %v1127
    %v1129 = vlaneseq
    %v1130 = vshrl.u32 %v1129, 7
    %v1131 = vsub.s32 7, %v1130
    %v1132 = vrot.slane %v1099, %v1131
    %v1141 = vmul.f32 %v1095, %v1104
    %v1142 = vmul.f32 %v1094, %v1108
    %v1143 = vmul.f32 %v1093, %v1112
    %v1144 = vmul.f32 %v1092, %v1116
    %v1145 = vmul.f32 %v1091, %v1120
    %v1146 = vmul.f32 %v1090, %v1124
    %v1147 = vmul.f32 %v1089, %v1128
    %v1148 = vmul.f32 %v1088, %v1132
    %1149 = vset.pattern.permute.xlu0 6
    %1150 = vperm.xlu0 %1149, %v567
    %v1151 = vpop.permute.xlu0 %1150
    %v1153 = vmul.f32 %v1141, %v1151
    %v1154 = vmul.f32 %v1142, %v1151
    %v1155 = vmul.f32 %v1143, %v1151
    %v1156 = vmul.f32 %v1144, %v1151
    %v1157 = vmul.f32 %v1145, %v1151
    %v1158 = vmul.f32 %v1146, %v1151
    %v1159 = vmul.f32 %v1147, %v1151
    %v1160 = vmul.f32 %v1148, %v1151
    %v1161 = vadd.f32 %v1063, %v1153
    %v1162 = vadd.f32 %v1064, %v1154
    %v1163 = vadd.f32 %v1065, %v1155
    %v1164 = vadd.f32 %v1066, %v1156
    %v1165 = vadd.f32 %v1067, %v1157
    %v1166 = vadd.f32 %v1068, %v1158
    %v1167 = vadd.f32 %v1069, %v1159
    %v1168 = vadd.f32 %v1070, %v1160
    %1169 = vrot.lane.b32.xlu0 %v480, 56
    %v1170 = vpop.permute.xlu0 %1169
    %1171 = vrot.lane.b32.xlu0 %v481, 56
    %v1172 = vpop.permute.xlu0 %1171
    %1173 = vrot.lane.b32.xlu0 %v482, 56
    %v1174 = vpop.permute.xlu0 %1173
    %1175 = vrot.lane.b32.xlu0 %v483, 56
    %v1176 = vpop.permute.xlu0 %1175
    %1177 = vrot.lane.b32.xlu0 %v484, 56
    %v1178 = vpop.permute.xlu0 %1177
    %1179 = vrot.lane.b32.xlu0 %v485, 56
    %v1180 = vpop.permute.xlu0 %1179
    %1181 = vrot.lane.b32.xlu0 %v486, 56
    %v1182 = vpop.permute.xlu0 %1181
    %1183 = vrot.lane.b32.xlu0 %v487, 56
    %v1184 = vpop.permute.xlu0 %1183
    %vm1185 = vcmp.lt.s32.totalorder %v505, 56
    %v1186 = vsel %vm1185, %v1182, %v1184
    %v1187 = vsel %vm1185, %v1180, %v1182
    %v1188 = vsel %vm1185, %v1178, %v1180
    %v1189 = vsel %vm1185, %v1176, %v1178
    %v1190 = vsel %vm1185, %v1174, %v1176
    %v1191 = vsel %vm1185, %v1172, %v1174
    %v1192 = vsel %vm1185, %v1170, %v1172
    %v1193 = vsel %vm1185, %v1184, %v1170
    %s1194 = scalar_lea.vmem [#allocation6], 7
    %v1195 = vld [vmem:[%s1194] ss:$8 sm:$0xf]
    %v1196 = vld [vmem:[%s1194] ss:$8 sm:$0xf0]
    %v1197 = vor.u32 %v1195, %v1196
    %v1199 = vlaneseq
    %v1200 = vshrl.u32 %v1199, 7
    %v1201 = vsub.s32 0, %v1200
    %v1202 = vrot.slane %v1197, %v1201
    %v1203 = vlaneseq
    %v1204 = vshrl.u32 %v1203, 7
    %v1205 = vsub.s32 1, %v1204
    %v1206 = vrot.slane %v1197, %v1205
    %v1207 = vlaneseq
    %v1208 = vshrl.u32 %v1207, 7
    %v1209 = vsub.s32 2, %v1208
    %v1210 = vrot.slane %v1197, %v1209
    %v1211 = vlaneseq
    %v1212 = vshrl.u32 %v1211, 7
    %v1213 = vsub.s32 3, %v1212
    %v1214 = vrot.slane %v1197, %v1213
    %v1215 = vlaneseq
    %v1216 = vshrl.u32 %v1215, 7
    %v1217 = vsub.s32 4, %v1216
    %v1218 = vrot.slane %v1197, %v1217
    %v1219 = vlaneseq
    %v1220 = vshrl.u32 %v1219, 7
    %v1221 = vsub.s32 5, %v1220
    %v1222 = vrot.slane %v1197, %v1221
    %v1223 = vlaneseq
    %v1224 = vshrl.u32 %v1223, 7
    %v1225 = vsub.s32 6, %v1224
    %v1226 = vrot.slane %v1197, %v1225
    %v1227 = vlaneseq
    %v1228 = vshrl.u32 %v1227, 7
    %v1229 = vsub.s32 7, %v1228
    %v1230 = vrot.slane %v1197, %v1229
    %v1239 = vmul.f32 %v1193, %v1202
    %v1240 = vmul.f32 %v1192, %v1206
    %v1241 = vmul.f32 %v1191, %v1210
    %v1242 = vmul.f32 %v1190, %v1214
    %v1243 = vmul.f32 %v1189, %v1218
    %v1244 = vmul.f32 %v1188, %v1222
    %v1245 = vmul.f32 %v1187, %v1226
    %v1246 = vmul.f32 %v1186, %v1230
    %1247 = vset.pattern.permute.xlu0 7
    %1248 = vperm.xlu0 %1247, %v567
    %v1249 = vpop.permute.xlu0 %1248
    %v1251 = vmul.f32 %v1239, %v1249
    %v1252 = vmul.f32 %v1240, %v1249
    %v1253 = vmul.f32 %v1241, %v1249
    %v1254 = vmul.f32 %v1242, %v1249
    %v1255 = vmul.f32 %v1243, %v1249
    %v1256 = vmul.f32 %v1244, %v1249
    %v1257 = vmul.f32 %v1245, %v1249
    %v1258 = vmul.f32 %v1246, %v1249
    %v1259 = vadd.f32 %v1161, %v1251
    %v1260 = vadd.f32 %v1162, %v1252
    %v1261 = vadd.f32 %v1163, %v1253
    %v1262 = vadd.f32 %v1164, %v1254
    %v1263 = vadd.f32 %v1165, %v1255
    %v1264 = vadd.f32 %v1166, %v1256
    %v1265 = vadd.f32 %v1167, %v1257
    %v1266 = vadd.f32 %v1168, %v1258
    %1267 = vrot.lane.b32.xlu0 %v480, 55
    %v1268 = vpop.permute.xlu0 %1267
    %1269 = vrot.lane.b32.xlu0 %v481, 55
    %v1270 = vpop.permute.xlu0 %1269
    %1271 = vrot.lane.b32.xlu0 %v482, 55
    %v1272 = vpop.permute.xlu0 %1271
    %1273 = vrot.lane.b32.xlu0 %v483, 55
    %v1274 = vpop.permute.xlu0 %1273
    %1275 = vrot.lane.b32.xlu0 %v484, 55
    %v1276 = vpop.permute.xlu0 %1275
    %1277 = vrot.lane.b32.xlu0 %v485, 55
    %v1278 = vpop.permute.xlu0 %1277
    %1279 = vrot.lane.b32.xlu0 %v486, 55
    %v1280 = vpop.permute.xlu0 %1279
    %1281 = vrot.lane.b32.xlu0 %v487, 55
    %v1282 = vpop.permute.xlu0 %1281
    %vm1283 = vcmp.lt.s32.totalorder %v505, 55
    %v1284 = vsel %vm1283, %v1280, %v1282
    %v1285 = vsel %vm1283, %v1278, %v1280
    %v1286 = vsel %vm1283, %v1276, %v1278
    %v1287 = vsel %vm1283, %v1274, %v1276
    %v1288 = vsel %vm1283, %v1272, %v1274
    %v1289 = vsel %vm1283, %v1270, %v1272
    %v1290 = vsel %vm1283, %v1268, %v1270
    %v1291 = vsel %vm1283, %v1282, %v1268
    %s1292 = scalar_lea.vmem [#allocation6], 64
    %v1293 = vld [vmem:[%s1292] ss:$8 sm:$0xf]
    %v1294 = vld [vmem:[%s1292] ss:$8 sm:$0xf0]
    %v1295 = vor.u32 %v1293, %v1294
    %v1297 = vlaneseq
    %v1298 = vshrl.u32 %v1297, 7
    %v1299 = vsub.s32 0, %v1298
    %v1300 = vrot.slane %v1295, %v1299
    %v1301 = vlaneseq
    %v1302 = vshrl.u32 %v1301, 7
    %v1303 = vsub.s32 1, %v1302
    %v1304 = vrot.slane %v1295, %v1303
    %v1305 = vlaneseq
    %v1306 = vshrl.u32 %v1305, 7
    %v1307 = vsub.s32 2, %v1306
    %v1308 = vrot.slane %v1295, %v1307
    %v1309 = vlaneseq
    %v1310 = vshrl.u32 %v1309, 7
    %v1311 = vsub.s32 3, %v1310
    %v1312 = vrot.slane %v1295, %v1311
    %v1313 = vlaneseq
    %v1314 = vshrl.u32 %v1313, 7
    %v1315 = vsub.s32 4, %v1314
    %v1316 = vrot.slane %v1295, %v1315
    %v1317 = vlaneseq
    %v1318 = vshrl.u32 %v1317, 7
    %v1319 = vsub.s32 5, %v1318
    %v1320 = vrot.slane %v1295, %v1319
    %v1321 = vlaneseq
    %v1322 = vshrl.u32 %v1321, 7
    %v1323 = vsub.s32 6, %v1322
    %v1324 = vrot.slane %v1295, %v1323
    %v1325 = vlaneseq
    %v1326 = vshrl.u32 %v1325, 7
    %v1327 = vsub.s32 7, %v1326
    %v1328 = vrot.slane %v1295, %v1327
    %v1337 = vmul.f32 %v1291, %v1300
    %v1338 = vmul.f32 %v1290, %v1304
    %v1339 = vmul.f32 %v1289, %v1308
    %v1340 = vmul.f32 %v1288, %v1312
    %v1341 = vmul.f32 %v1287, %v1316
    %v1342 = vmul.f32 %v1286, %v1320
    %v1343 = vmul.f32 %v1285, %v1324
    %v1344 = vmul.f32 %v1284, %v1328
    %1345 = vset.pattern.permute.xlu0 8
    %1346 = vperm.xlu0 %1345, %v567
    %v1347 = vpop.permute.xlu0 %1346
    %v1349 = vmul.f32 %v1337, %v1347
    %v1350 = vmul.f32 %v1338, %v1347
    %v1351 = vmul.f32 %v1339, %v1347
    %v1352 = vmul.f32 %v1340, %v1347
    %v1353 = vmul.f32 %v1341, %v1347
    %v1354 = vmul.f32 %v1342, %v1347
    %v1355 = vmul.f32 %v1343, %v1347
    %v1356 = vmul.f32 %v1344, %v1347
    %v1357 = vadd.f32 %v1259, %v1349
    %v1358 = vadd.f32 %v1260, %v1350
    %v1359 = vadd.f32 %v1261, %v1351
    %v1360 = vadd.f32 %v1262, %v1352
    %v1361 = vadd.f32 %v1263, %v1353
    %v1362 = vadd.f32 %v1264, %v1354
    %v1363 = vadd.f32 %v1265, %v1355
    %v1364 = vadd.f32 %v1266, %v1356
    %1365 = vrot.lane.b32.xlu0 %v480, 9
    %v1366 = vpop.permute.xlu0 %1365
    %1367 = vrot.lane.b32.xlu0 %v481, 9
    %v1368 = vpop.permute.xlu0 %1367
    %1369 = vrot.lane.b32.xlu0 %v482, 9
    %v1370 = vpop.permute.xlu0 %1369
    %1371 = vrot.lane.b32.xlu0 %v483, 9
    %v1372 = vpop.permute.xlu0 %1371
    %1373 = vrot.lane.b32.xlu0 %v484, 9
    %v1374 = vpop.permute.xlu0 %1373
    %1375 = vrot.lane.b32.xlu0 %v485, 9
    %v1376 = vpop.permute.xlu0 %1375
    %1377 = vrot.lane.b32.xlu0 %v486, 9
    %v1378 = vpop.permute.xlu0 %1377
    %1379 = vrot.lane.b32.xlu0 %v487, 9
    %v1380 = vpop.permute.xlu0 %1379
    %vm1381 = vcmp.lt.s32.totalorder %v505, 9
    %v1382 = vsel %vm1381, %v1378, %v1380
    %v1383 = vsel %vm1381, %v1376, %v1378
    %v1384 = vsel %vm1381, %v1374, %v1376
    %v1385 = vsel %vm1381, %v1372, %v1374
    %v1386 = vsel %vm1381, %v1370, %v1372
    %v1387 = vsel %vm1381, %v1368, %v1370
    %v1388 = vsel %vm1381, %v1366, %v1368
    %v1389 = vsel %vm1381, %v1380, %v1366
    %s1390 = scalar_lea.vmem [#allocation6], 65
    %v1391 = vld [vmem:[%s1390] ss:$8 sm:$0xf]
    %v1392 = vld [vmem:[%s1390] ss:$8 sm:$0xf0]
    %v1393 = vor.u32 %v1391, %v1392
    %v1395 = vlaneseq
    %v1396 = vshrl.u32 %v1395, 7
    %v1397 = vsub.s32 0, %v1396
    %v1398 = vrot.slane %v1393, %v1397
    %v1399 = vlaneseq
    %v1400 = vshrl.u32 %v1399, 7
    %v1401 = vsub.s32 1, %v1400
    %v1402 = vrot.slane %v1393, %v1401
    %v1403 = vlaneseq
    %v1404 = vshrl.u32 %v1403, 7
    %v1405 = vsub.s32 2, %v1404
    %v1406 = vrot.slane %v1393, %v1405
    %v1407 = vlaneseq
    %v1408 = vshrl.u32 %v1407, 7
    %v1409 = vsub.s32 3, %v1408
    %v1410 = vrot.slane %v1393, %v1409
    %v1411 = vlaneseq
    %v1412 = vshrl.u32 %v1411, 7
    %v1413 = vsub.s32 4, %v1412
    %v1414 = vrot.slane %v1393, %v1413
    %v1415 = vlaneseq
    %v1416 = vshrl.u32 %v1415, 7
    %v1417 = vsub.s32 5, %v1416
    %v1418 = vrot.slane %v1393, %v1417
    %v1419 = vlaneseq
    %v1420 = vshrl.u32 %v1419, 7
    %v1421 = vsub.s32 6, %v1420
    %v1422 = vrot.slane %v1393, %v1421
    %v1423 = vlaneseq
    %v1424 = vshrl.u32 %v1423, 7
    %v1425 = vsub.s32 7, %v1424
    %v1426 = vrot.slane %v1393, %v1425
    %v1435 = vmul.f32 %v1389, %v1398
    %v1436 = vmul.f32 %v1388, %v1402
    %v1437 = vmul.f32 %v1387, %v1406
    %v1438 = vmul.f32 %v1386, %v1410
    %v1439 = vmul.f32 %v1385, %v1414
    %v1440 = vmul.f32 %v1384, %v1418
    %v1441 = vmul.f32 %v1383, %v1422
    %v1442 = vmul.f32 %v1382, %v1426
    %1443 = vset.pattern.permute.xlu0 9
    %1444 = vperm.xlu0 %1443, %v567
    %v1445 = vpop.permute.xlu0 %1444
    %v1447 = vmul.f32 %v1435, %v1445
    %v1448 = vmul.f32 %v1436, %v1445
    %v1449 = vmul.f32 %v1437, %v1445
    %v1450 = vmul.f32 %v1438, %v1445
    %v1451 = vmul.f32 %v1439, %v1445
    %v1452 = vmul.f32 %v1440, %v1445
    %v1453 = vmul.f32 %v1441, %v1445
    %v1454 = vmul.f32 %v1442, %v1445
    %v1455 = vadd.f32 %v1357, %v1447
    %v1456 = vadd.f32 %v1358, %v1448
    %v1457 = vadd.f32 %v1359, %v1449
    %v1458 = vadd.f32 %v1360, %v1450
    %v1459 = vadd.f32 %v1361, %v1451
    %v1460 = vadd.f32 %v1362, %v1452
    %v1461 = vadd.f32 %v1363, %v1453
    %v1462 = vadd.f32 %v1364, %v1454
    %1463 = vrot.lane.b32.xlu0 %v480, 8
    %v1464 = vpop.permute.xlu0 %1463
    %1465 = vrot.lane.b32.xlu0 %v481, 8
    %v1466 = vpop.permute.xlu0 %1465
    %1467 = vrot.lane.b32.xlu0 %v482, 8
    %v1468 = vpop.permute.xlu0 %1467
    %1469 = vrot.lane.b32.xlu0 %v483, 8
    %v1470 = vpop.permute.xlu0 %1469
    %1471 = vrot.lane.b32.xlu0 %v484, 8
    %v1472 = vpop.permute.xlu0 %1471
    %1473 = vrot.lane.b32.xlu0 %v485, 8
    %v1474 = vpop.permute.xlu0 %1473
    %1475 = vrot.lane.b32.xlu0 %v486, 8
    %v1476 = vpop.permute.xlu0 %1475
    %1477 = vrot.lane.b32.xlu0 %v487, 8
    %v1478 = vpop.permute.xlu0 %1477
    %vm1479 = vcmp.lt.s32.totalorder %v505, 8
    %v1480 = vsel %vm1479, %v1476, %v1478
    %v1481 = vsel %vm1479, %v1474, %v1476
    %v1482 = vsel %vm1479, %v1472, %v1474
    %v1483 = vsel %vm1479, %v1470, %v1472
    %v1484 = vsel %vm1479, %v1468, %v1470
    %v1485 = vsel %vm1479, %v1466, %v1468
    %v1486 = vsel %vm1479, %v1464, %v1466
    %v1487 = vsel %vm1479, %v1478, %v1464
    %s1488 = scalar_lea.vmem [#allocation6], 66
    %v1489 = vld [vmem:[%s1488] ss:$8 sm:$0xf]
    %v1490 = vld [vmem:[%s1488] ss:$8 sm:$0xf0]
    %v1491 = vor.u32 %v1489, %v1490
    %v1493 = vlaneseq
    %v1494 = vshrl.u32 %v1493, 7
    %v1495 = vsub.s32 0, %v1494
    %v1496 = vrot.slane %v1491, %v1495
    %v1497 = vlaneseq
    %v1498 = vshrl.u32 %v1497, 7
    %v1499 = vsub.s32 1, %v1498
    %v1500 = vrot.slane %v1491, %v1499
    %v1501 = vlaneseq
    %v1502 = vshrl.u32 %v1501, 7
    %v1503 = vsub.s32 2, %v1502
    %v1504 = vrot.slane %v1491, %v1503
    %v1505 = vlaneseq
    %v1506 = vshrl.u32 %v1505, 7
    %v1507 = vsub.s32 3, %v1506
    %v1508 = vrot.slane %v1491, %v1507
    %v1509 = vlaneseq
    %v1510 = vshrl.u32 %v1509, 7
    %v1511 = vsub.s32 4, %v1510
    %v1512 = vrot.slane %v1491, %v1511
    %v1513 = vlaneseq
    %v1514 = vshrl.u32 %v1513, 7
    %v1515 = vsub.s32 5, %v1514
    %v1516 = vrot.slane %v1491, %v1515
    %v1517 = vlaneseq
    %v1518 = vshrl.u32 %v1517, 7
    %v1519 = vsub.s32 6, %v1518
    %v1520 = vrot.slane %v1491, %v1519
    %v1521 = vlaneseq
    %v1522 = vshrl.u32 %v1521, 7
    %v1523 = vsub.s32 7, %v1522
    %v1524 = vrot.slane %v1491, %v1523
    %v1533 = vmul.f32 %v1487, %v1496
    %v1534 = vmul.f32 %v1486, %v1500
    %v1535 = vmul.f32 %v1485, %v1504
    %v1536 = vmul.f32 %v1484, %v1508
    %v1537 = vmul.f32 %v1483, %v1512
    %v1538 = vmul.f32 %v1482, %v1516
    %v1539 = vmul.f32 %v1481, %v1520
    %v1540 = vmul.f32 %v1480, %v1524
    %1541 = vset.pattern.permute.xlu0 10
    %1542 = vperm.xlu0 %1541, %v567
    %v1543 = vpop.permute.xlu0 %1542
    %v1545 = vmul.f32 %v1533, %v1543
    %v1546 = vmul.f32 %v1534, %v1543
    %v1547 = vmul.f32 %v1535, %v1543
    %v1548 = vmul.f32 %v1536, %v1543
    %v1549 = vmul.f32 %v1537, %v1543
    %v1550 = vmul.f32 %v1538, %v1543
    %v1551 = vmul.f32 %v1539, %v1543
    %v1552 = vmul.f32 %v1540, %v1543
    %v1553 = vadd.f32 %v1455, %v1545
    %v1554 = vadd.f32 %v1456, %v1546
    %v1555 = vadd.f32 %v1457, %v1547
    %v1556 = vadd.f32 %v1458, %v1548
    %v1557 = vadd.f32 %v1459, %v1549
    %v1558 = vadd.f32 %v1460, %v1550
    %v1559 = vadd.f32 %v1461, %v1551
    %v1560 = vadd.f32 %v1462, %v1552
    %1561 = vrot.lane.b32.xlu0 %v480, 7
    %v1562 = vpop.permute.xlu0 %1561
    %1563 = vrot.lane.b32.xlu0 %v481, 7
    %v1564 = vpop.permute.xlu0 %1563
    %1565 = vrot.lane.b32.xlu0 %v482, 7
    %v1566 = vpop.permute.xlu0 %1565
    %1567 = vrot.lane.b32.xlu0 %v483, 7
    %v1568 = vpop.permute.xlu0 %1567
    %1569 = vrot.lane.b32.xlu0 %v484, 7
    %v1570 = vpop.permute.xlu0 %1569
    %1571 = vrot.lane.b32.xlu0 %v485, 7
    %v1572 = vpop.permute.xlu0 %1571
    %1573 = vrot.lane.b32.xlu0 %v486, 7
    %v1574 = vpop.permute.xlu0 %1573
    %1575 = vrot.lane.b32.xlu0 %v487, 7
    %v1576 = vpop.permute.xlu0 %1575
    %vm1577 = vcmp.lt.s32.totalorder %v505, 7
    %v1578 = vsel %vm1577, %v1574, %v1576
    %v1579 = vsel %vm1577, %v1572, %v1574
    %v1580 = vsel %vm1577, %v1570, %v1572
    %v1581 = vsel %vm1577, %v1568, %v1570
    %v1582 = vsel %vm1577, %v1566, %v1568
    %v1583 = vsel %vm1577, %v1564, %v1566
    %v1584 = vsel %vm1577, %v1562, %v1564
    %v1585 = vsel %vm1577, %v1576, %v1562
    %s1586 = scalar_lea.vmem [#allocation6], 67
    %v1587 = vld [vmem:[%s1586] ss:$8 sm:$0xf]
    %v1588 = vld [vmem:[%s1586] ss:$8 sm:$0xf0]
    %v1589 = vor.u32 %v1587, %v1588
    %v1591 = vlaneseq
    %v1592 = vshrl.u32 %v1591, 7
    %v1593 = vsub.s32 0, %v1592
    %v1594 = vrot.slane %v1589, %v1593
    %v1595 = vlaneseq
    %v1596 = vshrl.u32 %v1595, 7
    %v1597 = vsub.s32 1, %v1596
    %v1598 = vrot.slane %v1589, %v1597
    %v1599 = vlaneseq
    %v1600 = vshrl.u32 %v1599, 7
    %v1601 = vsub.s32 2, %v1600
    %v1602 = vrot.slane %v1589, %v1601
    %v1603 = vlaneseq
    %v1604 = vshrl.u32 %v1603, 7
    %v1605 = vsub.s32 3, %v1604
    %v1606 = vrot.slane %v1589, %v1605
    %v1607 = vlaneseq
    %v1608 = vshrl.u32 %v1607, 7
    %v1609 = vsub.s32 4, %v1608
    %v1610 = vrot.slane %v1589, %v1609
    %v1611 = vlaneseq
    %v1612 = vshrl.u32 %v1611, 7
    %v1613 = vsub.s32 5, %v1612
    %v1614 = vrot.slane %v1589, %v1613
    %v1615 = vlaneseq
    %v1616 = vshrl.u32 %v1615, 7
    %v1617 = vsub.s32 6, %v1616
    %v1618 = vrot.slane %v1589, %v1617
    %v1619 = vlaneseq
    %v1620 = vshrl.u32 %v1619, 7
    %v1621 = vsub.s32 7, %v1620
    %v1622 = vrot.slane %v1589, %v1621
    %v1631 = vmul.f32 %v1585, %v1594
    %v1632 = vmul.f32 %v1584, %v1598
    %v1633 = vmul.f32 %v1583, %v1602
    %v1634 = vmul.f32 %v1582, %v1606
    %v1635 = vmul.f32 %v1581, %v1610
    %v1636 = vmul.f32 %v1580, %v1614
    %v1637 = vmul.f32 %v1579, %v1618
    %v1638 = vmul.f32 %v1578, %v1622
    %1639 = vset.pattern.permute.xlu0 11
    %1640 = vperm.xlu0 %1639, %v567
    %v1641 = vpop.permute.xlu0 %1640
    %v1643 = vmul.f32 %v1631, %v1641
    %v1644 = vmul.f32 %v1632, %v1641
    %v1645 = vmul.f32 %v1633, %v1641
    %v1646 = vmul.f32 %v1634, %v1641
    %v1647 = vmul.f32 %v1635, %v1641
    %v1648 = vmul.f32 %v1636, %v1641
    %v1649 = vmul.f32 %v1637, %v1641
    %v1650 = vmul.f32 %v1638, %v1641
    %v1651 = vadd.f32 %v1553, %v1643
    %v1652 = vadd.f32 %v1554, %v1644
    %v1653 = vadd.f32 %v1555, %v1645
    %v1654 = vadd.f32 %v1556, %v1646
    %v1655 = vadd.f32 %v1557, %v1647
    %v1656 = vadd.f32 %v1558, %v1648
    %v1657 = vadd.f32 %v1559, %v1649
    %v1658 = vadd.f32 %v1560, %v1650
    %1659 = vrot.lane.b32.xlu0 %v480, 1
    %v1660 = vpop.permute.xlu0 %1659
    %1661 = vrot.lane.b32.xlu0 %v481, 1
    %v1662 = vpop.permute.xlu0 %1661
    %1663 = vrot.lane.b32.xlu0 %v482, 1
    %v1664 = vpop.permute.xlu0 %1663
    %1665 = vrot.lane.b32.xlu0 %v483, 1
    %v1666 = vpop.permute.xlu0 %1665
    %1667 = vrot.lane.b32.xlu0 %v484, 1
    %v1668 = vpop.permute.xlu0 %1667
    %1669 = vrot.lane.b32.xlu0 %v485, 1
    %v1670 = vpop.permute.xlu0 %1669
    %1671 = vrot.lane.b32.xlu0 %v486, 1
    %v1672 = vpop.permute.xlu0 %1671
    %1673 = vrot.lane.b32.xlu0 %v487, 1
    %v1674 = vpop.permute.xlu0 %1673
    %vm1675 = vcmp.lt.s32.totalorder %v505, 1
    %v1676 = vsel %vm1675, %v1672, %v1674
    %v1677 = vsel %vm1675, %v1670, %v1672
    %v1678 = vsel %vm1675, %v1668, %v1670
    %v1679 = vsel %vm1675, %v1666, %v1668
    %v1680 = vsel %vm1675, %v1664, %v1666
    %v1681 = vsel %vm1675, %v1662, %v1664
    %v1682 = vsel %vm1675, %v1660, %v1662
    %v1683 = vsel %vm1675, %v1674, %v1660
    %s1684 = scalar_lea.vmem [#allocation6], 68
    %v1685 = vld [vmem:[%s1684] ss:$8 sm:$0xf]
    %v1686 = vld [vmem:[%s1684] ss:$8 sm:$0xf0]
    %v1687 = vor.u32 %v1685, %v1686
    %v1689 = vlaneseq
    %v1690 = vshrl.u32 %v1689, 7
    %v1691 = vsub.s32 0, %v1690
    %v1692 = vrot.slane %v1687, %v1691
    %v1693 = vlaneseq
    %v1694 = vshrl.u32 %v1693, 7
    %v1695 = vsub.s32 1, %v1694
    %v1696 = vrot.slane %v1687, %v1695
    %v1697 = vlaneseq
    %v1698 = vshrl.u32 %v1697, 7
    %v1699 = vsub.s32 2, %v1698
    %v1700 = vrot.slane %v1687, %v1699
    %v1701 = vlaneseq
    %v1702 = vshrl.u32 %v1701, 7
    %v1703 = vsub.s32 3, %v1702
    %v1704 = vrot.slane %v1687, %v1703
    %v1705 = vlaneseq
    %v1706 = vshrl.u32 %v1705, 7
    %v1707 = vsub.s32 4, %v1706
    %v1708 = vrot.slane %v1687, %v1707
    %v1709 = vlaneseq
    %v1710 = vshrl.u32 %v1709, 7
    %v1711 = vsub.s32 5, %v1710
    %v1712 = vrot.slane %v1687, %v1711
    %v1713 = vlaneseq
    %v1714 = vshrl.u32 %v1713, 7
    %v1715 = vsub.s32 6, %v1714
    %v1716 = vrot.slane %v1687, %v1715
    %v1717 = vlaneseq
    %v1718 = vshrl.u32 %v1717, 7
    %v1719 = vsub.s32 7, %v1718
    %v1720 = vrot.slane %v1687, %v1719
    %v1729 = vmul.f32 %v1683, %v1692
    %v1730 = vmul.f32 %v1682, %v1696
    %v1731 = vmul.f32 %v1681, %v1700
    %v1732 = vmul.f32 %v1680, %v1704
    %v1733 = vmul.f32 %v1679, %v1708
    %v1734 = vmul.f32 %v1678, %v1712
    %v1735 = vmul.f32 %v1677, %v1716
    %v1736 = vmul.f32 %v1676, %v1720
    %1737 = vset.pattern.permute.xlu0 12
    %1738 = vperm.xlu0 %1737, %v567
    %v1739 = vpop.permute.xlu0 %1738
    %v1741 = vmul.f32 %v1729, %v1739
    %v1742 = vmul.f32 %v1730, %v1739
    %v1743 = vmul.f32 %v1731, %v1739
    %v1744 = vmul.f32 %v1732, %v1739
    %v1745 = vmul.f32 %v1733, %v1739
    %v1746 = vmul.f32 %v1734, %v1739
    %v1747 = vmul.f32 %v1735, %v1739
    %v1748 = vmul.f32 %v1736, %v1739
    %v1749 = vadd.f32 %v1651, %v1741
    %v1750 = vadd.f32 %v1652, %v1742
    %v1751 = vadd.f32 %v1653, %v1743
    %v1752 = vadd.f32 %v1654, %v1744
    %v1753 = vadd.f32 %v1655, %v1745
    %v1754 = vadd.f32 %v1656, %v1746
    %v1755 = vadd.f32 %v1657, %v1747
    %v1756 = vadd.f32 %v1658, %v1748
    %s1757 = scalar_lea.vmem [#allocation6], 69
    %v1758 = vld [vmem:[%s1757] ss:$8 sm:$0xf]
    %v1759 = vld [vmem:[%s1757] ss:$8 sm:$0xf0]
    %v1760 = vor.u32 %v1758, %v1759
    %v1762 = vlaneseq
    %v1763 = vshrl.u32 %v1762, 7
    %v1764 = vsub.s32 0, %v1763
    %v1765 = vrot.slane %v1760, %v1764
    %v1766 = vlaneseq
    %v1767 = vshrl.u32 %v1766, 7
    %v1768 = vsub.s32 1, %v1767
    %v1769 = vrot.slane %v1760, %v1768
    %v1770 = vlaneseq
    %v1771 = vshrl.u32 %v1770, 7
    %v1772 = vsub.s32 2, %v1771
    %v1773 = vrot.slane %v1760, %v1772
    %v1774 = vlaneseq
    %v1775 = vshrl.u32 %v1774, 7
    %v1776 = vsub.s32 3, %v1775
    %v1777 = vrot.slane %v1760, %v1776
    %v1778 = vlaneseq
    %v1779 = vshrl.u32 %v1778, 7
    %v1780 = vsub.s32 4, %v1779
    %v1781 = vrot.slane %v1760, %v1780
    %v1782 = vlaneseq
    %v1783 = vshrl.u32 %v1782, 7
    %v1784 = vsub.s32 5, %v1783
    %v1785 = vrot.slane %v1760, %v1784
    %v1786 = vlaneseq
    %v1787 = vshrl.u32 %v1786, 7
    %v1788 = vsub.s32 6, %v1787
    %v1789 = vrot.slane %v1760, %v1788
    %v1790 = vlaneseq
    %v1791 = vshrl.u32 %v1790, 7
    %v1792 = vsub.s32 7, %v1791
    %v1793 = vrot.slane %v1760, %v1792
    %v1802 = vmul.f32 %v480, %v1765
    %v1803 = vmul.f32 %v481, %v1769
    %v1804 = vmul.f32 %v482, %v1773
    %v1805 = vmul.f32 %v483, %v1777
    %v1806 = vmul.f32 %v484, %v1781
    %v1807 = vmul.f32 %v485, %v1785
    %v1808 = vmul.f32 %v486, %v1789
    %v1809 = vmul.f32 %v487, %v1793
    %1810 = vset.pattern.permute.xlu0 13
    %1811 = vperm.xlu0 %1810, %v567
    %v1812 = vpop.permute.xlu0 %1811
    %v1814 = vmul.f32 %v1802, %v1812
    %v1815 = vmul.f32 %v1803, %v1812
    %v1816 = vmul.f32 %v1804, %v1812
    %v1817 = vmul.f32 %v1805, %v1812
    %v1818 = vmul.f32 %v1806, %v1812
    %v1819 = vmul.f32 %v1807, %v1812
    %v1820 = vmul.f32 %v1808, %v1812
    %v1821 = vmul.f32 %v1809, %v1812
    %v1822 = vadd.f32 %v1749, %v1814
    %v1823 = vadd.f32 %v1750, %v1815
    %v1824 = vadd.f32 %v1751, %v1816
    %v1825 = vadd.f32 %v1752, %v1817
    %v1826 = vadd.f32 %v1753, %v1818
    %v1827 = vadd.f32 %v1754, %v1819
    %v1828 = vadd.f32 %v1755, %v1820
    %v1829 = vadd.f32 %v1756, %v1821
    %1830 = vrot.lane.b32.xlu0 %v480, 127
    %v1831 = vpop.permute.xlu0 %1830
    %1832 = vrot.lane.b32.xlu0 %v481, 127
    %v1833 = vpop.permute.xlu0 %1832
    %1834 = vrot.lane.b32.xlu0 %v482, 127
    %v1835 = vpop.permute.xlu0 %1834
    %1836 = vrot.lane.b32.xlu0 %v483, 127
    %v1837 = vpop.permute.xlu0 %1836
    %1838 = vrot.lane.b32.xlu0 %v484, 127
    %v1839 = vpop.permute.xlu0 %1838
    %1840 = vrot.lane.b32.xlu0 %v485, 127
    %v1841 = vpop.permute.xlu0 %1840
    %1842 = vrot.lane.b32.xlu0 %v486, 127
    %v1843 = vpop.permute.xlu0 %1842
    %1844 = vrot.lane.b32.xlu0 %v487, 127
    %v1845 = vpop.permute.xlu0 %1844
    %vm1846 = vcmp.lt.s32.totalorder %v505, 127
    %v1847 = vsel %vm1846, %v1843, %v1845
    %v1848 = vsel %vm1846, %v1841, %v1843
    %v1849 = vsel %vm1846, %v1839, %v1841
    %v1850 = vsel %vm1846, %v1837, %v1839
    %v1851 = vsel %vm1846, %v1835, %v1837
    %v1852 = vsel %vm1846, %v1833, %v1835
    %v1853 = vsel %vm1846, %v1831, %v1833
    %v1854 = vsel %vm1846, %v1845, %v1831
    %s1855 = scalar_lea.vmem [#allocation6], 70
    %v1856 = vld [vmem:[%s1855] ss:$8 sm:$0xf]
    %v1857 = vld [vmem:[%s1855] ss:$8 sm:$0xf0]
    %v1858 = vor.u32 %v1856, %v1857
    %v1860 = vlaneseq
    %v1861 = vshrl.u32 %v1860, 7
    %v1862 = vsub.s32 0, %v1861
    %v1863 = vrot.slane %v1858, %v1862
    %v1864 = vlaneseq
    %v1865 = vshrl.u32 %v1864, 7
    %v1866 = vsub.s32 1, %v1865
    %v1867 = vrot.slane %v1858, %v1866
    %v1868 = vlaneseq
    %v1869 = vshrl.u32 %v1868, 7
    %v1870 = vsub.s32 2, %v1869
    %v1871 = vrot.slane %v1858, %v1870
    %v1872 = vlaneseq
    %v1873 = vshrl.u32 %v1872, 7
    %v1874 = vsub.s32 3, %v1873
    %v1875 = vrot.slane %v1858, %v1874
    %v1876 = vlaneseq
    %v1877 = vshrl.u32 %v1876, 7
    %v1878 = vsub.s32 4, %v1877
    %v1879 = vrot.slane %v1858, %v1878
    %v1880 = vlaneseq
    %v1881 = vshrl.u32 %v1880, 7
    %v1882 = vsub.s32 5, %v1881
    %v1883 = vrot.slane %v1858, %v1882
    %v1884 = vlaneseq
    %v1885 = vshrl.u32 %v1884, 7
    %v1886 = vsub.s32 6, %v1885
    %v1887 = vrot.slane %v1858, %v1886
    %v1888 = vlaneseq
    %v1889 = vshrl.u32 %v1888, 7
    %v1890 = vsub.s32 7, %v1889
    %v1891 = vrot.slane %v1858, %v1890
    %v1900 = vmul.f32 %v1853, %v1863
    %v1901 = vmul.f32 %v1852, %v1867
    %v1902 = vmul.f32 %v1851, %v1871
    %v1903 = vmul.f32 %v1850, %v1875
    %v1904 = vmul.f32 %v1849, %v1879
    %v1905 = vmul.f32 %v1848, %v1883
    %v1906 = vmul.f32 %v1847, %v1887
    %v1907 = vmul.f32 %v1854, %v1891
    %1908 = vset.pattern.permute.xlu0 14
    %1909 = vperm.xlu0 %1908, %v567
    %v1910 = vpop.permute.xlu0 %1909
    %v1912 = vmul.f32 %v1900, %v1910
    %v1913 = vmul.f32 %v1901, %v1910
    %v1914 = vmul.f32 %v1902, %v1910
    %v1915 = vmul.f32 %v1903, %v1910
    %v1916 = vmul.f32 %v1904, %v1910
    %v1917 = vmul.f32 %v1905, %v1910
    %v1918 = vmul.f32 %v1906, %v1910
    %v1919 = vmul.f32 %v1907, %v1910
    %v1920 = vadd.f32 %v1822, %v1912
    %v1921 = vadd.f32 %v1823, %v1913
    %v1922 = vadd.f32 %v1824, %v1914
    %v1923 = vadd.f32 %v1825, %v1915
    %v1924 = vadd.f32 %v1826, %v1916
    %v1925 = vadd.f32 %v1827, %v1917
    %v1926 = vadd.f32 %v1828, %v1918
    %v1927 = vadd.f32 %v1829, %v1919
    %1928 = vrot.lane.b32.xlu0 %v480, 121
    %v1929 = vpop.permute.xlu0 %1928
    %1930 = vrot.lane.b32.xlu0 %v481, 121
    %v1931 = vpop.permute.xlu0 %1930
    %1932 = vrot.lane.b32.xlu0 %v482, 121
    %v1933 = vpop.permute.xlu0 %1932
    %1934 = vrot.lane.b32.xlu0 %v483, 121
    %v1935 = vpop.permute.xlu0 %1934
    %1936 = vrot.lane.b32.xlu0 %v484, 121
    %v1937 = vpop.permute.xlu0 %1936
    %1938 = vrot.lane.b32.xlu0 %v485, 121
    %v1939 = vpop.permute.xlu0 %1938
    %1940 = vrot.lane.b32.xlu0 %v486, 121
    %v1941 = vpop.permute.xlu0 %1940
    %1942 = vrot.lane.b32.xlu0 %v487, 121
    %v1943 = vpop.permute.xlu0 %1942
    %vm1944 = vcmp.lt.s32.totalorder %v505, 121
    %v1945 = vsel %vm1944, %v1941, %v1943
    %v1946 = vsel %vm1944, %v1939, %v1941
    %v1947 = vsel %vm1944, %v1937, %v1939
    %v1948 = vsel %vm1944, %v1935, %v1937
    %v1949 = vsel %vm1944, %v1933, %v1935
    %v1950 = vsel %vm1944, %v1931, %v1933
    %v1951 = vsel %vm1944, %v1929, %v1931
    %v1952 = vsel %vm1944, %v1943, %v1929
    %s1953 = scalar_lea.vmem [#allocation6], 71
    %v1954 = vld [vmem:[%s1953] ss:$8 sm:$0xf]
    %v1955 = vld [vmem:[%s1953] ss:$8 sm:$0xf0]
    %v1956 = vor.u32 %v1954, %v1955
    %v1958 = vlaneseq
    %v1959 = vshrl.u32 %v1958, 7
    %v1960 = vsub.s32 0, %v1959
    %v1961 = vrot.slane %v1956, %v1960
    %v1962 = vlaneseq
    %v1963 = vshrl.u32 %v1962, 7
    %v1964 = vsub.s32 1, %v1963
    %v1965 = vrot.slane %v1956, %v1964
    %v1966 = vlaneseq
    %v1967 = vshrl.u32 %v1966, 7
    %v1968 = vsub.s32 2, %v1967
    %v1969 = vrot.slane %v1956, %v1968
    %v1970 = vlaneseq
    %v1971 = vshrl.u32 %v1970, 7
    %v1972 = vsub.s32 3, %v1971
    %v1973 = vrot.slane %v1956, %v1972
    %v1974 = vlaneseq
    %v1975 = vshrl.u32 %v1974, 7
    %v1976 = vsub.s32 4, %v1975
    %v1977 = vrot.slane %v1956, %v1976
    %v1978 = vlaneseq
    %v1979 = vshrl.u32 %v1978, 7
    %v1980 = vsub.s32 5, %v1979
    %v1981 = vrot.slane %v1956, %v1980
    %v1982 = vlaneseq
    %v1983 = vshrl.u32 %v1982, 7
    %v1984 = vsub.s32 6, %v1983
    %v1985 = vrot.slane %v1956, %v1984
    %v1986 = vlaneseq
    %v1987 = vshrl.u32 %v1986, 7
    %v1988 = vsub.s32 7, %v1987
    %v1989 = vrot.slane %v1956, %v1988
    %v1998 = vmul.f32 %v1951, %v1961
    %v1999 = vmul.f32 %v1950, %v1965
    %v2000 = vmul.f32 %v1949, %v1969
    %v2001 = vmul.f32 %v1948, %v1973
    %v2002 = vmul.f32 %v1947, %v1977
    %v2003 = vmul.f32 %v1946, %v1981
    %v2004 = vmul.f32 %v1945, %v1985
    %v2005 = vmul.f32 %v1952, %v1989
    %2006 = vset.pattern.permute.xlu0 15
    %2007 = vperm.xlu0 %2006, %v567
    %v2008 = vpop.permute.xlu0 %2007
    %v2010 = vmul.f32 %v1998, %v2008
    %v2011 = vmul.f32 %v1999, %v2008
    %v2012 = vmul.f32 %v2000, %v2008
    %v2013 = vmul.f32 %v2001, %v2008
    %v2014 = vmul.f32 %v2002, %v2008
    %v2015 = vmul.f32 %v2003, %v2008
    %v2016 = vmul.f32 %v2004, %v2008
    %v2017 = vmul.f32 %v2005, %v2008
    %v2018 = vadd.f32 %v1920, %v2010
    %v2019 = vadd.f32 %v1921, %v2011
    %v2020 = vadd.f32 %v1922, %v2012
    %v2021 = vadd.f32 %v1923, %v2013
    %v2022 = vadd.f32 %v1924, %v2014
    %v2023 = vadd.f32 %v1925, %v2015
    %v2024 = vadd.f32 %v1926, %v2016
    %v2025 = vadd.f32 %v1927, %v2017
    %2026 = vrot.lane.b32.xlu0 %v480, 120
    %v2027 = vpop.permute.xlu0 %2026
    %2028 = vrot.lane.b32.xlu0 %v481, 120
    %v2029 = vpop.permute.xlu0 %2028
    %2030 = vrot.lane.b32.xlu0 %v482, 120
    %v2031 = vpop.permute.xlu0 %2030
    %2032 = vrot.lane.b32.xlu0 %v483, 120
    %v2033 = vpop.permute.xlu0 %2032
    %2034 = vrot.lane.b32.xlu0 %v484, 120
    %v2035 = vpop.permute.xlu0 %2034
    %2036 = vrot.lane.b32.xlu0 %v485, 120
    %v2037 = vpop.permute.xlu0 %2036
    %2038 = vrot.lane.b32.xlu0 %v486, 120
    %v2039 = vpop.permute.xlu0 %2038
    %2040 = vrot.lane.b32.xlu0 %v487, 120
    %v2041 = vpop.permute.xlu0 %2040
    %vm2042 = vcmp.lt.s32.totalorder %v505, 120
    %v2043 = vsel %vm2042, %v2039, %v2041
    %v2044 = vsel %vm2042, %v2037, %v2039
    %v2045 = vsel %vm2042, %v2035, %v2037
    %v2046 = vsel %vm2042, %v2033, %v2035
    %v2047 = vsel %vm2042, %v2031, %v2033
    %v2048 = vsel %vm2042, %v2029, %v2031
    %v2049 = vsel %vm2042, %v2027, %v2029
    %v2050 = vsel %vm2042, %v2041, %v2027
    %s2051 = scalar_lea.vmem [#allocation6], 128
    %v2052 = vld [vmem:[%s2051] ss:$8 sm:$0xf]
    %v2053 = vld [vmem:[%s2051] ss:$8 sm:$0xf0]
    %v2054 = vor.u32 %v2052, %v2053
    %v2056 = vlaneseq
    %v2057 = vshrl.u32 %v2056, 7
    %v2058 = vsub.s32 0, %v2057
    %v2059 = vrot.slane %v2054, %v2058
    %v2060 = vlaneseq
    %v2061 = vshrl.u32 %v2060, 7
    %v2062 = vsub.s32 1, %v2061
    %v2063 = vrot.slane %v2054, %v2062
    %v2064 = vlaneseq
    %v2065 = vshrl.u32 %v2064, 7
    %v2066 = vsub.s32 2, %v2065
    %v2067 = vrot.slane %v2054, %v2066
    %v2068 = vlaneseq
    %v2069 = vshrl.u32 %v2068, 7
    %v2070 = vsub.s32 3, %v2069
    %v2071 = vrot.slane %v2054, %v2070
    %v2072 = vlaneseq
    %v2073 = vshrl.u32 %v2072, 7
    %v2074 = vsub.s32 4, %v2073
    %v2075 = vrot.slane %v2054, %v2074
    %v2076 = vlaneseq
    %v2077 = vshrl.u32 %v2076, 7
    %v2078 = vsub.s32 5, %v2077
    %v2079 = vrot.slane %v2054, %v2078
    %v2080 = vlaneseq
    %v2081 = vshrl.u32 %v2080, 7
    %v2082 = vsub.s32 6, %v2081
    %v2083 = vrot.slane %v2054, %v2082
    %v2084 = vlaneseq
    %v2085 = vshrl.u32 %v2084, 7
    %v2086 = vsub.s32 7, %v2085
    %v2087 = vrot.slane %v2054, %v2086
    %v2096 = vmul.f32 %v2049, %v2059
    %v2097 = vmul.f32 %v2048, %v2063
    %v2098 = vmul.f32 %v2047, %v2067
    %v2099 = vmul.f32 %v2046, %v2071
    %v2100 = vmul.f32 %v2045, %v2075
    %v2101 = vmul.f32 %v2044, %v2079
    %v2102 = vmul.f32 %v2043, %v2083
    %v2103 = vmul.f32 %v2050, %v2087
    %2104 = vset.pattern.permute.xlu0 16
    %2105 = vperm.xlu0 %2104, %v567
    %v2106 = vpop.permute.xlu0 %2105
    %v2108 = vmul.f32 %v2096, %v2106
    %v2109 = vmul.f32 %v2097, %v2106
    %v2110 = vmul.f32 %v2098, %v2106
    %v2111 = vmul.f32 %v2099, %v2106
    %v2112 = vmul.f32 %v2100, %v2106
    %v2113 = vmul.f32 %v2101, %v2106
    %v2114 = vmul.f32 %v2102, %v2106
    %v2115 = vmul.f32 %v2103, %v2106
    %v2116 = vadd.f32 %v2018, %v2108
    %v2117 = vadd.f32 %v2019, %v2109
    %v2118 = vadd.f32 %v2020, %v2110
    %v2119 = vadd.f32 %v2021, %v2111
    %v2120 = vadd.f32 %v2022, %v2112
    %v2121 = vadd.f32 %v2023, %v2113
    %v2122 = vadd.f32 %v2024, %v2114
    %v2123 = vadd.f32 %v2025, %v2115
    %2124 = vrot.lane.b32.xlu0 %v480, 119
    %v2125 = vpop.permute.xlu0 %2124
    %2126 = vrot.lane.b32.xlu0 %v481, 119
    %v2127 = vpop.permute.xlu0 %2126
    %2128 = vrot.lane.b32.xlu0 %v482, 119
    %v2129 = vpop.permute.xlu0 %2128
    %2130 = vrot.lane.b32.xlu0 %v483, 119
    %v2131 = vpop.permute.xlu0 %2130
    %2132 = vrot.lane.b32.xlu0 %v484, 119
    %v2133 = vpop.permute.xlu0 %2132
    %2134 = vrot.lane.b32.xlu0 %v485, 119
    %v2135 = vpop.permute.xlu0 %2134
    %2136 = vrot.lane.b32.xlu0 %v486, 119
    %v2137 = vpop.permute.xlu0 %2136
    %2138 = vrot.lane.b32.xlu0 %v487, 119
    %v2139 = vpop.permute.xlu0 %2138
    %vm2140 = vcmp.lt.s32.totalorder %v505, 119
    %v2141 = vsel %vm2140, %v2137, %v2139
    %v2142 = vsel %vm2140, %v2135, %v2137
    %v2143 = vsel %vm2140, %v2133, %v2135
    %v2144 = vsel %vm2140, %v2131, %v2133
    %v2145 = vsel %vm2140, %v2129, %v2131
    %v2146 = vsel %vm2140, %v2127, %v2129
    %v2147 = vsel %vm2140, %v2125, %v2127
    %v2148 = vsel %vm2140, %v2139, %v2125
    %s2149 = scalar_lea.vmem [#allocation6], 129
    %v2150 = vld [vmem:[%s2149] ss:$8 sm:$0xf]
    %v2151 = vld [vmem:[%s2149] ss:$8 sm:$0xf0]
    %v2152 = vor.u32 %v2150, %v2151
    %v2154 = vlaneseq
    %v2155 = vshrl.u32 %v2154, 7
    %v2156 = vsub.s32 0, %v2155
    %v2157 = vrot.slane %v2152, %v2156
    %v2158 = vlaneseq
    %v2159 = vshrl.u32 %v2158, 7
    %v2160 = vsub.s32 1, %v2159
    %v2161 = vrot.slane %v2152, %v2160
    %v2162 = vlaneseq
    %v2163 = vshrl.u32 %v2162, 7
    %v2164 = vsub.s32 2, %v2163
    %v2165 = vrot.slane %v2152, %v2164
    %v2166 = vlaneseq
    %v2167 = vshrl.u32 %v2166, 7
    %v2168 = vsub.s32 3, %v2167
    %v2169 = vrot.slane %v2152, %v2168
    %v2170 = vlaneseq
    %v2171 = vshrl.u32 %v2170, 7
    %v2172 = vsub.s32 4, %v2171
    %v2173 = vrot.slane %v2152, %v2172
    %v2174 = vlaneseq
    %v2175 = vshrl.u32 %v2174, 7
    %v2176 = vsub.s32 5, %v2175
    %v2177 = vrot.slane %v2152, %v2176
    %v2178 = vlaneseq
    %v2179 = vshrl.u32 %v2178, 7
    %v2180 = vsub.s32 6, %v2179
    %v2181 = vrot.slane %v2152, %v2180
    %v2182 = vlaneseq
    %v2183 = vshrl.u32 %v2182, 7
    %v2184 = vsub.s32 7, %v2183
    %v2185 = vrot.slane %v2152, %v2184
    %v2194 = vmul.f32 %v2147, %v2157
    %v2195 = vmul.f32 %v2146, %v2161
    %v2196 = vmul.f32 %v2145, %v2165
    %v2197 = vmul.f32 %v2144, %v2169
    %v2198 = vmul.f32 %v2143, %v2173
    %v2199 = vmul.f32 %v2142, %v2177
    %v2200 = vmul.f32 %v2141, %v2181
    %v2201 = vmul.f32 %v2148, %v2185
    %2202 = vset.pattern.permute.xlu0 17
    %2203 = vperm.xlu0 %2202, %v567
    %v2204 = vpop.permute.xlu0 %2203
    %v2206 = vmul.f32 %v2194, %v2204
    %v2207 = vmul.f32 %v2195, %v2204
    %v2208 = vmul.f32 %v2196, %v2204
    %v2209 = vmul.f32 %v2197, %v2204
    %v2210 = vmul.f32 %v2198, %v2204
    %v2211 = vmul.f32 %v2199, %v2204
    %v2212 = vmul.f32 %v2200, %v2204
    %v2213 = vmul.f32 %v2201, %v2204
    %v2214 = vadd.f32 %v2116, %v2206
    %v2215 = vadd.f32 %v2117, %v2207
    %v2216 = vadd.f32 %v2118, %v2208
    %v2217 = vadd.f32 %v2119, %v2209
    %v2218 = vadd.f32 %v2120, %v2210
    %v2219 = vadd.f32 %v2121, %v2211
    %v2220 = vadd.f32 %v2122, %v2212
    %v2221 = vadd.f32 %v2123, %v2213
    %s2222 = scalar_lea.vmem [#allocation6], 130
    %v2223 = vld [vmem:[%s2222] ss:$8 sm:$0xf]
    %v2224 = vld [vmem:[%s2222] ss:$8 sm:$0xf0]
    %v2225 = vor.u32 %v2223, %v2224
    %v2227 = vlaneseq
    %v2228 = vshrl.u32 %v2227, 7
    %v2229 = vsub.s32 0, %v2228
    %v2230 = vrot.slane %v2225, %v2229
    %v2231 = vlaneseq
    %v2232 = vshrl.u32 %v2231, 7
    %v2233 = vsub.s32 1, %v2232
    %v2234 = vrot.slane %v2225, %v2233
    %v2235 = vlaneseq
    %v2236 = vshrl.u32 %v2235, 7
    %v2237 = vsub.s32 2, %v2236
    %v2238 = vrot.slane %v2225, %v2237
    %v2239 = vlaneseq
    %v2240 = vshrl.u32 %v2239, 7
    %v2241 = vsub.s32 3, %v2240
    %v2242 = vrot.slane %v2225, %v2241
    %v2243 = vlaneseq
    %v2244 = vshrl.u32 %v2243, 7
    %v2245 = vsub.s32 4, %v2244
    %v2246 = vrot.slane %v2225, %v2245
    %v2247 = vlaneseq
    %v2248 = vshrl.u32 %v2247, 7
    %v2249 = vsub.s32 5, %v2248
    %v2250 = vrot.slane %v2225, %v2249
    %v2251 = vlaneseq
    %v2252 = vshrl.u32 %v2251, 7
    %v2253 = vsub.s32 6, %v2252
    %v2254 = vrot.slane %v2225, %v2253
    %v2255 = vlaneseq
    %v2256 = vshrl.u32 %v2255, 7
    %v2257 = vsub.s32 7, %v2256
    %v2258 = vrot.slane %v2225, %v2257
    %v2267 = vmul.f32 %v513, %v2230
    %v2268 = vmul.f32 %v512, %v2234
    %v2269 = vmul.f32 %v511, %v2238
    %v2270 = vmul.f32 %v510, %v2242
    %v2271 = vmul.f32 %v509, %v2246
    %v2272 = vmul.f32 %v508, %v2250
    %v2273 = vmul.f32 %v507, %v2254
    %v2274 = vmul.f32 %v514, %v2258
    %2275 = vset.pattern.permute.xlu0 18
    %2276 = vperm.xlu0 %2275, %v567
    %v2277 = vpop.permute.xlu0 %2276
    %v2279 = vmul.f32 %v2267, %v2277
    %v2280 = vmul.f32 %v2268, %v2277
    %v2281 = vmul.f32 %v2269, %v2277
    %v2282 = vmul.f32 %v2270, %v2277
    %v2283 = vmul.f32 %v2271, %v2277
    %v2284 = vmul.f32 %v2272, %v2277
    %v2285 = vmul.f32 %v2273, %v2277
    %v2286 = vmul.f32 %v2274, %v2277
    %v2287 = vadd.f32 %v2214, %v2279
    %v2288 = vadd.f32 %v2215, %v2280
    %v2289 = vadd.f32 %v2216, %v2281
    %v2290 = vadd.f32 %v2217, %v2282
    %v2291 = vadd.f32 %v2218, %v2283
    %v2292 = vadd.f32 %v2219, %v2284
    %v2293 = vadd.f32 %v2220, %v2285
    %v2294 = vadd.f32 %v2221, %v2286
    %s2295 = scalar_lea.vmem [#allocation6], 131
    %v2296 = vld [vmem:[%s2295] ss:$8 sm:$0xf]
    %v2297 = vld [vmem:[%s2295] ss:$8 sm:$0xf0]
    %v2298 = vor.u32 %v2296, %v2297
    %v2300 = vlaneseq
    %v2301 = vshrl.u32 %v2300, 7
    %v2302 = vsub.s32 0, %v2301
    %v2303 = vrot.slane %v2298, %v2302
    %v2304 = vlaneseq
    %v2305 = vshrl.u32 %v2304, 7
    %v2306 = vsub.s32 1, %v2305
    %v2307 = vrot.slane %v2298, %v2306
    %v2308 = vlaneseq
    %v2309 = vshrl.u32 %v2308, 7
    %v2310 = vsub.s32 2, %v2309
    %v2311 = vrot.slane %v2298, %v2310
    %v2312 = vlaneseq
    %v2313 = vshrl.u32 %v2312, 7
    %v2314 = vsub.s32 3, %v2313
    %v2315 = vrot.slane %v2298, %v2314
    %v2316 = vlaneseq
    %v2317 = vshrl.u32 %v2316, 7
    %v2318 = vsub.s32 4, %v2317
    %v2319 = vrot.slane %v2298, %v2318
    %v2320 = vlaneseq
    %v2321 = vshrl.u32 %v2320, 7
    %v2322 = vsub.s32 5, %v2321
    %v2323 = vrot.slane %v2298, %v2322
    %v2324 = vlaneseq
    %v2325 = vshrl.u32 %v2324, 7
    %v2326 = vsub.s32 6, %v2325
    %v2327 = vrot.slane %v2298, %v2326
    %v2328 = vlaneseq
    %v2329 = vshrl.u32 %v2328, 7
    %v2330 = vsub.s32 7, %v2329
    %v2331 = vrot.slane %v2298, %v2330
    %v2340 = vmul.f32 %v604, %v2303
    %v2341 = vmul.f32 %v603, %v2307
    %v2342 = vmul.f32 %v602, %v2311
    %v2343 = vmul.f32 %v601, %v2315
    %v2344 = vmul.f32 %v600, %v2319
    %v2345 = vmul.f32 %v599, %v2323
    %v2346 = vmul.f32 %v598, %v2327
    %v2347 = vmul.f32 %v605, %v2331
    %2348 = vset.pattern.permute.xlu0 19
    %2349 = vperm.xlu0 %2348, %v567
    %v2350 = vpop.permute.xlu0 %2349
    %v2352 = vmul.f32 %v2340, %v2350
    %v2353 = vmul.f32 %v2341, %v2350
    %v2354 = vmul.f32 %v2342, %v2350
    %v2355 = vmul.f32 %v2343, %v2350
    %v2356 = vmul.f32 %v2344, %v2350
    %v2357 = vmul.f32 %v2345, %v2350
    %v2358 = vmul.f32 %v2346, %v2350
    %v2359 = vmul.f32 %v2347, %v2350
    %v2360 = vadd.f32 %v2287, %v2352
    %v2361 = vadd.f32 %v2288, %v2353
    %v2362 = vadd.f32 %v2289, %v2354
    %v2363 = vadd.f32 %v2290, %v2355
    %v2364 = vadd.f32 %v2291, %v2356
    %v2365 = vadd.f32 %v2292, %v2357
    %v2366 = vadd.f32 %v2293, %v2358
    %v2367 = vadd.f32 %v2294, %v2359
    %s2368 = scalar_lea.vmem [#allocation6], 132
    %v2369 = vld [vmem:[%s2368] ss:$8 sm:$0xf]
    %v2370 = vld [vmem:[%s2368] ss:$8 sm:$0xf0]
    %v2371 = vor.u32 %v2369, %v2370
    %v2373 = vlaneseq
    %v2374 = vshrl.u32 %v2373, 7
    %v2375 = vsub.s32 0, %v2374
    %v2376 = vrot.slane %v2371, %v2375
    %v2377 = vlaneseq
    %v2378 = vshrl.u32 %v2377, 7
    %v2379 = vsub.s32 1, %v2378
    %v2380 = vrot.slane %v2371, %v2379
    %v2381 = vlaneseq
    %v2382 = vshrl.u32 %v2381, 7
    %v2383 = vsub.s32 2, %v2382
    %v2384 = vrot.slane %v2371, %v2383
    %v2385 = vlaneseq
    %v2386 = vshrl.u32 %v2385, 7
    %v2387 = vsub.s32 3, %v2386
    %v2388 = vrot.slane %v2371, %v2387
    %v2389 = vlaneseq
    %v2390 = vshrl.u32 %v2389, 7
    %v2391 = vsub.s32 4, %v2390
    %v2392 = vrot.slane %v2371, %v2391
    %v2393 = vlaneseq
    %v2394 = vshrl.u32 %v2393, 7
    %v2395 = vsub.s32 5, %v2394
    %v2396 = vrot.slane %v2371, %v2395
    %v2397 = vlaneseq
    %v2398 = vshrl.u32 %v2397, 7
    %v2399 = vsub.s32 6, %v2398
    %v2400 = vrot.slane %v2371, %v2399
    %v2401 = vlaneseq
    %v2402 = vshrl.u32 %v2401, 7
    %v2403 = vsub.s32 7, %v2402
    %v2404 = vrot.slane %v2371, %v2403
    %v2413 = vmul.f32 %v702, %v2376
    %v2414 = vmul.f32 %v701, %v2380
    %v2415 = vmul.f32 %v700, %v2384
    %v2416 = vmul.f32 %v699, %v2388
    %v2417 = vmul.f32 %v698, %v2392
    %v2418 = vmul.f32 %v697, %v2396
    %v2419 = vmul.f32 %v696, %v2400
    %v2420 = vmul.f32 %v703, %v2404
    %2421 = vset.pattern.permute.xlu0 20
    %2422 = vperm.xlu0 %2421, %v567
    %v2423 = vpop.permute.xlu0 %2422
    %v2425 = vmul.f32 %v2413, %v2423
    %v2426 = vmul.f32 %v2414, %v2423
    %v2427 = vmul.f32 %v2415, %v2423
    %v2428 = vmul.f32 %v2416, %v2423
    %v2429 = vmul.f32 %v2417, %v2423
    %v2430 = vmul.f32 %v2418, %v2423
    %v2431 = vmul.f32 %v2419, %v2423
    %v2432 = vmul.f32 %v2420, %v2423
    %v2433 = vadd.f32 %v2360, %v2425
    %v2434 = vadd.f32 %v2361, %v2426
    %v2435 = vadd.f32 %v2362, %v2427
    %v2436 = vadd.f32 %v2363, %v2428
    %v2437 = vadd.f32 %v2364, %v2429
    %v2438 = vadd.f32 %v2365, %v2430
    %v2439 = vadd.f32 %v2366, %v2431
    %v2440 = vadd.f32 %v2367, %v2432
    %s2441 = scalar_lea.vmem [#allocation6], 133
    %v2442 = vld [vmem:[%s2441] ss:$8 sm:$0xf]
    %v2443 = vld [vmem:[%s2441] ss:$8 sm:$0xf0]
    %v2444 = vor.u32 %v2442, %v2443
    %v2446 = vlaneseq
    %v2447 = vshrl.u32 %v2446, 7
    %v2448 = vsub.s32 0, %v2447
    %v2449 = vrot.slane %v2444, %v2448
    %v2450 = vlaneseq
    %v2451 = vshrl.u32 %v2450, 7
    %v2452 = vsub.s32 1, %v2451
    %v2453 = vrot.slane %v2444, %v2452
    %v2454 = vlaneseq
    %v2455 = vshrl.u32 %v2454, 7
    %v2456 = vsub.s32 2, %v2455
    %v2457 = vrot.slane %v2444, %v2456
    %v2458 = vlaneseq
    %v2459 = vshrl.u32 %v2458, 7
    %v2460 = vsub.s32 3, %v2459
    %v2461 = vrot.slane %v2444, %v2460
    %v2462 = vlaneseq
    %v2463 = vshrl.u32 %v2462, 7
    %v2464 = vsub.s32 4, %v2463
    %v2465 = vrot.slane %v2444, %v2464
    %v2466 = vlaneseq
    %v2467 = vshrl.u32 %v2466, 7
    %v2468 = vsub.s32 5, %v2467
    %v2469 = vrot.slane %v2444, %v2468
    %v2470 = vlaneseq
    %v2471 = vshrl.u32 %v2470, 7
    %v2472 = vsub.s32 6, %v2471
    %v2473 = vrot.slane %v2444, %v2472
    %v2474 = vlaneseq
    %v2475 = vshrl.u32 %v2474, 7
    %v2476 = vsub.s32 7, %v2475
    %v2477 = vrot.slane %v2444, %v2476
    %v2486 = vmul.f32 %v800, %v2449
    %v2487 = vmul.f32 %v799, %v2453
    %v2488 = vmul.f32 %v798, %v2457
    %v2489 = vmul.f32 %v797, %v2461
    %v2490 = vmul.f32 %v796, %v2465
    %v2491 = vmul.f32 %v795, %v2469
    %v2492 = vmul.f32 %v794, %v2473
    %v2493 = vmul.f32 %v801, %v2477
    %2494 = vset.pattern.permute.xlu0 21
    %2495 = vperm.xlu0 %2494, %v567
    %v2496 = vpop.permute.xlu0 %2495
    %v2498 = vmul.f32 %v2486, %v2496
    %v2499 = vmul.f32 %v2487, %v2496
    %v2500 = vmul.f32 %v2488, %v2496
    %v2501 = vmul.f32 %v2489, %v2496
    %v2502 = vmul.f32 %v2490, %v2496
    %v2503 = vmul.f32 %v2491, %v2496
    %v2504 = vmul.f32 %v2492, %v2496
    %v2505 = vmul.f32 %v2493, %v2496
    %v2506 = vadd.f32 %v2433, %v2498
    %v2507 = vadd.f32 %v2434, %v2499
    %v2508 = vadd.f32 %v2435, %v2500
    %v2509 = vadd.f32 %v2436, %v2501
    %v2510 = vadd.f32 %v2437, %v2502
    %v2511 = vadd.f32 %v2438, %v2503
    %v2512 = vadd.f32 %v2439, %v2504
    %v2513 = vadd.f32 %v2440, %v2505
    %s2514 = scalar_lea.vmem [#allocation6], 134
    %v2515 = vld [vmem:[%s2514] ss:$8 sm:$0xf]
    %v2516 = vld [vmem:[%s2514] ss:$8 sm:$0xf0]
    %v2517 = vor.u32 %v2515, %v2516
    %v2519 = vlaneseq
    %v2520 = vshrl.u32 %v2519, 7
    %v2521 = vsub.s32 0, %v2520
    %v2522 = vrot.slane %v2517, %v2521
    %v2523 = vlaneseq
    %v2524 = vshrl.u32 %v2523, 7
    %v2525 = vsub.s32 1, %v2524
    %v2526 = vrot.slane %v2517, %v2525
    %v2527 = vlaneseq
    %v2528 = vshrl.u32 %v2527, 7
    %v2529 = vsub.s32 2, %v2528
    %v2530 = vrot.slane %v2517, %v2529
    %v2531 = vlaneseq
    %v2532 = vshrl.u32 %v2531, 7
    %v2533 = vsub.s32 3, %v2532
    %v2534 = vrot.slane %v2517, %v2533
    %v2535 = vlaneseq
    %v2536 = vshrl.u32 %v2535, 7
    %v2537 = vsub.s32 4, %v2536
    %v2538 = vrot.slane %v2517, %v2537
    %v2539 = vlaneseq
    %v2540 = vshrl.u32 %v2539, 7
    %v2541 = vsub.s32 5, %v2540
    %v2542 = vrot.slane %v2517, %v2541
    %v2543 = vlaneseq
    %v2544 = vshrl.u32 %v2543, 7
    %v2545 = vsub.s32 6, %v2544
    %v2546 = vrot.slane %v2517, %v2545
    %v2547 = vlaneseq
    %v2548 = vshrl.u32 %v2547, 7
    %v2549 = vsub.s32 7, %v2548
    %v2550 = vrot.slane %v2517, %v2549
    %v2559 = vmul.f32 %v898, %v2522
    %v2560 = vmul.f32 %v897, %v2526
    %v2561 = vmul.f32 %v896, %v2530
    %v2562 = vmul.f32 %v895, %v2534
    %v2563 = vmul.f32 %v894, %v2538
    %v2564 = vmul.f32 %v893, %v2542
    %v2565 = vmul.f32 %v892, %v2546
    %v2566 = vmul.f32 %v899, %v2550
    %2567 = vset.pattern.permute.xlu0 22
    %2568 = vperm.xlu0 %2567, %v567
    %v2569 = vpop.permute.xlu0 %2568
    %v2571 = vmul.f32 %v2559, %v2569
    %v2572 = vmul.f32 %v2560, %v2569
    %v2573 = vmul.f32 %v2561, %v2569
    %v2574 = vmul.f32 %v2562, %v2569
    %v2575 = vmul.f32 %v2563, %v2569
    %v2576 = vmul.f32 %v2564, %v2569
    %v2577 = vmul.f32 %v2565, %v2569
    %v2578 = vmul.f32 %v2566, %v2569
    %v2579 = vadd.f32 %v2506, %v2571
    %v2580 = vadd.f32 %v2507, %v2572
    %v2581 = vadd.f32 %v2508, %v2573
    %v2582 = vadd.f32 %v2509, %v2574
    %v2583 = vadd.f32 %v2510, %v2575
    %v2584 = vadd.f32 %v2511, %v2576
    %v2585 = vadd.f32 %v2512, %v2577
    %v2586 = vadd.f32 %v2513, %v2578
    %s2587 = scalar_lea.vmem [#allocation6], 135
    %v2588 = vld [vmem:[%s2587] ss:$8 sm:$0xf]
    %v2589 = vld [vmem:[%s2587] ss:$8 sm:$0xf0]
    %v2590 = vor.u32 %v2588, %v2589
    %v2592 = vlaneseq
    %v2593 = vshrl.u32 %v2592, 7
    %v2594 = vsub.s32 0, %v2593
    %v2595 = vrot.slane %v2590, %v2594
    %v2596 = vlaneseq
    %v2597 = vshrl.u32 %v2596, 7
    %v2598 = vsub.s32 1, %v2597
    %v2599 = vrot.slane %v2590, %v2598
    %v2600 = vlaneseq
    %v2601 = vshrl.u32 %v2600, 7
    %v2602 = vsub.s32 2, %v2601
    %v2603 = vrot.slane %v2590, %v2602
    %v2604 = vlaneseq
    %v2605 = vshrl.u32 %v2604, 7
    %v2606 = vsub.s32 3, %v2605
    %v2607 = vrot.slane %v2590, %v2606
    %v2608 = vlaneseq
    %v2609 = vshrl.u32 %v2608, 7
    %v2610 = vsub.s32 4, %v2609
    %v2611 = vrot.slane %v2590, %v2610
    %v2612 = vlaneseq
    %v2613 = vshrl.u32 %v2612, 7
    %v2614 = vsub.s32 5, %v2613
    %v2615 = vrot.slane %v2590, %v2614
    %v2616 = vlaneseq
    %v2617 = vshrl.u32 %v2616, 7
    %v2618 = vsub.s32 6, %v2617
    %v2619 = vrot.slane %v2590, %v2618
    %v2620 = vlaneseq
    %v2621 = vshrl.u32 %v2620, 7
    %v2622 = vsub.s32 7, %v2621
    %v2623 = vrot.slane %v2590, %v2622
    %v2632 = vmul.f32 %v996, %v2595
    %v2633 = vmul.f32 %v995, %v2599
    %v2634 = vmul.f32 %v994, %v2603
    %v2635 = vmul.f32 %v993, %v2607
    %v2636 = vmul.f32 %v992, %v2611
    %v2637 = vmul.f32 %v991, %v2615
    %v2638 = vmul.f32 %v990, %v2619
    %v2639 = vmul.f32 %v997, %v2623
    %2640 = vset.pattern.permute.xlu0 23
    %2641 = vperm.xlu0 %2640, %v567
    %v2642 = vpop.permute.xlu0 %2641
    %v2644 = vmul.f32 %v2632, %v2642
    %v2645 = vmul.f32 %v2633, %v2642
    %v2646 = vmul.f32 %v2634, %v2642
    %v2647 = vmul.f32 %v2635, %v2642
    %v2648 = vmul.f32 %v2636, %v2642
    %v2649 = vmul.f32 %v2637, %v2642
    %v2650 = vmul.f32 %v2638, %v2642
    %v2651 = vmul.f32 %v2639, %v2642
    %v2652 = vadd.f32 %v2579, %v2644
    %v2653 = vadd.f32 %v2580, %v2645
    %v2654 = vadd.f32 %v2581, %v2646
    %v2655 = vadd.f32 %v2582, %v2647
    %v2656 = vadd.f32 %v2583, %v2648
    %v2657 = vadd.f32 %v2584, %v2649
    %v2658 = vadd.f32 %v2585, %v2650
    %v2659 = vadd.f32 %v2586, %v2651
    %s2660 = scalar_lea.vmem [#allocation6], 192
    %v2661 = vld [vmem:[%s2660] ss:$8 sm:$0xf]
    %v2662 = vld [vmem:[%s2660] ss:$8 sm:$0xf0]
    %v2663 = vor.u32 %v2661, %v2662
    %v2665 = vlaneseq
    %v2666 = vshrl.u32 %v2665, 7
    %v2667 = vsub.s32 0, %v2666
    %v2668 = vrot.slane %v2663, %v2667
    %v2669 = vlaneseq
    %v2670 = vshrl.u32 %v2669, 7
    %v2671 = vsub.s32 1, %v2670
    %v2672 = vrot.slane %v2663, %v2671
    %v2673 = vlaneseq
    %v2674 = vshrl.u32 %v2673, 7
    %v2675 = vsub.s32 2, %v2674
    %v2676 = vrot.slane %v2663, %v2675
    %v2677 = vlaneseq
    %v2678 = vshrl.u32 %v2677, 7
    %v2679 = vsub.s32 3, %v2678
    %v2680 = vrot.slane %v2663, %v2679
    %v2681 = vlaneseq
    %v2682 = vshrl.u32 %v2681, 7
    %v2683 = vsub.s32 4, %v2682
    %v2684 = vrot.slane %v2663, %v2683
    %v2685 = vlaneseq
    %v2686 = vshrl.u32 %v2685, 7
    %v2687 = vsub.s32 5, %v2686
    %v2688 = vrot.slane %v2663, %v2687
    %v2689 = vlaneseq
    %v2690 = vshrl.u32 %v2689, 7
    %v2691 = vsub.s32 6, %v2690
    %v2692 = vrot.slane %v2663, %v2691
    %v2693 = vlaneseq
    %v2694 = vshrl.u32 %v2693, 7
    %v2695 = vsub.s32 7, %v2694
    %v2696 = vrot.slane %v2663, %v2695
    %v2705 = vmul.f32 %v1094, %v2668
    %v2706 = vmul.f32 %v1093, %v2672
    %v2707 = vmul.f32 %v1092, %v2676
    %v2708 = vmul.f32 %v1091, %v2680
    %v2709 = vmul.f32 %v1090, %v2684
    %v2710 = vmul.f32 %v1089, %v2688
    %v2711 = vmul.f32 %v1088, %v2692
    %v2712 = vmul.f32 %v1095, %v2696
    %2713 = vset.pattern.permute.xlu0 24
    %2714 = vperm.xlu0 %2713, %v567
    %v2715 = vpop.permute.xlu0 %2714
    %v2717 = vmul.f32 %v2705, %v2715
    %v2718 = vmul.f32 %v2706, %v2715
    %v2719 = vmul.f32 %v2707, %v2715
    %v2720 = vmul.f32 %v2708, %v2715
    %v2721 = vmul.f32 %v2709, %v2715
    %v2722 = vmul.f32 %v2710, %v2715
    %v2723 = vmul.f32 %v2711, %v2715
    %v2724 = vmul.f32 %v2712, %v2715
    %v2725 = vadd.f32 %v2652, %v2717
    %v2726 = vadd.f32 %v2653, %v2718
    %v2727 = vadd.f32 %v2654, %v2719
    %v2728 = vadd.f32 %v2655, %v2720
    %v2729 = vadd.f32 %v2656, %v2721
    %v2730 = vadd.f32 %v2657, %v2722
    %v2731 = vadd.f32 %v2658, %v2723
    %v2732 = vadd.f32 %v2659, %v2724
    %s2733 = scalar_lea.vmem [#allocation6], 193
    %v2734 = vld [vmem:[%s2733] ss:$8 sm:$0xf]
    %v2735 = vld [vmem:[%s2733] ss:$8 sm:$0xf0]
    %v2736 = vor.u32 %v2734, %v2735
    %v2738 = vlaneseq
    %v2739 = vshrl.u32 %v2738, 7
    %v2740 = vsub.s32 0, %v2739
    %v2741 = vrot.slane %v2736, %v2740
    %v2742 = vlaneseq
    %v2743 = vshrl.u32 %v2742, 7
    %v2744 = vsub.s32 1, %v2743
    %v2745 = vrot.slane %v2736, %v2744
    %v2746 = vlaneseq
    %v2747 = vshrl.u32 %v2746, 7
    %v2748 = vsub.s32 2, %v2747
    %v2749 = vrot.slane %v2736, %v2748
    %v2750 = vlaneseq
    %v2751 = vshrl.u32 %v2750, 7
    %v2752 = vsub.s32 3, %v2751
    %v2753 = vrot.slane %v2736, %v2752
    %v2754 = vlaneseq
    %v2755 = vshrl.u32 %v2754, 7
    %v2756 = vsub.s32 4, %v2755
    %v2757 = vrot.slane %v2736, %v2756
    %v2758 = vlaneseq
    %v2759 = vshrl.u32 %v2758, 7
    %v2760 = vsub.s32 5, %v2759
    %v2761 = vrot.slane %v2736, %v2760
    %v2762 = vlaneseq
    %v2763 = vshrl.u32 %v2762, 7
    %v2764 = vsub.s32 6, %v2763
    %v2765 = vrot.slane %v2736, %v2764
    %v2766 = vlaneseq
    %v2767 = vshrl.u32 %v2766, 7
    %v2768 = vsub.s32 7, %v2767
    %v2769 = vrot.slane %v2736, %v2768
    %v2778 = vmul.f32 %v1192, %v2741
    %v2779 = vmul.f32 %v1191, %v2745
    %v2780 = vmul.f32 %v1190, %v2749
    %v2781 = vmul.f32 %v1189, %v2753
    %v2782 = vmul.f32 %v1188, %v2757
    %v2783 = vmul.f32 %v1187, %v2761
    %v2784 = vmul.f32 %v1186, %v2765
    %v2785 = vmul.f32 %v1193, %v2769
    %2786 = vset.pattern.permute.xlu0 25
    %2787 = vperm.xlu0 %2786, %v567
    %v2788 = vpop.permute.xlu0 %2787
    %v2790 = vmul.f32 %v2778, %v2788
    %v2791 = vmul.f32 %v2779, %v2788
    %v2792 = vmul.f32 %v2780, %v2788
    %v2793 = vmul.f32 %v2781, %v2788
    %v2794 = vmul.f32 %v2782, %v2788
    %v2795 = vmul.f32 %v2783, %v2788
    %v2796 = vmul.f32 %v2784, %v2788
    %v2797 = vmul.f32 %v2785, %v2788
    %v2798 = vadd.f32 %v2725, %v2790
    %v2799 = vadd.f32 %v2726, %v2791
    %v2800 = vadd.f32 %v2727, %v2792
    %v2801 = vadd.f32 %v2728, %v2793
    %v2802 = vadd.f32 %v2729, %v2794
    %v2803 = vadd.f32 %v2730, %v2795
    %v2804 = vadd.f32 %v2731, %v2796
    %v2805 = vadd.f32 %v2732, %v2797
    %s2806 = scalar_lea.vmem [#allocation6], 194
    %v2807 = vld [vmem:[%s2806] ss:$8 sm:$0xf]
    %v2808 = vld [vmem:[%s2806] ss:$8 sm:$0xf0]
    %v2809 = vor.u32 %v2807, %v2808
    %v2811 = vlaneseq
    %v2812 = vshrl.u32 %v2811, 7
    %v2813 = vsub.s32 0, %v2812
    %v2814 = vrot.slane %v2809, %v2813
    %v2815 = vlaneseq
    %v2816 = vshrl.u32 %v2815, 7
    %v2817 = vsub.s32 1, %v2816
    %v2818 = vrot.slane %v2809, %v2817
    %v2819 = vlaneseq
    %v2820 = vshrl.u32 %v2819, 7
    %v2821 = vsub.s32 2, %v2820
    %v2822 = vrot.slane %v2809, %v2821
    %v2823 = vlaneseq
    %v2824 = vshrl.u32 %v2823, 7
    %v2825 = vsub.s32 3, %v2824
    %v2826 = vrot.slane %v2809, %v2825
    %v2827 = vlaneseq
    %v2828 = vshrl.u32 %v2827, 7
    %v2829 = vsub.s32 4, %v2828
    %v2830 = vrot.slane %v2809, %v2829
    %v2831 = vlaneseq
    %v2832 = vshrl.u32 %v2831, 7
    %v2833 = vsub.s32 5, %v2832
    %v2834 = vrot.slane %v2809, %v2833
    %v2835 = vlaneseq
    %v2836 = vshrl.u32 %v2835, 7
    %v2837 = vsub.s32 6, %v2836
    %v2838 = vrot.slane %v2809, %v2837
    %v2839 = vlaneseq
    %v2840 = vshrl.u32 %v2839, 7
    %v2841 = vsub.s32 7, %v2840
    %v2842 = vrot.slane %v2809, %v2841
    %v2851 = vmul.f32 %v1290, %v2814
    %v2852 = vmul.f32 %v1289, %v2818
    %v2853 = vmul.f32 %v1288, %v2822
    %v2854 = vmul.f32 %v1287, %v2826
    %v2855 = vmul.f32 %v1286, %v2830
    %v2856 = vmul.f32 %v1285, %v2834
    %v2857 = vmul.f32 %v1284, %v2838
    %v2858 = vmul.f32 %v1291, %v2842
    %2859 = vset.pattern.permute.xlu0 26
    %2860 = vperm.xlu0 %2859, %v567
    %v2861 = vpop.permute.xlu0 %2860
    %v2863 = vmul.f32 %v2851, %v2861
    %v2864 = vmul.f32 %v2852, %v2861
    %v2865 = vmul.f32 %v2853, %v2861
    %v2866 = vmul.f32 %v2854, %v2861
    %v2867 = vmul.f32 %v2855, %v2861
    %v2868 = vmul.f32 %v2856, %v2861
    %v2869 = vmul.f32 %v2857, %v2861
    %v2870 = vmul.f32 %v2858, %v2861
    %v2871 = vadd.f32 %v2798, %v2863
    %v2872 = vadd.f32 %v2799, %v2864
    %v2873 = vadd.f32 %v2800, %v2865
    %v2874 = vadd.f32 %v2801, %v2866
    %v2875 = vadd.f32 %v2802, %v2867
    %v2876 = vadd.f32 %v2803, %v2868
    %v2877 = vadd.f32 %v2804, %v2869
    %v2878 = vadd.f32 %v2805, %v2870
    %v2879 = vrot.slane %v2871, 4
    %v2880 = vadd.f32 %v2871, %v2879
    %v2881 = vrot.slane %v2880, 2
    %v2882 = vadd.f32 %v2880, %v2881
    %v2883 = vrot.slane %v2882, 1
    %v2884 = vadd.f32 %v2882, %v2883
    %v2885 = vrot.slane %v2872, 4
    %v2886 = vadd.f32 %v2872, %v2885
    %v2887 = vrot.slane %v2886, 2
    %v2888 = vadd.f32 %v2886, %v2887
    %v2889 = vrot.slane %v2888, 1
    %v2890 = vadd.f32 %v2888, %v2889
    %v2891 = vrot.slane %v2873, 4
    %v2892 = vadd.f32 %v2873, %v2891
    %v2893 = vrot.slane %v2892, 2
    %v2894 = vadd.f32 %v2892, %v2893
    %v2895 = vrot.slane %v2894, 1
    %v2896 = vadd.f32 %v2894, %v2895
    %v2897 = vrot.slane %v2874, 4
    %v2898 = vadd.f32 %v2874, %v2897
    %v2899 = vrot.slane %v2898, 2
    %v2900 = vadd.f32 %v2898, %v2899
    %v2901 = vrot.slane %v2900, 1
    %v2902 = vadd.f32 %v2900, %v2901
    %v2903 = vrot.slane %v2875, 4
    %v2904 = vadd.f32 %v2875, %v2903
    %v2905 = vrot.slane %v2904, 2
    %v2906 = vadd.f32 %v2904, %v2905
    %v2907 = vrot.slane %v2906, 1
    %v2908 = vadd.f32 %v2906, %v2907
    %v2909 = vrot.slane %v2876, 4
    %v2910 = vadd.f32 %v2876, %v2909
    %v2911 = vrot.slane %v2910, 2
    %v2912 = vadd.f32 %v2910, %v2911
    %v2913 = vrot.slane %v2912, 1
    %v2914 = vadd.f32 %v2912, %v2913
    %v2915 = vrot.slane %v2877, 4
    %v2916 = vadd.f32 %v2877, %v2915
    %v2917 = vrot.slane %v2916, 2
    %v2918 = vadd.f32 %v2916, %v2917
    %v2919 = vrot.slane %v2918, 1
    %v2920 = vadd.f32 %v2918, %v2919
    %v2921 = vrot.slane %v2878, 4
    %v2922 = vadd.f32 %v2878, %v2921
    %v2923 = vrot.slane %v2922, 2
    %v2924 = vadd.f32 %v2922, %v2923
    %v2925 = vrot.slane %v2924, 1
    %v2926 = vadd.f32 %v2924, %v2925
    %v2927 = vadd.f32 %v2884, %v2890
    %v2928 = vadd.f32 %v2927, %v2896
    %v2929 = vadd.f32 %v2928, %v2902
    %v2930 = vadd.f32 %v2929, %v2908
    %v2931 = vadd.f32 %v2930, %v2914
    %v2932 = vadd.f32 %v2931, %v2920
    %v2933 = vadd.f32 %v2932, %v2926
    %2934 = vadd.xlane.f32.xlu0 %v2933
    %v2935 = vpop.xlane.xlu0 %2934
    %v2936 = vmul.f32 %v2935, 0.0009765625
    %v2937 = vmul.f32 %v2884, %v2884
    %v2938 = vmul.f32 %v2890, %v2890
    %v2939 = vmul.f32 %v2896, %v2896
    %v2940 = vmul.f32 %v2902, %v2902
    %v2941 = vmul.f32 %v2908, %v2908
    %v2942 = vmul.f32 %v2914, %v2914
    %v2943 = vmul.f32 %v2920, %v2920
    %v2944 = vmul.f32 %v2926, %v2926
    %v2945 = vadd.f32 %v2937, %v2938
    %v2946 = vadd.f32 %v2945, %v2939
    %v2947 = vadd.f32 %v2946, %v2940
    %v2948 = vadd.f32 %v2947, %v2941
    %v2949 = vadd.f32 %v2948, %v2942
    %v2950 = vadd.f32 %v2949, %v2943
    %v2951 = vadd.f32 %v2950, %v2944
    %2952 = vadd.xlane.f32.xlu0 %v2951
    %v2953 = vpop.xlane.xlu0 %2952
    %v2954 = vmul.f32 %v2953, 0.0009765625
    %v2955 = vld [vmem:[#allocation2] sm:$0x1]
    %v2956 = vmul.f32 %v2936, %v2936
    %v2957 = vsub.f32 %v2954, %v2956
    %v2958 = vadd.f32 %v2957, 1e-05
    %v2959 = vrsqrt.pop %v2958
    %v2960 = vmul.f32 %v2955, %v2959
    %v2961 = vld [vmem:[#allocation3] sm:$0x1]
    %v2962 = vmul.f32 %v2936, %v2960
    %v2963 = vsub.f32 %v2961, %v2962
    %2965 = vset.pattern.permute.xlu0 0
    %2966 = vperm.xlu0 %2965, %v2960
    %v2967 = vpop.permute.xlu0 %2966
    %v2969 = vlaneseq
    %v2970 = vshrl.u32 %v2969, 7
    %v2971 = vsub.s32 0, %v2970
    %v2972 = vrot.slane %v2967, %v2971
    %v2973 = vmul.f32 %v2884, %v2972
    %v2974 = vmul.f32 %v2890, %v2972
    %v2975 = vmul.f32 %v2896, %v2972
    %v2976 = vmul.f32 %v2902, %v2972
    %v2977 = vmul.f32 %v2908, %v2972
    %v2978 = vmul.f32 %v2914, %v2972
    %v2979 = vmul.f32 %v2920, %v2972
    %v2980 = vmul.f32 %v2926, %v2972
    %2982 = vset.pattern.permute.xlu0 0
    %2983 = vperm.xlu0 %2982, %v2963
    %v2984 = vpop.permute.xlu0 %2983
    %v2986 = vlaneseq
    %v2987 = vshrl.u32 %v2986, 7
    %v2988 = vsub.s32 0, %v2987
    %v2989 = vrot.slane %v2984, %v2988
    %v2990 = vadd.f32 %v2973, %v2989
    %v2991 = vadd.f32 %v2974, %v2989
    %v2992 = vadd.f32 %v2975, %v2989
    %v2993 = vadd.f32 %v2976, %v2989
    %v2994 = vadd.f32 %v2977, %v2989
    %v2995 = vadd.f32 %v2978, %v2989
    %v2996 = vadd.f32 %v2979, %v2989
    %v2997 = vadd.f32 %v2980, %v2989
    %v2998 = vmax.f32 %v2990, 0.0
    %v2999 = vmax.f32 %v2991, 0.0
    %v3000 = vmax.f32 %v2992, 0.0
    %v3001 = vmax.f32 %v2993, 0.0
    %v3002 = vmax.f32 %v2994, 0.0
    %v3003 = vmax.f32 %v2995, 0.0
    %v3004 = vmax.f32 %v2996, 0.0
    %v3005 = vmax.f32 %v2997, 0.0
    %v3006 = vld [vmem:[%s8] sm:$0xff]
    %v3007 = vld [vmem:[%s8 + $0x8] sm:$0xff]
    %v3010 = vcombine.high %v3006, %v3006
    %v3012 = vunpack.c.l.s4 1983009808
    %v3013 = vunpack.c.0.s8 %v3012
    %v3014 = vlaneseq
    %v3015 = vshrl.u32 %v3014, 7
    %v3016 = vsub.s32 %v3013, %v3015
    %v3017 = vrot.slane %v3006, %v3016
    %v3019 = vunpack.c.l.s4 1983009808
    %v3020 = vunpack.c.0.s8 %v3019
    %v3021 = vlaneseq
    %v3022 = vshrl.u32 %v3021, 7
    %v3023 = vsub.s32 %v3020, %v3022
    %v3024 = vrot.slane %v3010, %v3023
    %v3025 = vcombine.high %v3017, %v3017
    %v3026 = vcombine.high %v3024, %v3024
    %v3027 = vcombine.high %v3007, %v3007
    %v3029 = vunpack.c.l.s4 1983009808
    %v3030 = vunpack.c.0.s8 %v3029
    %v3031 = vlaneseq
    %v3032 = vshrl.u32 %v3031, 7
    %v3033 = vsub.s32 %v3030, %v3032
    %v3034 = vrot.slane %v3007, %v3033
    %v3036 = vunpack.c.l.s4 1983009808
    %v3037 = vunpack.c.0.s8 %v3036
    %v3038 = vlaneseq
    %v3039 = vshrl.u32 %v3038, 7
    %v3040 = vsub.s32 %v3037, %v3039
    %v3041 = vrot.slane %v3027, %v3040
    %v3042 = vcombine.high %v3034, %v3034
    %v3043 = vcombine.high %v3041, %v3041
    %v3052 = vmul.f32 %v2998, %v3017
    %v3053 = vmul.f32 %v2999, %v3025
    %v3054 = vmul.f32 %v3000, %v3024
    %v3055 = vmul.f32 %v3001, %v3026
    %v3056 = vmul.f32 %v3002, %v3034
    %v3057 = vmul.f32 %v3003, %v3042
    %v3058 = vmul.f32 %v3004, %v3041
    %v3059 = vmul.f32 %v3005, %v3043
    %vm3060 = vcmask 1041408
    %v3061 = vsel %vm3060, %v3052, 0.0
    %v3062 = vsel %vm3060, %v3053, 0.0
    %v3063 = vadd.f32 %v3061, %v3062
    %v3064 = vsel %vm3060, %v3054, 0.0
    %v3065 = vadd.f32 %v3063, %v3064
    %v3066 = vsel %vm3060, %v3055, 0.0
    %v3067 = vadd.f32 %v3065, %v3066
    %v3068 = vsel %vm3060, %v3056, 0.0
    %v3069 = vadd.f32 %v3067, %v3068
    %v3070 = vsel %vm3060, %v3057, 0.0
    %v3071 = vadd.f32 %v3069, %v3070
    %v3072 = vsel %vm3060, %v3058, 0.0
    %v3073 = vadd.f32 %v3071, %v3072
    %v3074 = vsel %vm3060, %v3059, 0.0
    %v3075 = vadd.f32 %v3073, %v3074
    %3076 = vadd.xlane.f32.xlu0 %v3075
    %v3077 = vpop.xlane.xlu0 %3076
    %vm3078 = vcmask 1024
    %3079 = vst.msk [vmem:[%s9] sm:$0x3] %vm3078, %v3077
    // Predicated region
    $region46: #{tpu_custom_call.1} parent=1 // pred_check
      _
    $region47: #{tpu_custom_call.1} parent=1 // pred_check_branch
      %3081 = sbr.rel (0) target = $region49
    $region48: #{tpu_custom_call.1} parent=1 // pred_region
      _
    $region49: #{tpu_custom_call.1} parent=1 // pred_fallthru
      _
    // Predicated region
    $region50: #{tpu_custom_call.1} parent=1 // pred_check
      _
    $region51: #{tpu_custom_call.1} parent=1 // pred_check_branch
      %3083 = sbr.rel (0) target = $region53
    $region52: #{tpu_custom_call.1} parent=1 // pred_region
      _
    $region53: #{tpu_custom_call.1} parent=1 // pred_fallthru
      _
    %3084 = vsyncpa [#allocation5], 1
    %3085 = vsyncpa [#allocation7], 1

</llo_original>
